<compile_context>
chip_gen: v6e
topology: v6e:2x2x1
jax: 0.10.0
libtpu: 0.0.40
codegen_flags: <defaults>
</compile_context>

<pallas_src>
import functools

import jax
import jax.numpy as jnp
from jax import lax
from jax.experimental import pallas as pl
from jax.experimental.pallas import tpu as pltpu


def _round_up(x, m):
    return -(-x // m) * m


def _cdiv(a, b):
    return -(-a // b)


def _use_bf16_activations():
    # bf16 EUP (sigmoid/tanh) exists on v6e/v7x; v5e and older have f32-only EUP.
    try:
        kind = jax.devices()[0].device_kind.lower()
    except Exception:  # pragma: no cover - non-TPU fallback
        return False
    return ("v6" in kind) or ("v7" in kind)


# --------------------------------------------------------------------------
# Kernel
# --------------------------------------------------------------------------
def birnn_lstm_pool_kernel(
        xf_ref, xb_ref, mf_ref, mb_ref, invlen_ref,
        wf_ih_ref, wb_ih_ref, bf_ref, bb_ref, wf_hh_ref, wb_hh_ref,
        out_ref,
        hf_ref, cf_ref, accf_ref, hb_ref, cb_ref, accb_ref,
        xpf_ref, xpb_ref,
        *, t_blk, b_pad, h_pad, unroll, act_dtype):
    i = pl.program_id(0)
    n_blk = pl.num_programs(0)

    # ---- init carried state on the first time-block ----------------------
    @pl.when(i == 0)
    def _():
        z = jnp.zeros((b_pad, h_pad), jnp.float32)
        hf_ref[...] = z; cf_ref[...] = z; accf_ref[...] = z
        hb_ref[...] = z; cb_ref[...] = z; accb_ref[...] = z

    # ---- hoisted input projection: one bf16 GEMM per direction -----------
    # (t_blk*b_pad, D) @ (D, 4*Hp) -> f32; bias folded here, NOT per step.
    xpf_ref[...] = jnp.dot(xf_ref[...], wf_ih_ref[...],
                           preferred_element_type=jnp.float32) + bf_ref[...]
    xpb_ref[...] = jnp.dot(xb_ref[...], wb_ih_ref[...],
                           preferred_element_type=jnp.float32) + bb_ref[...]

    wf_hh = wf_hh_ref[...]        # (Hp, 4Hp) bf16 (single-pass MXU on the chain)
    wb_hh = wb_hh_ref[...]

    # ---- interleaved forward / backward recurrence over this time block --
    def step(j, carry):
        hf, cf, accf, hb, cb, accb = carry
        rf = pl.multiple_of(j * b_pad, b_pad)                  # fwd local time j
        rb = pl.multiple_of((t_blk - 1 - j) * b_pad, b_pad)    # bwd local time

        # only per-step matmuls: h(bf16) @ W_hh(bf16) -> f32 acc, one per dir
        gf = xpf_ref[pl.ds(rf, b_pad), :] + jnp.dot(
            hf.astype(jnp.bfloat16), wf_hh, preferred_element_type=jnp.float32)
        gb = xpb_ref[pl.ds(rb, b_pad), :] + jnp.dot(
            hb.astype(jnp.bfloat16), wb_hh, preferred_element_type=jnp.float32)
        mf = mf_ref[pl.ds(rf, b_pad), :]                       # (b_pad, 1)
        mb = mb_ref[pl.ds(rb, b_pad), :]

        # gate activations in act_dtype (bf16 on v6e/v7x, f32 on v5e);
        # gate order i, f, g, o; slices are whole 128-lane vregs (h_pad % 128 == 0)
        ga_f = gf.astype(act_dtype)
        ga_b = gb.astype(act_dtype)

        i_f = jax.nn.sigmoid(ga_f[:, 0:h_pad]).astype(jnp.float32)
        f_f = jax.nn.sigmoid(ga_f[:, h_pad:2 * h_pad]).astype(jnp.float32)
        g_f = jnp.tanh(ga_f[:, 2 * h_pad:3 * h_pad]).astype(jnp.float32)
        o_f = jax.nn.sigmoid(ga_f[:, 3 * h_pad:4 * h_pad]).astype(jnp.float32)
        cf = f_f * cf + i_f * g_f                 # state math stays f32
        hf = o_f * jnp.tanh(cf)
        accf = accf + mf * hf                     # forward: mask pooled output only

        i_b = jax.nn.sigmoid(ga_b[:, 0:h_pad]).astype(jnp.float32)
        f_b = jax.nn.sigmoid(ga_b[:, h_pad:2 * h_pad]).astype(jnp.float32)
        g_b = jnp.tanh(ga_b[:, 2 * h_pad:3 * h_pad]).astype(jnp.float32)
        o_b = jax.nn.sigmoid(ga_b[:, 3 * h_pad:4 * h_pad]).astype(jnp.float32)
        cb_n = f_b * cb + i_b * g_b
        hb_n = o_b * jnp.tanh(cb_n)
        hb = mb * hb_n                            # pack_padded: reverse chain
        cb = mb * cb_n                            # restarts at t = length - 1
        accb = accb + hb                          # already zero on padded steps
        return hf, cf, accf, hb, cb, accb

    carry = (hf_ref[...], cf_ref[...], accf_ref[...],
             hb_ref[...], cb_ref[...], accb_ref[...])
    hf, cf, accf, hb, cb, accb = lax.fori_loop(0, t_blk, step, carry,
                                               unroll=unroll)
    hf_ref[...] = hf; cf_ref[...] = cf; accf_ref[...] = accf
    hb_ref[...] = hb; cb_ref[...] = cb; accb_ref[...] = accb

    # ---- epilogue: multiply by precomputed 1/len, direct aligned stores --
    @pl.when(i == n_blk - 1)
    def _():
        inv = invlen_ref[...]                                  # (b_pad, 1)
        out_ref[:, :h_pad] = accf_ref[...] * inv
        out_ref[:, h_pad:] = accb_ref[...] * inv


# --------------------------------------------------------------------------
# Weight packing (done ONCE, outside the jitted forward)
# --------------------------------------------------------------------------
def pack_rnn_params(params):
    """Pack LSTM weights into an MXU / lane friendly layout.

    Gate order (i, f, g, o) is preserved; each gate is padded from H to
    Hp = round_up(H, 128) lanes so gate slices land on 128-lane boundaries.
    Both input-projection and recurrent weights are bf16 (MXU-native); biases
    stay f32 and state math stays f32 inside the kernel.
    """
    H = params["wf_hh"].shape[1]
    Hp = max(128, _round_up(H, 128))

    def gate_cols(w):                       # (4H, K) -> (K, 4*Hp)
        K = w.shape[1]
        w = jnp.transpose(w.reshape(4, H, K), (2, 0, 1))       # (K, 4, H)
        w = jnp.pad(w, ((0, 0), (0, 0), (0, Hp - H)))
        return w.reshape(K, 4 * Hp)

    def gate_bias(b):                       # (4H,) -> (1, 4*Hp)
        b = jnp.pad(b.reshape(4, H), ((0, 0), (0, Hp - H)))
        return b.reshape(1, 4 * Hp)

    return {
        "wf_ih": gate_cols(params["wf_ih"]).astype(jnp.bfloat16),   # (D, 4Hp)
        "wb_ih": gate_cols(params["wb_ih"]).astype(jnp.bfloat16),
        "wf_hh": jnp.pad(gate_cols(params["wf_hh"]),
                         ((0, Hp - H), (0, 0))).astype(jnp.bfloat16),  # (Hp,4Hp)
        "wb_hh": jnp.pad(gate_cols(params["wb_hh"]),
                         ((0, Hp - H), (0, 0))).astype(jnp.bfloat16),
        "bf": gate_bias(params["bf_ih"] + params["bf_hh"]),          # (1, 4Hp) f32
        "bb": gate_bias(params["bb_ih"] + params["bb_hh"]),
    }


# --------------------------------------------------------------------------
# VMEM footprint model (drives time-block size + explicit vmem_limit_bytes)
# --------------------------------------------------------------------------
def _vmem_footprint_bytes(t_blk, b_pad, d, hp):
    x_blk = t_blk * b_pad * d * 2            # bf16 x time-block
    m_blk = t_blk * b_pad * 1 * 4            # f32 mask block
    proj = t_blk * b_pad * 4 * hp * 4        # f32 hoisted-projection scratch
    state = b_pad * hp * 4                   # f32 h/c/acc tile
    w_ih = d * 4 * hp * 2                    # bf16
    w_hh = hp * 4 * hp * 2                   # bf16
    bias = 4 * hp * 4
    out = b_pad * 2 * hp * 4
    return (2 * 2 * (x_blk + m_blk)          # fwd/bwd streams, double-buffered
            + 2 * proj                       # xpf / xpb scratch
            + 6 * state                      # h/c/acc x 2 directions
            + 2 * (w_ih + w_hh + bias)       # single-buffered constants
            + b_pad * 4                      # 1/len
            + 2 * out)                       # output block


# --------------------------------------------------------------------------
# Forward wrapper
# --------------------------------------------------------------------------
def birnn_dual_forward(token_ids, lengths, embed, packed, *, dim_hidden,
                       t_block=64):
    """token_ids: (B,T) int32, lengths: (B,) int32 -> r_s: (B, 2H) float32."""
    H = dim_hidden
    D = packed["wf_ih"].shape[0]
    Hp = packed["wf_hh"].shape[0]
    B, T = token_ids.shape

    b_pad = max(8, _round_up(B, 8))          # sublane-align; keep whole batch

    # time-block sizing: as large as fits a conservative cross-chip VMEM budget
    budget = 24 * 2**20                      # safe on v5e/v6e (128 MiB) and v7x (64 MiB)
    t_blk = max(1, min(t_block, T))
    while t_blk > 1 and _vmem_footprint_bytes(t_blk, b_pad, D, Hp) > budget:
        t_blk //= 2
    n_blk = _cdiv(T, t_blk)
    t_blk = _cdiv(T, n_blk)                  # minimize padded time steps
    T_pad = n_blk * t_blk
    footprint = _vmem_footprint_bytes(t_blk, b_pad, D, Hp)
    vmem_limit = int(min(max(2 * footprint, 32 * 2**20), 56 * 2**20))

    unroll = t_blk if t_blk <= 8 else 4      # full unroll small blocks, 4 otherwise
    act_dtype = jnp.bfloat16 if _use_bf16_activations() else jnp.float32

    # 1) embedding gather directly in (T, B, D) order; dropout = identity at eval.
    x = embed[token_ids.T].astype(jnp.bfloat16)                  # (T, B, D)
    x = jnp.pad(x, ((0, T_pad - T), (0, b_pad - B), (0, 0)))
    x2d = x.reshape(T_pad * b_pad, D)                            # row = t*b_pad + b

    len_p = jnp.pad(lengths, (0, b_pad - B))                     # padded rows: len 0
    t_idx = jnp.arange(T_pad, dtype=jnp.int32)[:, None]
    mask2d = (t_idx < len_p[None, :]).astype(jnp.float32).reshape(T_pad * b_pad, 1)
    # precomputed reciprocal length (clamped >= 1 so zero-length never divides by 0)
    inv_len = (1.0 / jnp.maximum(len_p, 1).astype(jnp.float32))[:, None]   # (b_pad,1)

    kernel = functools.partial(birnn_lstm_pool_kernel,
                               t_blk=t_blk, b_pad=b_pad, h_pad=Hp,
                               unroll=unroll, act_dtype=act_dtype)

    # constant-index operands: single-buffered (pure VMEM savings, no re-DMA)
    const = lambda shape: pl.BlockSpec(shape, lambda i: (0, 0),
                                       pipeline_mode=pl.Buffered(1))

    grid_spec = pltpu.PrefetchScalarGridSpec(
        num_scalar_prefetch=0,
        grid=(n_blk,),
        in_specs=[
            pl.BlockSpec((t_blk * b_pad, D), lambda i: (i, 0)),              # x, fwd order
            pl.BlockSpec((t_blk * b_pad, D), lambda i: (n_blk - 1 - i, 0)),  # x, reversed
            pl.BlockSpec((t_blk * b_pad, 1), lambda i: (i, 0)),              # mask, fwd
            pl.BlockSpec((t_blk * b_pad, 1), lambda i: (n_blk - 1 - i, 0)),  # mask, rev
            const((b_pad, 1)),                                               # 1/len
            const((D, 4 * Hp)), const((D, 4 * Hp)),                          # W_ih f/b (bf16)
            const((1, 4 * Hp)), const((1, 4 * Hp)),                          # biases (f32)
            const((Hp, 4 * Hp)), const((Hp, 4 * Hp)),                        # W_hh f/b (bf16)
        ],
        out_specs=pl.BlockSpec((b_pad, 2 * Hp), lambda i: (0, 0)),
        scratch_shapes=[pltpu.VMEM((b_pad, Hp), jnp.float32)] * 6            # h/c/acc x2 dir
                      + [pltpu.VMEM((t_blk * b_pad, 4 * Hp), jnp.float32)] * 2,  # hoisted proj
    )

    out = pl.pallas_call(
        kernel,
        out_shape=jax.ShapeDtypeStruct((b_pad, 2 * Hp), jnp.float32),
        grid_spec=grid_spec,
        compiler_params=pltpu.CompilerParams(
            dimension_semantics=("arbitrary",),   # state carried across time blocks
            vmem_limit_bytes=vmem_limit,          # explicit, footprint-derived
        ),
    )(x2d, x2d, mask2d, mask2d, inv_len,
      packed["wf_ih"], packed["wb_ih"], packed["bf"], packed["bb"],
      packed["wf_hh"], packed["wb_hh"])

    # un-pad: real H lanes of each direction, real batch rows
    return jnp.concatenate([out[:B, :H], out[:B, Hp:Hp + H]], axis=-1)


# --------------------------------------------------------------------------
# Pure-JAX f32 reference with identical masked-pack semantics
# --------------------------------------------------------------------------
def _reference(token_ids, lengths, params):
    embed = params["embed"]
    H = params["wf_hh"].shape[1]
    x = embed[token_ids].astype(jnp.float32)          # (B, T, D)
    B, T, D = x.shape
    mask = (jnp.arange(T)[None, :] < lengths[:, None]).astype(jnp.float32)

    def step(w_ih, w_hh, b_ih, b_hh, x_t, h, c):
        g = x_t @ w_ih.T + h @ w_hh.T + b_ih + b_hh
        i = jax.nn.sigmoid(g[:, :H])
        f = jax.nn.sigmoid(g[:, H:2 * H])
        gg = jnp.tanh(g[:, 2 * H:3 * H])
        o = jax.nn.sigmoid(g[:, 3 * H:])
        c = f * c + i * gg
        h = o * jnp.tanh(c)
        return h, c

    hf = cf = jnp.zeros((B, H))
    acc_f = jnp.zeros((B, H))
    for t in range(T):
        hf, cf = step(params["wf_ih"], params["wf_hh"],
                      params["bf_ih"], params["bf_hh"], x[:, t], hf, cf)
        acc_f = acc_f + mask[:, t:t + 1] * hf

    hb = cb = jnp.zeros((B, H))
    acc_b = jnp.zeros((B, H))
    for t in range(T - 1, -1, -1):
        hn, cn = step(params["wb_ih"], params["wb_hh"],
                      params["bb_ih"], params["bb_hh"], x[:, t], hb, cb)
        hb = mask[:, t:t + 1] * hn
        cb = mask[:, t:t + 1] * cn
        acc_b = acc_b + hb

    return jnp.concatenate([acc_f, acc_b], axis=-1) / lengths[:, None].astype(jnp.float32)


def init_params(key, n_vocab, dim_input, dim_hidden):
    keys = jax.random.split(key, 9)
    s = 1.0 / jnp.sqrt(dim_hidden)
    u = lambda k, shape: jax.random.uniform(k, shape, jnp.float32, -s, s)
    return {
        "embed": jax.random.normal(keys[0], (n_vocab, dim_input), jnp.float32) * 0.1,
        "wf_ih": u(keys[1], (4 * dim_hidden, dim_input)),
        "wf_hh": u(keys[2], (4 * dim_hidden, dim_hidden)),
        "bf_ih": u(keys[3], (4 * dim_hidden,)),
        "bf_hh": u(keys[4], (4 * dim_hidden,)),
        "wb_ih": u(keys[5], (4 * dim_hidden, dim_input)),
        "wb_hh": u(keys[6], (4 * dim_hidden, dim_hidden)),
        "bb_ih": u(keys[7], (4 * dim_hidden,)),
        "bb_hh": u(keys[8], (4 * dim_hidden,)),
    }


if __name__ == "__main__":
    B, T, V, D, H = 2, 8, 20, 32, 32
    key = jax.random.PRNGKey(0)
    k_tok, k_par = jax.random.split(key)

    token_ids = jax.random.randint(k_tok, (B, T), 0, V, dtype=jnp.int32)
    lengths = jnp.array([T, 5], dtype=jnp.int32)     # valid lengths per sequence
    params = init_params(k_par, V, D, H)

    packed = pack_rnn_params(params)                 # pack/transpose weights once
    fwd = jax.jit(functools.partial(birnn_dual_forward, dim_hidden=H))
    r_s = fwd(token_ids, lengths, params["embed"], packed)
    jax.block_until_ready(r_s)

    ref = _reference(token_ids, lengths, params)
    assert r_s.shape == (B, 2 * H)
    err = float(jnp.max(jnp.abs(r_s - ref)))
    # bf16 embeddings / W_ih / W_hh (+ bf16 gate EUP on v6e/v7x) -> loosened
    # but still bug-catching tolerance vs the f32 reference
    assert jnp.allclose(r_s, ref, atol=4e-2, rtol=4e-2), f"mismatch vs reference: {err}"
    print("KERNEL_OK")
</pallas_src>

<mosaic_0001>
module attributes {stable_mosaic.version = 11 : i64} {
  func.func @birnn_lstm_pool_kernel(%arg0: i32, %arg1: memref<64x32xbf16, #tpu.memory_space<vmem>>, %arg2: memref<64x32xbf16, #tpu.memory_space<vmem>>, %arg3: memref<64x1xf32, #tpu.memory_space<vmem>>, %arg4: memref<64x1xf32, #tpu.memory_space<vmem>>, %arg5: memref<8x1xf32, #tpu.memory_space<vmem>>, %arg6: memref<32x512xbf16, #tpu.memory_space<vmem>>, %arg7: memref<32x512xbf16, #tpu.memory_space<vmem>>, %arg8: memref<1x512xf32, #tpu.memory_space<vmem>>, %arg9: memref<1x512xf32, #tpu.memory_space<vmem>>, %arg10: memref<128x512xbf16, #tpu.memory_space<vmem>>, %arg11: memref<128x512xbf16, #tpu.memory_space<vmem>>, %arg12: memref<8x256xf32, #tpu.memory_space<vmem>>, %arg13: memref<8x128xf32, #tpu.memory_space<vmem>>, %arg14: memref<8x128xf32, #tpu.memory_space<vmem>>, %arg15: memref<8x128xf32, #tpu.memory_space<vmem>>, %arg16: memref<8x128xf32, #tpu.memory_space<vmem>>, %arg17: memref<8x128xf32, #tpu.memory_space<vmem>>, %arg18: memref<8x128xf32, #tpu.memory_space<vmem>>, %arg19: memref<64x512xf32, #tpu.memory_space<vmem>>, %arg20: memref<64x512xf32, #tpu.memory_space<vmem>>) attributes {dimension_semantics = [#tpu.dimension_semantics<arbitrary>], iteration_bounds = array<i64: 1>, scalar_prefetch = 0 : i64, scratch_operands = 8 : i64, tpu.core_type = #tpu.core_type<tc>, window_params = [{transform_indices = @transform_0, window_bounds = array<i64: 64, 32>}, {transform_indices = @transform_1, window_bounds = array<i64: 64, 32>}, {transform_indices = @transform_2, window_bounds = array<i64: 64, 1>}, {transform_indices = @transform_3, window_bounds = array<i64: 64, 1>}, {pipeline_mode = #tpu.pipeline_mode<synchronous>, transform_indices = @transform_4, window_bounds = array<i64: 8, 1>}, {pipeline_mode = #tpu.pipeline_mode<synchronous>, transform_indices = @transform_5, window_bounds = array<i64: 32, 512>}, {pipeline_mode = #tpu.pipeline_mode<synchronous>, transform_indices = @transform_6, window_bounds = array<i64: 32, 512>}, {pipeline_mode = #tpu.pipeline_mode<synchronous>, transform_indices = @transform_7, window_bounds = array<i64: 1, 512>}, {pipeline_mode = #tpu.pipeline_mode<synchronous>, transform_indices = @transform_8, window_bounds = array<i64: 1, 512>}, {pipeline_mode = #tpu.pipeline_mode<synchronous>, transform_indices = @transform_9, window_bounds = array<i64: 128, 512>}, {pipeline_mode = #tpu.pipeline_mode<synchronous>, transform_indices = @transform_10, window_bounds = array<i64: 128, 512>}, {pipeline_mode = #tpu.pipeline_mode<synchronous>, transform_indices = @transform_11, window_bounds = array<i64: 8, 256>}]} {
    %c0_i32 = arith.constant 0 : i32
    %0 = arith.cmpi eq, %arg0, %c0_i32 : i32
    %1 = arith.extui %0 : i1 to i32
    %c0_i32_0 = arith.constant 0 : i32
    %2 = arith.cmpi ne, %1, %c0_i32_0 : i32
    scf.if %2 {
      %cst_168 = arith.constant 0.000000e+00 : f32
      %650 = vector.broadcast %cst_168 : f32 to vector<8x128xf32>
      %c0_169 = arith.constant 0 : index
      %c0_170 = arith.constant 0 : index
      %651 = vector.load %arg13[%c0_169, %c0_170] : memref<8x128xf32, #tpu.memory_space<vmem>>, vector<8x128xf32>
      tpu.vector_store %arg13[%c0_169, %c0_170], %650 {strides = array<i32>} : memref<8x128xf32, #tpu.memory_space<vmem>>, vector<8x128xf32>,
      %c0_171 = arith.constant 0 : index
      %c0_172 = arith.constant 0 : index
      %652 = vector.load %arg14[%c0_171, %c0_172] : memref<8x128xf32, #tpu.memory_space<vmem>>, vector<8x128xf32>
      tpu.vector_store %arg14[%c0_171, %c0_172], %650 {strides = array<i32>} : memref<8x128xf32, #tpu.memory_space<vmem>>, vector<8x128xf32>,
      %c0_173 = arith.constant 0 : index
      %c0_174 = arith.constant 0 : index
      %653 = vector.load %arg15[%c0_173, %c0_174] : memref<8x128xf32, #tpu.memory_space<vmem>>, vector<8x128xf32>
      tpu.vector_store %arg15[%c0_173, %c0_174], %650 {strides = array<i32>} : memref<8x128xf32, #tpu.memory_space<vmem>>, vector<8x128xf32>,
      %c0_175 = arith.constant 0 : index
      %c0_176 = arith.constant 0 : index
      %654 = vector.load %arg16[%c0_175, %c0_176] : memref<8x128xf32, #tpu.memory_space<vmem>>, vector<8x128xf32>
      tpu.vector_store %arg16[%c0_175, %c0_176], %650 {strides = array<i32>} : memref<8x128xf32, #tpu.memory_space<vmem>>, vector<8x128xf32>,
      %c0_177 = arith.constant 0 : index
      %c0_178 = arith.constant 0 : index
      %655 = vector.load %arg17[%c0_177, %c0_178] : memref<8x128xf32, #tpu.memory_space<vmem>>, vector<8x128xf32>
      tpu.vector_store %arg17[%c0_177, %c0_178], %650 {strides = array<i32>} : memref<8x128xf32, #tpu.memory_space<vmem>>, vector<8x128xf32>,
      %c0_179 = arith.constant 0 : index
      %c0_180 = arith.constant 0 : index
      %656 = vector.load %arg18[%c0_179, %c0_180] : memref<8x128xf32, #tpu.memory_space<vmem>>, vector<8x128xf32>
      tpu.vector_store %arg18[%c0_179, %c0_180], %650 {strides = array<i32>} : memref<8x128xf32, #tpu.memory_space<vmem>>, vector<8x128xf32>,
    } else {
    }
    %c0 = arith.constant 0 : index
    %c0_1 = arith.constant 0 : index
    %3 = vector.load %arg1[%c0, %c0_1] : memref<64x32xbf16, #tpu.memory_space<vmem>>, vector<64x32xbf16>
    %c0_2 = arith.constant 0 : index
    %c0_3 = arith.constant 0 : index
    %4 = vector.load %arg6[%c0_2, %c0_3] : memref<32x512xbf16, #tpu.memory_space<vmem>>, vector<32x512xbf16>
    %cst = arith.constant dense<0.000000e+00> : vector<64x512xf32>
    %5 = tpu.matmul %3, %4, %cst {dimension_numbers = #tpu.dot_dimension_numbers<[1], [0], [0], [1], [0, 0, 1, 1], [], []>} : vector<64x32xbf16>, vector<32x512xbf16>, vector<64x512xf32> -> vector<64x512xf32>
    %c0_4 = arith.constant 0 : index
    %c0_5 = arith.constant 0 : index
    %6 = vector.load %arg8[%c0_4, %c0_5] : memref<1x512xf32, #tpu.memory_space<vmem>>, vector<1x512xf32>
    %7 = vector.broadcast %6 : vector<1x512xf32> to vector<64x512xf32>
    %8 = arith.addf %5, %7 : vector<64x512xf32>
    %c0_6 = arith.constant 0 : index
    %c0_7 = arith.constant 0 : index
    %9 = vector.load %arg19[%c0_6, %c0_7] : memref<64x512xf32, #tpu.memory_space<vmem>>, vector<64x512xf32>
    tpu.vector_store %arg19[%c0_6, %c0_7], %8 {strides = array<i32>} : memref<64x512xf32, #tpu.memory_space<vmem>>, vector<64x512xf32>,
    %c0_8 = arith.constant 0 : index
    %c0_9 = arith.constant 0 : index
    %10 = vector.load %arg2[%c0_8, %c0_9] : memref<64x32xbf16, #tpu.memory_space<vmem>>, vector<64x32xbf16>
    %c0_10 = arith.constant 0 : index
    %c0_11 = arith.constant 0 : index
    %11 = vector.load %arg7[%c0_10, %c0_11] : memref<32x512xbf16, #tpu.memory_space<vmem>>, vector<32x512xbf16>
    %cst_12 = arith.constant dense<0.000000e+00> : vector<64x512xf32>
    %12 = tpu.matmul %10, %11, %cst_12 {dimension_numbers = #tpu.dot_dimension_numbers<[1], [0], [0], [1], [0, 0, 1, 1], [], []>} : vector<64x32xbf16>, vector<32x512xbf16>, vector<64x512xf32> -> vector<64x512xf32>
    %c0_13 = arith.constant 0 : index
    %c0_14 = arith.constant 0 : index
    %13 = vector.load %arg9[%c0_13, %c0_14] : memref<1x512xf32, #tpu.memory_space<vmem>>, vector<1x512xf32>
    %14 = vector.broadcast %13 : vector<1x512xf32> to vector<64x512xf32>
    %15 = arith.addf %12, %14 : vector<64x512xf32>
    %c0_15 = arith.constant 0 : index
    %c0_16 = arith.constant 0 : index
    %16 = vector.load %arg20[%c0_15, %c0_16] : memref<64x512xf32, #tpu.memory_space<vmem>>, vector<64x512xf32>
    tpu.vector_store %arg20[%c0_15, %c0_16], %15 {strides = array<i32>} : memref<64x512xf32, #tpu.memory_space<vmem>>, vector<64x512xf32>,
    %c0_17 = arith.constant 0 : index
    %c0_18 = arith.constant 0 : index
    %17 = vector.load %arg10[%c0_17, %c0_18] : memref<128x512xbf16, #tpu.memory_space<vmem>>, vector<128x512xbf16>
    %c0_19 = arith.constant 0 : index
    %c0_20 = arith.constant 0 : index
    %18 = vector.load %arg11[%c0_19, %c0_20] : memref<128x512xbf16, #tpu.memory_space<vmem>>, vector<128x512xbf16>
    %c0_21 = arith.constant 0 : index
    %c0_22 = arith.constant 0 : index
    %19 = vector.load %arg13[%c0_21, %c0_22] : memref<8x128xf32, #tpu.memory_space<vmem>>, vector<8x128xf32>
    %c0_23 = arith.constant 0 : index
    %c0_24 = arith.constant 0 : index
    %20 = vector.load %arg14[%c0_23, %c0_24] : memref<8x128xf32, #tpu.memory_space<vmem>>, vector<8x128xf32>
    %c0_25 = arith.constant 0 : index
    %c0_26 = arith.constant 0 : index
    %21 = vector.load %arg15[%c0_25, %c0_26] : memref<8x128xf32, #tpu.memory_space<vmem>>, vector<8x128xf32>
    %c0_27 = arith.constant 0 : index
    %c0_28 = arith.constant 0 : index
    %22 = vector.load %arg16[%c0_27, %c0_28] : memref<8x128xf32, #tpu.memory_space<vmem>>, vector<8x128xf32>
    %c0_29 = arith.constant 0 : index
    %c0_30 = arith.constant 0 : index
    %23 = vector.load %arg17[%c0_29, %c0_30] : memref<8x128xf32, #tpu.memory_space<vmem>>, vector<8x128xf32>
    %c0_31 = arith.constant 0 : index
    %c0_32 = arith.constant 0 : index
    %24 = vector.load %arg18[%c0_31, %c0_32] : memref<8x128xf32, #tpu.memory_space<vmem>>, vector<8x128xf32>
    %c0_i32_33 = arith.constant 0 : i32
    %c8_i32 = arith.constant 8 : i32
    %25 = arith.muli %c0_i32_33, %c8_i32 : i32
    %26 = tpu.assume_multiple %25, 8 : i32
    %c7_i32 = arith.constant 7 : i32
    %27 = arith.subi %c7_i32, %c0_i32_33 : i32
    %c8_i32_34 = arith.constant 8 : i32
    %28 = arith.muli %27, %c8_i32_34 : i32
    %29 = tpu.assume_multiple %28, 8 : i32
    %30 = arith.index_cast %26 : i32 to index
    %c0_35 = arith.constant 0 : index
    %31 = vector.load %arg19[%30, %c0_35] : memref<64x512xf32, #tpu.memory_space<vmem>>, vector<8x512xf32>
    %32 = arith.truncf %19 : vector<8x128xf32> to vector<8x128xbf16>
    %cst_36 = arith.constant dense<0.000000e+00> : vector<8x512xf32>
    %33 = tpu.matmul %32, %17, %cst_36 {dimension_numbers = #tpu.dot_dimension_numbers<[1], [0], [0], [1], [0, 0, 1, 1], [], []>} : vector<8x128xbf16>, vector<128x512xbf16>, vector<8x512xf32> -> vector<8x512xf32>
    %34 = arith.addf %31, %33 : vector<8x512xf32>
    %35 = arith.index_cast %29 : i32 to index
    %c0_37 = arith.constant 0 : index
    %36 = vector.load %arg20[%35, %c0_37] : memref<64x512xf32, #tpu.memory_space<vmem>>, vector<8x512xf32>
    %37 = arith.truncf %22 : vector<8x128xf32> to vector<8x128xbf16>
    %cst_38 = arith.constant dense<0.000000e+00> : vector<8x512xf32>
    %38 = tpu.matmul %37, %18, %cst_38 {dimension_numbers = #tpu.dot_dimension_numbers<[1], [0], [0], [1], [0, 0, 1, 1], [], []>} : vector<8x128xbf16>, vector<128x512xbf16>, vector<8x512xf32> -> vector<8x512xf32>
    %39 = arith.addf %36, %38 : vector<8x512xf32>
    %40 = arith.index_cast %26 : i32 to index
    %c0_39 = arith.constant 0 : index
    %41 = vector.load %arg3[%40, %c0_39] : memref<64x1xf32, #tpu.memory_space<vmem>>, vector<8x1xf32>
    %42 = arith.index_cast %29 : i32 to index
    %c0_40 = arith.constant 0 : index
    %43 = vector.load %arg4[%42, %c0_40] : memref<64x1xf32, #tpu.memory_space<vmem>>, vector<8x1xf32>
    %44 = vector.extract_strided_slice %34 {offsets = [0, 0], sizes = [8, 128], strides = [1, 1]} : vector<8x512xf32> to vector<8x128xf32>
    %45 = arith.negf %44 : vector<8x128xf32>
    %46 = math.exp %45 : vector<8x128xf32>
    %cst_41 = arith.constant 1.000000e+00 : f32
    %47 = vector.broadcast %cst_41 : f32 to vector<8x128xf32>
    %48 = arith.addf %47, %46 : vector<8x128xf32>
    %49 = arith.divf %47, %48 : vector<8x128xf32>
    %50 = vector.extract_strided_slice %34 {offsets = [0, 128], sizes = [8, 128], strides = [1, 1]} : vector<8x512xf32> to vector<8x128xf32>
    %51 = arith.negf %50 : vector<8x128xf32>
    %52 = math.exp %51 : vector<8x128xf32>
    %cst_42 = arith.constant 1.000000e+00 : f32
    %53 = vector.broadcast %cst_42 : f32 to vector<8x128xf32>
    %54 = arith.addf %53, %52 : vector<8x128xf32>
    %55 = arith.divf %53, %54 : vector<8x128xf32>
    %56 = vector.extract_strided_slice %34 {offsets = [0, 256], sizes = [8, 128], strides = [1, 1]} : vector<8x512xf32> to vector<8x128xf32>
    %57 = math.tanh %56 : vector<8x128xf32>
    %58 = vector.extract_strided_slice %34 {offsets = [0, 384], sizes = [8, 128], strides = [1, 1]} : vector<8x512xf32> to vector<8x128xf32>
    %59 = arith.negf %58 : vector<8x128xf32>
    %60 = math.exp %59 : vector<8x128xf32>
    %cst_43 = arith.constant 1.000000e+00 : f32
    %61 = vector.broadcast %cst_43 : f32 to vector<8x128xf32>
    %62 = arith.addf %61, %60 : vector<8x128xf32>
    %63 = arith.divf %61, %62 : vector<8x128xf32>
    %64 = arith.mulf %55, %20 : vector<8x128xf32>
    %65 = arith.mulf %49, %57 : vector<8x128xf32>
    %66 = arith.addf %64, %65 : vector<8x128xf32>
    %67 = math.tanh %66 : vector<8x128xf32>
    %68 = arith.mulf %63, %67 : vector<8x128xf32>
    %69 = vector.broadcast %41 : vector<8x1xf32> to vector<8x128xf32>
    %70 = arith.mulf %69, %68 : vector<8x128xf32>
    %71 = arith.addf %21, %70 : vector<8x128xf32>
    %72 = vector.extract_strided_slice %39 {offsets = [0, 0], sizes = [8, 128], strides = [1, 1]} : vector<8x512xf32> to vector<8x128xf32>
    %73 = arith.negf %72 : vector<8x128xf32>
    %74 = math.exp %73 : vector<8x128xf32>
    %cst_44 = arith.constant 1.000000e+00 : f32
    %75 = vector.broadcast %cst_44 : f32 to vector<8x128xf32>
    %76 = arith.addf %75, %74 : vector<8x128xf32>
    %77 = arith.divf %75, %76 : vector<8x128xf32>
    %78 = vector.extract_strided_slice %39 {offsets = [0, 128], sizes = [8, 128], strides = [1, 1]} : vector<8x512xf32> to vector<8x128xf32>
    %79 = arith.negf %78 : vector<8x128xf32>
    %80 = math.exp %79 : vector<8x128xf32>
    %cst_45 = arith.constant 1.000000e+00 : f32
    %81 = vector.broadcast %cst_45 : f32 to vector<8x128xf32>
    %82 = arith.addf %81, %80 : vector<8x128xf32>
    %83 = arith.divf %81, %82 : vector<8x128xf32>
    %84 = vector.extract_strided_slice %39 {offsets = [0, 256], sizes = [8, 128], strides = [1, 1]} : vector<8x512xf32> to vector<8x128xf32>
    %85 = math.tanh %84 : vector<8x128xf32>
    %86 = vector.extract_strided_slice %39 {offsets = [0, 384], sizes = [8, 128], strides = [1, 1]} : vector<8x512xf32> to vector<8x128xf32>
    %87 = arith.negf %86 : vector<8x128xf32>
    %88 = math.exp %87 : vector<8x128xf32>
    %cst_46 = arith.constant 1.000000e+00 : f32
    %89 = vector.broadcast %cst_46 : f32 to vector<8x128xf32>
    %90 = arith.addf %89, %88 : vector<8x128xf32>
    %91 = arith.divf %89, %90 : vector<8x128xf32>
    %92 = arith.mulf %83, %23 : vector<8x128xf32>
    %93 = arith.mulf %77, %85 : vector<8x128xf32>
    %94 = arith.addf %92, %93 : vector<8x128xf32>
    %95 = math.tanh %94 : vector<8x128xf32>
    %96 = arith.mulf %91, %95 : vector<8x128xf32>
    %97 = vector.broadcast %43 : vector<8x1xf32> to vector<8x128xf32>
    %98 = arith.mulf %97, %96 : vector<8x128xf32>
    %99 = vector.broadcast %43 : vector<8x1xf32> to vector<8x128xf32>
    %100 = arith.mulf %99, %94 : vector<8x128xf32>
    %101 = arith.addf %24, %98 : vector<8x128xf32>
    %c1_i32 = arith.constant 1 : i32
    %c8_i32_47 = arith.constant 8 : i32
    %102 = arith.muli %c1_i32, %c8_i32_47 : i32
    %103 = tpu.assume_multiple %102, 8 : i32
    %c7_i32_48 = arith.constant 7 : i32
    %104 = arith.subi %c7_i32_48, %c1_i32 : i32
    %c8_i32_49 = arith.constant 8 : i32
    %105 = arith.muli %104, %c8_i32_49 : i32
    %106 = tpu.assume_multiple %105, 8 : i32
    %107 = arith.index_cast %103 : i32 to index
    %c0_50 = arith.constant 0 : index
    %108 = vector.load %arg19[%107, %c0_50] : memref<64x512xf32, #tpu.memory_space<vmem>>, vector<8x512xf32>
    %109 = arith.truncf %68 : vector<8x128xf32> to vector<8x128xbf16>
    %cst_51 = arith.constant dense<0.000000e+00> : vector<8x512xf32>
    %110 = tpu.matmul %109, %17, %cst_51 {dimension_numbers = #tpu.dot_dimension_numbers<[1], [0], [0], [1], [0, 0, 1, 1], [], []>} : vector<8x128xbf16>, vector<128x512xbf16>, vector<8x512xf32> -> vector<8x512xf32>
    %111 = arith.addf %108, %110 : vector<8x512xf32>
    %112 = arith.index_cast %106 : i32 to index
    %c0_52 = arith.constant 0 : index
    %113 = vector.load %arg20[%112, %c0_52] : memref<64x512xf32, #tpu.memory_space<vmem>>, vector<8x512xf32>
    %114 = arith.truncf %98 : vector<8x128xf32> to vector<8x128xbf16>
    %cst_53 = arith.constant dense<0.000000e+00> : vector<8x512xf32>
    %115 = tpu.matmul %114, %18, %cst_53 {dimension_numbers = #tpu.dot_dimension_numbers<[1], [0], [0], [1], [0, 0, 1, 1], [], []>} : vector<8x128xbf16>, vector<128x512xbf16>, vector<8x512xf32> -> vector<8x512xf32>
    %116 = arith.addf %113, %115 : vector<8x512xf32>
    %117 = arith.index_cast %103 : i32 to index
    %c0_54 = arith.constant 0 : index
    %118 = vector.load %arg3[%117, %c0_54] : memref<64x1xf32, #tpu.memory_space<vmem>>, vector<8x1xf32>
    %119 = arith.index_cast %106 : i32 to index
    %c0_55 = arith.constant 0 : index
    %120 = vector.load %arg4[%119, %c0_55] : memref<64x1xf32, #tpu.memory_space<vmem>>, vector<8x1xf32>
    %121 = vector.extract_strided_slice %111 {offsets = [0, 0], sizes = [8, 128], strides = [1, 1]} : vector<8x512xf32> to vector<8x128xf32>
    %122 = arith.negf %121 : vector<8x128xf32>
    %123 = math.exp %122 : vector<8x128xf32>
    %cst_56 = arith.constant 1.000000e+00 : f32
    %124 = vector.broadcast %cst_56 : f32 to vector<8x128xf32>
    %125 = arith.addf %124, %123 : vector<8x128xf32>
    %126 = arith.divf %124, %125 : vector<8x128xf32>
    %127 = vector.extract_strided_slice %111 {offsets = [0, 128], sizes = [8, 128], strides = [1, 1]} : vector<8x512xf32> to vector<8x128xf32>
    %128 = arith.negf %127 : vector<8x128xf32>
    %129 = math.exp %128 : vector<8x128xf32>
    %cst_57 = arith.constant 1.000000e+00 : f32
    %130 = vector.broadcast %cst_57 : f32 to vector<8x128xf32>
    %131 = arith.addf %130, %129 : vector<8x128xf32>
    %132 = arith.divf %130, %131 : vector<8x128xf32>
    %133 = vector.extract_strided_slice %111 {offsets = [0, 256], sizes = [8, 128], strides = [1, 1]} : vector<8x512xf32> to vector<8x128xf32>
    %134 = math.tanh %133 : vector<8x128xf32>
    %135 = vector.extract_strided_slice %111 {offsets = [0, 384], sizes = [8, 128], strides = [1, 1]} : vector<8x512xf32> to vector<8x128xf32>
    %136 = arith.negf %135 : vector<8x128xf32>
    %137 = math.exp %136 : vector<8x128xf32>
    %cst_58 = arith.constant 1.000000e+00 : f32
    %138 = vector.broadcast %cst_58 : f32 to vector<8x128xf32>
    %139 = arith.addf %138, %137 : vector<8x128xf32>
    %140 = arith.divf %138, %139 : vector<8x128xf32>
    %141 = arith.mulf %132, %66 : vector<8x128xf32>
    %142 = arith.mulf %126, %134 : vector<8x128xf32>
    %143 = arith.addf %141, %142 : vector<8x128xf32>
    %144 = math.tanh %143 : vector<8x128xf32>
    %145 = arith.mulf %140, %144 : vector<8x128xf32>
    %146 = vector.broadcast %118 : vector<8x1xf32> to vector<8x128xf32>
    %147 = arith.mulf %146, %145 : vector<8x128xf32>
    %148 = arith.addf %71, %147 : vector<8x128xf32>
    %149 = vector.extract_strided_slice %116 {offsets = [0, 0], sizes = [8, 128], strides = [1, 1]} : vector<8x512xf32> to vector<8x128xf32>
    %150 = arith.negf %149 : vector<8x128xf32>
    %151 = math.exp %150 : vector<8x128xf32>
    %cst_59 = arith.constant 1.000000e+00 : f32
    %152 = vector.broadcast %cst_59 : f32 to vector<8x128xf32>
    %153 = arith.addf %152, %151 : vector<8x128xf32>
    %154 = arith.divf %152, %153 : vector<8x128xf32>
    %155 = vector.extract_strided_slice %116 {offsets = [0, 128], sizes = [8, 128], strides = [1, 1]} : vector<8x512xf32> to vector<8x128xf32>
    %156 = arith.negf %155 : vector<8x128xf32>
    %157 = math.exp %156 : vector<8x128xf32>
    %cst_60 = arith.constant 1.000000e+00 : f32
    %158 = vector.broadcast %cst_60 : f32 to vector<8x128xf32>
    %159 = arith.addf %158, %157 : vector<8x128xf32>
    %160 = arith.divf %158, %159 : vector<8x128xf32>
    %161 = vector.extract_strided_slice %116 {offsets = [0, 256], sizes = [8, 128], strides = [1, 1]} : vector<8x512xf32> to vector<8x128xf32>
    %162 = math.tanh %161 : vector<8x128xf32>
    %163 = vector.extract_strided_slice %116 {offsets = [0, 384], sizes = [8, 128], strides = [1, 1]} : vector<8x512xf32> to vector<8x128xf32>
    %164 = arith.negf %163 : vector<8x128xf32>
    %165 = math.exp %164 : vector<8x128xf32>
    %cst_61 = arith.constant 1.000000e+00 : f32
    %166 = vector.broadcast %cst_61 : f32 to vector<8x128xf32>
    %167 = arith.addf %166, %165 : vector<8x128xf32>
    %168 = arith.divf %166, %167 : vector<8x128xf32>
    %169 = arith.mulf %160, %100 : vector<8x128xf32>
    %170 = arith.mulf %154, %162 : vector<8x128xf32>
    %171 = arith.addf %169, %170 : vector<8x128xf32>
    %172 = math.tanh %171 : vector<8x128xf32>
    %173 = arith.mulf %168, %172 : vector<8x128xf32>
    %174 = vector.broadcast %120 : vector<8x1xf32> to vector<8x128xf32>
    %175 = arith.mulf %174, %173 : vector<8x128xf32>
    %176 = vector.broadcast %120 : vector<8x1xf32> to vector<8x128xf32>
    %177 = arith.mulf %176, %171 : vector<8x128xf32>
    %178 = arith.addf %101, %175 : vector<8x128xf32>
    %c2_i32 = arith.constant 2 : i32
    %c8_i32_62 = arith.constant 8 : i32
    %179 = arith.muli %c2_i32, %c8_i32_62 : i32
    %180 = tpu.assume_multiple %179, 8 : i32
    %c7_i32_63 = arith.constant 7 : i32
    %181 = arith.subi %c7_i32_63, %c2_i32 : i32
    %c8_i32_64 = arith.constant 8 : i32
    %182 = arith.muli %181, %c8_i32_64 : i32
    %183 = tpu.assume_multiple %182, 8 : i32
    %184 = arith.index_cast %180 : i32 to index
    %c0_65 = arith.constant 0 : index
    %185 = vector.load %arg19[%184, %c0_65] : memref<64x512xf32, #tpu.memory_space<vmem>>, vector<8x512xf32>
    %186 = arith.truncf %145 : vector<8x128xf32> to vector<8x128xbf16>
    %cst_66 = arith.constant dense<0.000000e+00> : vector<8x512xf32>
    %187 = tpu.matmul %186, %17, %cst_66 {dimension_numbers = #tpu.dot_dimension_numbers<[1], [0], [0], [1], [0, 0, 1, 1], [], []>} : vector<8x128xbf16>, vector<128x512xbf16>, vector<8x512xf32> -> vector<8x512xf32>
    %188 = arith.addf %185, %187 : vector<8x512xf32>
    %189 = arith.index_cast %183 : i32 to index
    %c0_67 = arith.constant 0 : index
    %190 = vector.load %arg20[%189, %c0_67] : memref<64x512xf32, #tpu.memory_space<vmem>>, vector<8x512xf32>
    %191 = arith.truncf %175 : vector<8x128xf32> to vector<8x128xbf16>
    %cst_68 = arith.constant dense<0.000000e+00> : vector<8x512xf32>
    %192 = tpu.matmul %191, %18, %cst_68 {dimension_numbers = #tpu.dot_dimension_numbers<[1], [0], [0], [1], [0, 0, 1, 1], [], []>} : vector<8x128xbf16>, vector<128x512xbf16>, vector<8x512xf32> -> vector<8x512xf32>
    %193 = arith.addf %190, %192 : vector<8x512xf32>
    %194 = arith.index_cast %180 : i32 to index
    %c0_69 = arith.constant 0 : index
    %195 = vector.load %arg3[%194, %c0_69] : memref<64x1xf32, #tpu.memory_space<vmem>>, vector<8x1xf32>
    %196 = arith.index_cast %183 : i32 to index
    %c0_70 = arith.constant 0 : index
    %197 = vector.load %arg4[%196, %c0_70] : memref<64x1xf32, #tpu.memory_space<vmem>>, vector<8x1xf32>
    %198 = vector.extract_strided_slice %188 {offsets = [0, 0], sizes = [8, 128], strides = [1, 1]} : vector<8x512xf32> to vector<8x128xf32>
    %199 = arith.negf %198 : vector<8x128xf32>
    %200 = math.exp %199 : vector<8x128xf32>
    %cst_71 = arith.constant 1.000000e+00 : f32
    %201 = vector.broadcast %cst_71 : f32 to vector<8x128xf32>
    %202 = arith.addf %201, %200 : vector<8x128xf32>
    %203 = arith.divf %201, %202 : vector<8x128xf32>
    %204 = vector.extract_strided_slice %188 {offsets = [0, 128], sizes = [8, 128], strides = [1, 1]} : vector<8x512xf32> to vector<8x128xf32>
    %205 = arith.negf %204 : vector<8x128xf32>
    %206 = math.exp %205 : vector<8x128xf32>
    %cst_72 = arith.constant 1.000000e+00 : f32
    %207 = vector.broadcast %cst_72 : f32 to vector<8x128xf32>
    %208 = arith.addf %207, %206 : vector<8x128xf32>
    %209 = arith.divf %207, %208 : vector<8x128xf32>
    %210 = vector.extract_strided_slice %188 {offsets = [0, 256], sizes = [8, 128], strides = [1, 1]} : vector<8x512xf32> to vector<8x128xf32>
    %211 = math.tanh %210 : vector<8x128xf32>
    %212 = vector.extract_strided_slice %188 {offsets = [0, 384], sizes = [8, 128], strides = [1, 1]} : vector<8x512xf32> to vector<8x128xf32>
    %213 = arith.negf %212 : vector<8x128xf32>
    %214 = math.exp %213 : vector<8x128xf32>
    %cst_73 = arith.constant 1.000000e+00 : f32
    %215 = vector.broadcast %cst_73 : f32 to vector<8x128xf32>
    %216 = arith.addf %215, %214 : vector<8x128xf32>
    %217 = arith.divf %215, %216 : vector<8x128xf32>
    %218 = arith.mulf %209, %143 : vector<8x128xf32>
    %219 = arith.mulf %203, %211 : vector<8x128xf32>
    %220 = arith.addf %218, %219 : vector<8x128xf32>
    %221 = math.tanh %220 : vector<8x128xf32>
    %222 = arith.mulf %217, %221 : vector<8x128xf32>
    %223 = vector.broadcast %195 : vector<8x1xf32> to vector<8x128xf32>
    %224 = arith.mulf %223, %222 : vector<8x128xf32>
    %225 = arith.addf %148, %224 : vector<8x128xf32>
    %226 = vector.extract_strided_slice %193 {offsets = [0, 0], sizes = [8, 128], strides = [1, 1]} : vector<8x512xf32> to vector<8x128xf32>
    %227 = arith.negf %226 : vector<8x128xf32>
    %228 = math.exp %227 : vector<8x128xf32>
    %cst_74 = arith.constant 1.000000e+00 : f32
    %229 = vector.broadcast %cst_74 : f32 to vector<8x128xf32>
    %230 = arith.addf %229, %228 : vector<8x128xf32>
    %231 = arith.divf %229, %230 : vector<8x128xf32>
    %232 = vector.extract_strided_slice %193 {offsets = [0, 128], sizes = [8, 128], strides = [1, 1]} : vector<8x512xf32> to vector<8x128xf32>
    %233 = arith.negf %232 : vector<8x128xf32>
    %234 = math.exp %233 : vector<8x128xf32>
    %cst_75 = arith.constant 1.000000e+00 : f32
    %235 = vector.broadcast %cst_75 : f32 to vector<8x128xf32>
    %236 = arith.addf %235, %234 : vector<8x128xf32>
    %237 = arith.divf %235, %236 : vector<8x128xf32>
    %238 = vector.extract_strided_slice %193 {offsets = [0, 256], sizes = [8, 128], strides = [1, 1]} : vector<8x512xf32> to vector<8x128xf32>
    %239 = math.tanh %238 : vector<8x128xf32>
    %240 = vector.extract_strided_slice %193 {offsets = [0, 384], sizes = [8, 128], strides = [1, 1]} : vector<8x512xf32> to vector<8x128xf32>
    %241 = arith.negf %240 : vector<8x128xf32>
    %242 = math.exp %241 : vector<8x128xf32>
    %cst_76 = arith.constant 1.000000e+00 : f32
    %243 = vector.broadcast %cst_76 : f32 to vector<8x128xf32>
    %244 = arith.addf %243, %242 : vector<8x128xf32>
    %245 = arith.divf %243, %244 : vector<8x128xf32>
    %246 = arith.mulf %237, %177 : vector<8x128xf32>
    %247 = arith.mulf %231, %239 : vector<8x128xf32>
    %248 = arith.addf %246, %247 : vector<8x128xf32>
    %249 = math.tanh %248 : vector<8x128xf32>
    %250 = arith.mulf %245, %249 : vector<8x128xf32>
    %251 = vector.broadcast %197 : vector<8x1xf32> to vector<8x128xf32>
    %252 = arith.mulf %251, %250 : vector<8x128xf32>
    %253 = vector.broadcast %197 : vector<8x1xf32> to vector<8x128xf32>
    %254 = arith.mulf %253, %248 : vector<8x128xf32>
    %255 = arith.addf %178, %252 : vector<8x128xf32>
    %c3_i32 = arith.constant 3 : i32
    %c8_i32_77 = arith.constant 8 : i32
    %256 = arith.muli %c3_i32, %c8_i32_77 : i32
    %257 = tpu.assume_multiple %256, 8 : i32
    %c7_i32_78 = arith.constant 7 : i32
    %258 = arith.subi %c7_i32_78, %c3_i32 : i32
    %c8_i32_79 = arith.constant 8 : i32
    %259 = arith.muli %258, %c8_i32_79 : i32
    %260 = tpu.assume_multiple %259, 8 : i32
    %261 = arith.index_cast %257 : i32 to index
    %c0_80 = arith.constant 0 : index
    %262 = vector.load %arg19[%261, %c0_80] : memref<64x512xf32, #tpu.memory_space<vmem>>, vector<8x512xf32>
    %263 = arith.truncf %222 : vector<8x128xf32> to vector<8x128xbf16>
    %cst_81 = arith.constant dense<0.000000e+00> : vector<8x512xf32>
    %264 = tpu.matmul %263, %17, %cst_81 {dimension_numbers = #tpu.dot_dimension_numbers<[1], [0], [0], [1], [0, 0, 1, 1], [], []>} : vector<8x128xbf16>, vector<128x512xbf16>, vector<8x512xf32> -> vector<8x512xf32>
    %265 = arith.addf %262, %264 : vector<8x512xf32>
    %266 = arith.index_cast %260 : i32 to index
    %c0_82 = arith.constant 0 : index
    %267 = vector.load %arg20[%266, %c0_82] : memref<64x512xf32, #tpu.memory_space<vmem>>, vector<8x512xf32>
    %268 = arith.truncf %252 : vector<8x128xf32> to vector<8x128xbf16>
    %cst_83 = arith.constant dense<0.000000e+00> : vector<8x512xf32>
    %269 = tpu.matmul %268, %18, %cst_83 {dimension_numbers = #tpu.dot_dimension_numbers<[1], [0], [0], [1], [0, 0, 1, 1], [], []>} : vector<8x128xbf16>, vector<128x512xbf16>, vector<8x512xf32> -> vector<8x512xf32>
    %270 = arith.addf %267, %269 : vector<8x512xf32>
    %271 = arith.index_cast %257 : i32 to index
    %c0_84 = arith.constant 0 : index
    %272 = vector.load %arg3[%271, %c0_84] : memref<64x1xf32, #tpu.memory_space<vmem>>, vector<8x1xf32>
    %273 = arith.index_cast %260 : i32 to index
    %c0_85 = arith.constant 0 : index
    %274 = vector.load %arg4[%273, %c0_85] : memref<64x1xf32, #tpu.memory_space<vmem>>, vector<8x1xf32>
    %275 = vector.extract_strided_slice %265 {offsets = [0, 0], sizes = [8, 128], strides = [1, 1]} : vector<8x512xf32> to vector<8x128xf32>
    %276 = arith.negf %275 : vector<8x128xf32>
    %277 = math.exp %276 : vector<8x128xf32>
    %cst_86 = arith.constant 1.000000e+00 : f32
    %278 = vector.broadcast %cst_86 : f32 to vector<8x128xf32>
    %279 = arith.addf %278, %277 : vector<8x128xf32>
    %280 = arith.divf %278, %279 : vector<8x128xf32>
    %281 = vector.extract_strided_slice %265 {offsets = [0, 128], sizes = [8, 128], strides = [1, 1]} : vector<8x512xf32> to vector<8x128xf32>
    %282 = arith.negf %281 : vector<8x128xf32>
    %283 = math.exp %282 : vector<8x128xf32>
    %cst_87 = arith.constant 1.000000e+00 : f32
    %284 = vector.broadcast %cst_87 : f32 to vector<8x128xf32>
    %285 = arith.addf %284, %283 : vector<8x128xf32>
    %286 = arith.divf %284, %285 : vector<8x128xf32>
    %287 = vector.extract_strided_slice %265 {offsets = [0, 256], sizes = [8, 128], strides = [1, 1]} : vector<8x512xf32> to vector<8x128xf32>
    %288 = math.tanh %287 : vector<8x128xf32>
    %289 = vector.extract_strided_slice %265 {offsets = [0, 384], sizes = [8, 128], strides = [1, 1]} : vector<8x512xf32> to vector<8x128xf32>
    %290 = arith.negf %289 : vector<8x128xf32>
    %291 = math.exp %290 : vector<8x128xf32>
    %cst_88 = arith.constant 1.000000e+00 : f32
    %292 = vector.broadcast %cst_88 : f32 to vector<8x128xf32>
    %293 = arith.addf %292, %291 : vector<8x128xf32>
    %294 = arith.divf %292, %293 : vector<8x128xf32>
    %295 = arith.mulf %286, %220 : vector<8x128xf32>
    %296 = arith.mulf %280, %288 : vector<8x128xf32>
    %297 = arith.addf %295, %296 : vector<8x128xf32>
    %298 = math.tanh %297 : vector<8x128xf32>
    %299 = arith.mulf %294, %298 : vector<8x128xf32>
    %300 = vector.broadcast %272 : vector<8x1xf32> to vector<8x128xf32>
    %301 = arith.mulf %300, %299 : vector<8x128xf32>
    %302 = arith.addf %225, %301 : vector<8x128xf32>
    %303 = vector.extract_strided_slice %270 {offsets = [0, 0], sizes = [8, 128], strides = [1, 1]} : vector<8x512xf32> to vector<8x128xf32>
    %304 = arith.negf %303 : vector<8x128xf32>
    %305 = math.exp %304 : vector<8x128xf32>
    %cst_89 = arith.constant 1.000000e+00 : f32
    %306 = vector.broadcast %cst_89 : f32 to vector<8x128xf32>
    %307 = arith.addf %306, %305 : vector<8x128xf32>
    %308 = arith.divf %306, %307 : vector<8x128xf32>
    %309 = vector.extract_strided_slice %270 {offsets = [0, 128], sizes = [8, 128], strides = [1, 1]} : vector<8x512xf32> to vector<8x128xf32>
    %310 = arith.negf %309 : vector<8x128xf32>
    %311 = math.exp %310 : vector<8x128xf32>
    %cst_90 = arith.constant 1.000000e+00 : f32
    %312 = vector.broadcast %cst_90 : f32 to vector<8x128xf32>
    %313 = arith.addf %312, %311 : vector<8x128xf32>
    %314 = arith.divf %312, %313 : vector<8x128xf32>
    %315 = vector.extract_strided_slice %270 {offsets = [0, 256], sizes = [8, 128], strides = [1, 1]} : vector<8x512xf32> to vector<8x128xf32>
    %316 = math.tanh %315 : vector<8x128xf32>
    %317 = vector.extract_strided_slice %270 {offsets = [0, 384], sizes = [8, 128], strides = [1, 1]} : vector<8x512xf32> to vector<8x128xf32>
    %318 = arith.negf %317 : vector<8x128xf32>
    %319 = math.exp %318 : vector<8x128xf32>
    %cst_91 = arith.constant 1.000000e+00 : f32
    %320 = vector.broadcast %cst_91 : f32 to vector<8x128xf32>
    %321 = arith.addf %320, %319 : vector<8x128xf32>
    %322 = arith.divf %320, %321 : vector<8x128xf32>
    %323 = arith.mulf %314, %254 : vector<8x128xf32>
    %324 = arith.mulf %308, %316 : vector<8x128xf32>
    %325 = arith.addf %323, %324 : vector<8x128xf32>
    %326 = math.tanh %325 : vector<8x128xf32>
    %327 = arith.mulf %322, %326 : vector<8x128xf32>
    %328 = vector.broadcast %274 : vector<8x1xf32> to vector<8x128xf32>
    %329 = arith.mulf %328, %327 : vector<8x128xf32>
    %330 = vector.broadcast %274 : vector<8x1xf32> to vector<8x128xf32>
    %331 = arith.mulf %330, %325 : vector<8x128xf32>
    %332 = arith.addf %255, %329 : vector<8x128xf32>
    %c4_i32 = arith.constant 4 : i32
    %c8_i32_92 = arith.constant 8 : i32
    %333 = arith.muli %c4_i32, %c8_i32_92 : i32
    %334 = tpu.assume_multiple %333, 8 : i32
    %c7_i32_93 = arith.constant 7 : i32
    %335 = arith.subi %c7_i32_93, %c4_i32 : i32
    %c8_i32_94 = arith.constant 8 : i32
    %336 = arith.muli %335, %c8_i32_94 : i32
    %337 = tpu.assume_multiple %336, 8 : i32
    %338 = arith.index_cast %334 : i32 to index
    %c0_95 = arith.constant 0 : index
    %339 = vector.load %arg19[%338, %c0_95] : memref<64x512xf32, #tpu.memory_space<vmem>>, vector<8x512xf32>
    %340 = arith.truncf %299 : vector<8x128xf32> to vector<8x128xbf16>
    %cst_96 = arith.constant dense<0.000000e+00> : vector<8x512xf32>
    %341 = tpu.matmul %340, %17, %cst_96 {dimension_numbers = #tpu.dot_dimension_numbers<[1], [0], [0], [1], [0, 0, 1, 1], [], []>} : vector<8x128xbf16>, vector<128x512xbf16>, vector<8x512xf32> -> vector<8x512xf32>
    %342 = arith.addf %339, %341 : vector<8x512xf32>
    %343 = arith.index_cast %337 : i32 to index
    %c0_97 = arith.constant 0 : index
    %344 = vector.load %arg20[%343, %c0_97] : memref<64x512xf32, #tpu.memory_space<vmem>>, vector<8x512xf32>
    %345 = arith.truncf %329 : vector<8x128xf32> to vector<8x128xbf16>
    %cst_98 = arith.constant dense<0.000000e+00> : vector<8x512xf32>
    %346 = tpu.matmul %345, %18, %cst_98 {dimension_numbers = #tpu.dot_dimension_numbers<[1], [0], [0], [1], [0, 0, 1, 1], [], []>} : vector<8x128xbf16>, vector<128x512xbf16>, vector<8x512xf32> -> vector<8x512xf32>
    %347 = arith.addf %344, %346 : vector<8x512xf32>
    %348 = arith.index_cast %334 : i32 to index
    %c0_99 = arith.constant 0 : index
    %349 = vector.load %arg3[%348, %c0_99] : memref<64x1xf32, #tpu.memory_space<vmem>>, vector<8x1xf32>
    %350 = arith.index_cast %337 : i32 to index
    %c0_100 = arith.constant 0 : index
    %351 = vector.load %arg4[%350, %c0_100] : memref<64x1xf32, #tpu.memory_space<vmem>>, vector<8x1xf32>
    %352 = vector.extract_strided_slice %342 {offsets = [0, 0], sizes = [8, 128], strides = [1, 1]} : vector<8x512xf32> to vector<8x128xf32>
    %353 = arith.negf %352 : vector<8x128xf32>
    %354 = math.exp %353 : vector<8x128xf32>
    %cst_101 = arith.constant 1.000000e+00 : f32
    %355 = vector.broadcast %cst_101 : f32 to vector<8x128xf32>
    %356 = arith.addf %355, %354 : vector<8x128xf32>
    %357 = arith.divf %355, %356 : vector<8x128xf32>
    %358 = vector.extract_strided_slice %342 {offsets = [0, 128], sizes = [8, 128], strides = [1, 1]} : vector<8x512xf32> to vector<8x128xf32>
    %359 = arith.negf %358 : vector<8x128xf32>
    %360 = math.exp %359 : vector<8x128xf32>
    %cst_102 = arith.constant 1.000000e+00 : f32
    %361 = vector.broadcast %cst_102 : f32 to vector<8x128xf32>
    %362 = arith.addf %361, %360 : vector<8x128xf32>
    %363 = arith.divf %361, %362 : vector<8x128xf32>
    %364 = vector.extract_strided_slice %342 {offsets = [0, 256], sizes = [8, 128], strides = [1, 1]} : vector<8x512xf32> to vector<8x128xf32>
    %365 = math.tanh %364 : vector<8x128xf32>
    %366 = vector.extract_strided_slice %342 {offsets = [0, 384], sizes = [8, 128], strides = [1, 1]} : vector<8x512xf32> to vector<8x128xf32>
    %367 = arith.negf %366 : vector<8x128xf32>
    %368 = math.exp %367 : vector<8x128xf32>
    %cst_103 = arith.constant 1.000000e+00 : f32
    %369 = vector.broadcast %cst_103 : f32 to vector<8x128xf32>
    %370 = arith.addf %369, %368 : vector<8x128xf32>
    %371 = arith.divf %369, %370 : vector<8x128xf32>
    %372 = arith.mulf %363, %297 : vector<8x128xf32>
    %373 = arith.mulf %357, %365 : vector<8x128xf32>
    %374 = arith.addf %372, %373 : vector<8x128xf32>
    %375 = math.tanh %374 : vector<8x128xf32>
    %376 = arith.mulf %371, %375 : vector<8x128xf32>
    %377 = vector.broadcast %349 : vector<8x1xf32> to vector<8x128xf32>
    %378 = arith.mulf %377, %376 : vector<8x128xf32>
    %379 = arith.addf %302, %378 : vector<8x128xf32>
    %380 = vector.extract_strided_slice %347 {offsets = [0, 0], sizes = [8, 128], strides = [1, 1]} : vector<8x512xf32> to vector<8x128xf32>
    %381 = arith.negf %380 : vector<8x128xf32>
    %382 = math.exp %381 : vector<8x128xf32>
    %cst_104 = arith.constant 1.000000e+00 : f32
    %383 = vector.broadcast %cst_104 : f32 to vector<8x128xf32>
    %384 = arith.addf %383, %382 : vector<8x128xf32>
    %385 = arith.divf %383, %384 : vector<8x128xf32>
    %386 = vector.extract_strided_slice %347 {offsets = [0, 128], sizes = [8, 128], strides = [1, 1]} : vector<8x512xf32> to vector<8x128xf32>
    %387 = arith.negf %386 : vector<8x128xf32>
    %388 = math.exp %387 : vector<8x128xf32>
    %cst_105 = arith.constant 1.000000e+00 : f32
    %389 = vector.broadcast %cst_105 : f32 to vector<8x128xf32>
    %390 = arith.addf %389, %388 : vector<8x128xf32>
    %391 = arith.divf %389, %390 : vector<8x128xf32>
    %392 = vector.extract_strided_slice %347 {offsets = [0, 256], sizes = [8, 128], strides = [1, 1]} : vector<8x512xf32> to vector<8x128xf32>
    %393 = math.tanh %392 : vector<8x128xf32>
    %394 = vector.extract_strided_slice %347 {offsets = [0, 384], sizes = [8, 128], strides = [1, 1]} : vector<8x512xf32> to vector<8x128xf32>
    %395 = arith.negf %394 : vector<8x128xf32>
    %396 = math.exp %395 : vector<8x128xf32>
    %cst_106 = arith.constant 1.000000e+00 : f32
    %397 = vector.broadcast %cst_106 : f32 to vector<8x128xf32>
    %398 = arith.addf %397, %396 : vector<8x128xf32>
    %399 = arith.divf %397, %398 : vector<8x128xf32>
    %400 = arith.mulf %391, %331 : vector<8x128xf32>
    %401 = arith.mulf %385, %393 : vector<8x128xf32>
    %402 = arith.addf %400, %401 : vector<8x128xf32>
    %403 = math.tanh %402 : vector<8x128xf32>
    %404 = arith.mulf %399, %403 : vector<8x128xf32>
    %405 = vector.broadcast %351 : vector<8x1xf32> to vector<8x128xf32>
    %406 = arith.mulf %405, %404 : vector<8x128xf32>
    %407 = vector.broadcast %351 : vector<8x1xf32> to vector<8x128xf32>
    %408 = arith.mulf %407, %402 : vector<8x128xf32>
    %409 = arith.addf %332, %406 : vector<8x128xf32>
    %c5_i32 = arith.constant 5 : i32
    %c8_i32_107 = arith.constant 8 : i32
    %410 = arith.muli %c5_i32, %c8_i32_107 : i32
    %411 = tpu.assume_multiple %410, 8 : i32
    %c7_i32_108 = arith.constant 7 : i32
    %412 = arith.subi %c7_i32_108, %c5_i32 : i32
    %c8_i32_109 = arith.constant 8 : i32
    %413 = arith.muli %412, %c8_i32_109 : i32
    %414 = tpu.assume_multiple %413, 8 : i32
    %415 = arith.index_cast %411 : i32 to index
    %c0_110 = arith.constant 0 : index
    %416 = vector.load %arg19[%415, %c0_110] : memref<64x512xf32, #tpu.memory_space<vmem>>, vector<8x512xf32>
    %417 = arith.truncf %376 : vector<8x128xf32> to vector<8x128xbf16>
    %cst_111 = arith.constant dense<0.000000e+00> : vector<8x512xf32>
    %418 = tpu.matmul %417, %17, %cst_111 {dimension_numbers = #tpu.dot_dimension_numbers<[1], [0], [0], [1], [0, 0, 1, 1], [], []>} : vector<8x128xbf16>, vector<128x512xbf16>, vector<8x512xf32> -> vector<8x512xf32>
    %419 = arith.addf %416, %418 : vector<8x512xf32>
    %420 = arith.index_cast %414 : i32 to index
    %c0_112 = arith.constant 0 : index
    %421 = vector.load %arg20[%420, %c0_112] : memref<64x512xf32, #tpu.memory_space<vmem>>, vector<8x512xf32>
    %422 = arith.truncf %406 : vector<8x128xf32> to vector<8x128xbf16>
    %cst_113 = arith.constant dense<0.000000e+00> : vector<8x512xf32>
    %423 = tpu.matmul %422, %18, %cst_113 {dimension_numbers = #tpu.dot_dimension_numbers<[1], [0], [0], [1], [0, 0, 1, 1], [], []>} : vector<8x128xbf16>, vector<128x512xbf16>, vector<8x512xf32> -> vector<8x512xf32>
    %424 = arith.addf %421, %423 : vector<8x512xf32>
    %425 = arith.index_cast %411 : i32 to index
    %c0_114 = arith.constant 0 : index
    %426 = vector.load %arg3[%425, %c0_114] : memref<64x1xf32, #tpu.memory_space<vmem>>, vector<8x1xf32>
    %427 = arith.index_cast %414 : i32 to index
    %c0_115 = arith.constant 0 : index
    %428 = vector.load %arg4[%427, %c0_115] : memref<64x1xf32, #tpu.memory_space<vmem>>, vector<8x1xf32>
    %429 = vector.extract_strided_slice %419 {offsets = [0, 0], sizes = [8, 128], strides = [1, 1]} : vector<8x512xf32> to vector<8x128xf32>
    %430 = arith.negf %429 : vector<8x128xf32>
    %431 = math.exp %430 : vector<8x128xf32>
    %cst_116 = arith.constant 1.000000e+00 : f32
    %432 = vector.broadcast %cst_116 : f32 to vector<8x128xf32>
    %433 = arith.addf %432, %431 : vector<8x128xf32>
    %434 = arith.divf %432, %433 : vector<8x128xf32>
    %435 = vector.extract_strided_slice %419 {offsets = [0, 128], sizes = [8, 128], strides = [1, 1]} : vector<8x512xf32> to vector<8x128xf32>
    %436 = arith.negf %435 : vector<8x128xf32>
    %437 = math.exp %436 : vector<8x128xf32>
    %cst_117 = arith.constant 1.000000e+00 : f32
    %438 = vector.broadcast %cst_117 : f32 to vector<8x128xf32>
    %439 = arith.addf %438, %437 : vector<8x128xf32>
    %440 = arith.divf %438, %439 : vector<8x128xf32>
    %441 = vector.extract_strided_slice %419 {offsets = [0, 256], sizes = [8, 128], strides = [1, 1]} : vector<8x512xf32> to vector<8x128xf32>
    %442 = math.tanh %441 : vector<8x128xf32>
    %443 = vector.extract_strided_slice %419 {offsets = [0, 384], sizes = [8, 128], strides = [1, 1]} : vector<8x512xf32> to vector<8x128xf32>
    %444 = arith.negf %443 : vector<8x128xf32>
    %445 = math.exp %444 : vector<8x128xf32>
    %cst_118 = arith.constant 1.000000e+00 : f32
    %446 = vector.broadcast %cst_118 : f32 to vector<8x128xf32>
    %447 = arith.addf %446, %445 : vector<8x128xf32>
    %448 = arith.divf %446, %447 : vector<8x128xf32>
    %449 = arith.mulf %440, %374 : vector<8x128xf32>
    %450 = arith.mulf %434, %442 : vector<8x128xf32>
    %451 = arith.addf %449, %450 : vector<8x128xf32>
    %452 = math.tanh %451 : vector<8x128xf32>
    %453 = arith.mulf %448, %452 : vector<8x128xf32>
    %454 = vector.broadcast %426 : vector<8x1xf32> to vector<8x128xf32>
    %455 = arith.mulf %454, %453 : vector<8x128xf32>
    %456 = arith.addf %379, %455 : vector<8x128xf32>
    %457 = vector.extract_strided_slice %424 {offsets = [0, 0], sizes = [8, 128], strides = [1, 1]} : vector<8x512xf32> to vector<8x128xf32>
    %458 = arith.negf %457 : vector<8x128xf32>
    %459 = math.exp %458 : vector<8x128xf32>
    %cst_119 = arith.constant 1.000000e+00 : f32
    %460 = vector.broadcast %cst_119 : f32 to vector<8x128xf32>
    %461 = arith.addf %460, %459 : vector<8x128xf32>
    %462 = arith.divf %460, %461 : vector<8x128xf32>
    %463 = vector.extract_strided_slice %424 {offsets = [0, 128], sizes = [8, 128], strides = [1, 1]} : vector<8x512xf32> to vector<8x128xf32>
    %464 = arith.negf %463 : vector<8x128xf32>
    %465 = math.exp %464 : vector<8x128xf32>
    %cst_120 = arith.constant 1.000000e+00 : f32
    %466 = vector.broadcast %cst_120 : f32 to vector<8x128xf32>
    %467 = arith.addf %466, %465 : vector<8x128xf32>
    %468 = arith.divf %466, %467 : vector<8x128xf32>
    %469 = vector.extract_strided_slice %424 {offsets = [0, 256], sizes = [8, 128], strides = [1, 1]} : vector<8x512xf32> to vector<8x128xf32>
    %470 = math.tanh %469 : vector<8x128xf32>
    %471 = vector.extract_strided_slice %424 {offsets = [0, 384], sizes = [8, 128], strides = [1, 1]} : vector<8x512xf32> to vector<8x128xf32>
    %472 = arith.negf %471 : vector<8x128xf32>
    %473 = math.exp %472 : vector<8x128xf32>
    %cst_121 = arith.constant 1.000000e+00 : f32
    %474 = vector.broadcast %cst_121 : f32 to vector<8x128xf32>
    %475 = arith.addf %474, %473 : vector<8x128xf32>
    %476 = arith.divf %474, %475 : vector<8x128xf32>
    %477 = arith.mulf %468, %408 : vector<8x128xf32>
    %478 = arith.mulf %462, %470 : vector<8x128xf32>
    %479 = arith.addf %477, %478 : vector<8x128xf32>
    %480 = math.tanh %479 : vector<8x128xf32>
    %481 = arith.mulf %476, %480 : vector<8x128xf32>
    %482 = vector.broadcast %428 : vector<8x1xf32> to vector<8x128xf32>
    %483 = arith.mulf %482, %481 : vector<8x128xf32>
    %484 = vector.broadcast %428 : vector<8x1xf32> to vector<8x128xf32>
    %485 = arith.mulf %484, %479 : vector<8x128xf32>
    %486 = arith.addf %409, %483 : vector<8x128xf32>
    %c6_i32 = arith.constant 6 : i32
    %c8_i32_122 = arith.constant 8 : i32
    %487 = arith.muli %c6_i32, %c8_i32_122 : i32
    %488 = tpu.assume_multiple %487, 8 : i32
    %c7_i32_123 = arith.constant 7 : i32
    %489 = arith.subi %c7_i32_123, %c6_i32 : i32
    %c8_i32_124 = arith.constant 8 : i32
    %490 = arith.muli %489, %c8_i32_124 : i32
    %491 = tpu.assume_multiple %490, 8 : i32
    %492 = arith.index_cast %488 : i32 to index
    %c0_125 = arith.constant 0 : index
    %493 = vector.load %arg19[%492, %c0_125] : memref<64x512xf32, #tpu.memory_space<vmem>>, vector<8x512xf32>
    %494 = arith.truncf %453 : vector<8x128xf32> to vector<8x128xbf16>
    %cst_126 = arith.constant dense<0.000000e+00> : vector<8x512xf32>
    %495 = tpu.matmul %494, %17, %cst_126 {dimension_numbers = #tpu.dot_dimension_numbers<[1], [0], [0], [1], [0, 0, 1, 1], [], []>} : vector<8x128xbf16>, vector<128x512xbf16>, vector<8x512xf32> -> vector<8x512xf32>
    %496 = arith.addf %493, %495 : vector<8x512xf32>
    %497 = arith.index_cast %491 : i32 to index
    %c0_127 = arith.constant 0 : index
    %498 = vector.load %arg20[%497, %c0_127] : memref<64x512xf32, #tpu.memory_space<vmem>>, vector<8x512xf32>
    %499 = arith.truncf %483 : vector<8x128xf32> to vector<8x128xbf16>
    %cst_128 = arith.constant dense<0.000000e+00> : vector<8x512xf32>
    %500 = tpu.matmul %499, %18, %cst_128 {dimension_numbers = #tpu.dot_dimension_numbers<[1], [0], [0], [1], [0, 0, 1, 1], [], []>} : vector<8x128xbf16>, vector<128x512xbf16>, vector<8x512xf32> -> vector<8x512xf32>
    %501 = arith.addf %498, %500 : vector<8x512xf32>
    %502 = arith.index_cast %488 : i32 to index
    %c0_129 = arith.constant 0 : index
    %503 = vector.load %arg3[%502, %c0_129] : memref<64x1xf32, #tpu.memory_space<vmem>>, vector<8x1xf32>
    %504 = arith.index_cast %491 : i32 to index
    %c0_130 = arith.constant 0 : index
    %505 = vector.load %arg4[%504, %c0_130] : memref<64x1xf32, #tpu.memory_space<vmem>>, vector<8x1xf32>
    %506 = vector.extract_strided_slice %496 {offsets = [0, 0], sizes = [8, 128], strides = [1, 1]} : vector<8x512xf32> to vector<8x128xf32>
    %507 = arith.negf %506 : vector<8x128xf32>
    %508 = math.exp %507 : vector<8x128xf32>
    %cst_131 = arith.constant 1.000000e+00 : f32
    %509 = vector.broadcast %cst_131 : f32 to vector<8x128xf32>
    %510 = arith.addf %509, %508 : vector<8x128xf32>
    %511 = arith.divf %509, %510 : vector<8x128xf32>
    %512 = vector.extract_strided_slice %496 {offsets = [0, 128], sizes = [8, 128], strides = [1, 1]} : vector<8x512xf32> to vector<8x128xf32>
    %513 = arith.negf %512 : vector<8x128xf32>
    %514 = math.exp %513 : vector<8x128xf32>
    %cst_132 = arith.constant 1.000000e+00 : f32
    %515 = vector.broadcast %cst_132 : f32 to vector<8x128xf32>
    %516 = arith.addf %515, %514 : vector<8x128xf32>
    %517 = arith.divf %515, %516 : vector<8x128xf32>
    %518 = vector.extract_strided_slice %496 {offsets = [0, 256], sizes = [8, 128], strides = [1, 1]} : vector<8x512xf32> to vector<8x128xf32>
    %519 = math.tanh %518 : vector<8x128xf32>
    %520 = vector.extract_strided_slice %496 {offsets = [0, 384], sizes = [8, 128], strides = [1, 1]} : vector<8x512xf32> to vector<8x128xf32>
    %521 = arith.negf %520 : vector<8x128xf32>
    %522 = math.exp %521 : vector<8x128xf32>
    %cst_133 = arith.constant 1.000000e+00 : f32
    %523 = vector.broadcast %cst_133 : f32 to vector<8x128xf32>
    %524 = arith.addf %523, %522 : vector<8x128xf32>
    %525 = arith.divf %523, %524 : vector<8x128xf32>
    %526 = arith.mulf %517, %451 : vector<8x128xf32>
    %527 = arith.mulf %511, %519 : vector<8x128xf32>
    %528 = arith.addf %526, %527 : vector<8x128xf32>
    %529 = math.tanh %528 : vector<8x128xf32>
    %530 = arith.mulf %525, %529 : vector<8x128xf32>
    %531 = vector.broadcast %503 : vector<8x1xf32> to vector<8x128xf32>
    %532 = arith.mulf %531, %530 : vector<8x128xf32>
    %533 = arith.addf %456, %532 : vector<8x128xf32>
    %534 = vector.extract_strided_slice %501 {offsets = [0, 0], sizes = [8, 128], strides = [1, 1]} : vector<8x512xf32> to vector<8x128xf32>
    %535 = arith.negf %534 : vector<8x128xf32>
    %536 = math.exp %535 : vector<8x128xf32>
    %cst_134 = arith.constant 1.000000e+00 : f32
    %537 = vector.broadcast %cst_134 : f32 to vector<8x128xf32>
    %538 = arith.addf %537, %536 : vector<8x128xf32>
    %539 = arith.divf %537, %538 : vector<8x128xf32>
    %540 = vector.extract_strided_slice %501 {offsets = [0, 128], sizes = [8, 128], strides = [1, 1]} : vector<8x512xf32> to vector<8x128xf32>
    %541 = arith.negf %540 : vector<8x128xf32>
    %542 = math.exp %541 : vector<8x128xf32>
    %cst_135 = arith.constant 1.000000e+00 : f32
    %543 = vector.broadcast %cst_135 : f32 to vector<8x128xf32>
    %544 = arith.addf %543, %542 : vector<8x128xf32>
    %545 = arith.divf %543, %544 : vector<8x128xf32>
    %546 = vector.extract_strided_slice %501 {offsets = [0, 256], sizes = [8, 128], strides = [1, 1]} : vector<8x512xf32> to vector<8x128xf32>
    %547 = math.tanh %546 : vector<8x128xf32>
    %548 = vector.extract_strided_slice %501 {offsets = [0, 384], sizes = [8, 128], strides = [1, 1]} : vector<8x512xf32> to vector<8x128xf32>
    %549 = arith.negf %548 : vector<8x128xf32>
    %550 = math.exp %549 : vector<8x128xf32>
    %cst_136 = arith.constant 1.000000e+00 : f32
    %551 = vector.broadcast %cst_136 : f32 to vector<8x128xf32>
    %552 = arith.addf %551, %550 : vector<8x128xf32>
    %553 = arith.divf %551, %552 : vector<8x128xf32>
    %554 = arith.mulf %545, %485 : vector<8x128xf32>
    %555 = arith.mulf %539, %547 : vector<8x128xf32>
    %556 = arith.addf %554, %555 : vector<8x128xf32>
    %557 = math.tanh %556 : vector<8x128xf32>
    %558 = arith.mulf %553, %557 : vector<8x128xf32>
    %559 = vector.broadcast %505 : vector<8x1xf32> to vector<8x128xf32>
    %560 = arith.mulf %559, %558 : vector<8x128xf32>
    %561 = vector.broadcast %505 : vector<8x1xf32> to vector<8x128xf32>
    %562 = arith.mulf %561, %556 : vector<8x128xf32>
    %563 = arith.addf %486, %560 : vector<8x128xf32>
    %c7_i32_137 = arith.constant 7 : i32
    %c8_i32_138 = arith.constant 8 : i32
    %564 = arith.muli %c7_i32_137, %c8_i32_138 : i32
    %565 = tpu.assume_multiple %564, 8 : i32
    %c7_i32_139 = arith.constant 7 : i32
    %566 = arith.subi %c7_i32_139, %c7_i32_137 : i32
    %c8_i32_140 = arith.constant 8 : i32
    %567 = arith.muli %566, %c8_i32_140 : i32
    %568 = tpu.assume_multiple %567, 8 : i32
    %569 = arith.index_cast %565 : i32 to index
    %c0_141 = arith.constant 0 : index
    %570 = vector.load %arg19[%569, %c0_141] : memref<64x512xf32, #tpu.memory_space<vmem>>, vector<8x512xf32>
    %571 = arith.truncf %530 : vector<8x128xf32> to vector<8x128xbf16>
    %cst_142 = arith.constant dense<0.000000e+00> : vector<8x512xf32>
    %572 = tpu.matmul %571, %17, %cst_142 {dimension_numbers = #tpu.dot_dimension_numbers<[1], [0], [0], [1], [0, 0, 1, 1], [], []>} : vector<8x128xbf16>, vector<128x512xbf16>, vector<8x512xf32> -> vector<8x512xf32>
    %573 = arith.addf %570, %572 : vector<8x512xf32>
    %574 = arith.index_cast %568 : i32 to index
    %c0_143 = arith.constant 0 : index
    %575 = vector.load %arg20[%574, %c0_143] : memref<64x512xf32, #tpu.memory_space<vmem>>, vector<8x512xf32>
    %576 = arith.truncf %560 : vector<8x128xf32> to vector<8x128xbf16>
    %cst_144 = arith.constant dense<0.000000e+00> : vector<8x512xf32>
    %577 = tpu.matmul %576, %18, %cst_144 {dimension_numbers = #tpu.dot_dimension_numbers<[1], [0], [0], [1], [0, 0, 1, 1], [], []>} : vector<8x128xbf16>, vector<128x512xbf16>, vector<8x512xf32> -> vector<8x512xf32>
    %578 = arith.addf %575, %577 : vector<8x512xf32>
    %579 = arith.index_cast %565 : i32 to index
    %c0_145 = arith.constant 0 : index
    %580 = vector.load %arg3[%579, %c0_145] : memref<64x1xf32, #tpu.memory_space<vmem>>, vector<8x1xf32>
    %581 = arith.index_cast %568 : i32 to index
    %c0_146 = arith.constant 0 : index
    %582 = vector.load %arg4[%581, %c0_146] : memref<64x1xf32, #tpu.memory_space<vmem>>, vector<8x1xf32>
    %583 = vector.extract_strided_slice %573 {offsets = [0, 0], sizes = [8, 128], strides = [1, 1]} : vector<8x512xf32> to vector<8x128xf32>
    %584 = arith.negf %583 : vector<8x128xf32>
    %585 = math.exp %584 : vector<8x128xf32>
    %cst_147 = arith.constant 1.000000e+00 : f32
    %586 = vector.broadcast %cst_147 : f32 to vector<8x128xf32>
    %587 = arith.addf %586, %585 : vector<8x128xf32>
    %588 = arith.divf %586, %587 : vector<8x128xf32>
    %589 = vector.extract_strided_slice %573 {offsets = [0, 128], sizes = [8, 128], strides = [1, 1]} : vector<8x512xf32> to vector<8x128xf32>
    %590 = arith.negf %589 : vector<8x128xf32>
    %591 = math.exp %590 : vector<8x128xf32>
    %cst_148 = arith.constant 1.000000e+00 : f32
    %592 = vector.broadcast %cst_148 : f32 to vector<8x128xf32>
    %593 = arith.addf %592, %591 : vector<8x128xf32>
    %594 = arith.divf %592, %593 : vector<8x128xf32>
    %595 = vector.extract_strided_slice %573 {offsets = [0, 256], sizes = [8, 128], strides = [1, 1]} : vector<8x512xf32> to vector<8x128xf32>
    %596 = math.tanh %595 : vector<8x128xf32>
    %597 = vector.extract_strided_slice %573 {offsets = [0, 384], sizes = [8, 128], strides = [1, 1]} : vector<8x512xf32> to vector<8x128xf32>
    %598 = arith.negf %597 : vector<8x128xf32>
    %599 = math.exp %598 : vector<8x128xf32>
    %cst_149 = arith.constant 1.000000e+00 : f32
    %600 = vector.broadcast %cst_149 : f32 to vector<8x128xf32>
    %601 = arith.addf %600, %599 : vector<8x128xf32>
    %602 = arith.divf %600, %601 : vector<8x128xf32>
    %603 = arith.mulf %594, %528 : vector<8x128xf32>
    %604 = arith.mulf %588, %596 : vector<8x128xf32>
    %605 = arith.addf %603, %604 : vector<8x128xf32>
    %606 = math.tanh %605 : vector<8x128xf32>
    %607 = arith.mulf %602, %606 : vector<8x128xf32>
    %608 = vector.broadcast %580 : vector<8x1xf32> to vector<8x128xf32>
    %609 = arith.mulf %608, %607 : vector<8x128xf32>
    %610 = arith.addf %533, %609 : vector<8x128xf32>
    %611 = vector.extract_strided_slice %578 {offsets = [0, 0], sizes = [8, 128], strides = [1, 1]} : vector<8x512xf32> to vector<8x128xf32>
    %612 = arith.negf %611 : vector<8x128xf32>
    %613 = math.exp %612 : vector<8x128xf32>
    %cst_150 = arith.constant 1.000000e+00 : f32
    %614 = vector.broadcast %cst_150 : f32 to vector<8x128xf32>
    %615 = arith.addf %614, %613 : vector<8x128xf32>
    %616 = arith.divf %614, %615 : vector<8x128xf32>
    %617 = vector.extract_strided_slice %578 {offsets = [0, 128], sizes = [8, 128], strides = [1, 1]} : vector<8x512xf32> to vector<8x128xf32>
    %618 = arith.negf %617 : vector<8x128xf32>
    %619 = math.exp %618 : vector<8x128xf32>
    %cst_151 = arith.constant 1.000000e+00 : f32
    %620 = vector.broadcast %cst_151 : f32 to vector<8x128xf32>
    %621 = arith.addf %620, %619 : vector<8x128xf32>
    %622 = arith.divf %620, %621 : vector<8x128xf32>
    %623 = vector.extract_strided_slice %578 {offsets = [0, 256], sizes = [8, 128], strides = [1, 1]} : vector<8x512xf32> to vector<8x128xf32>
    %624 = math.tanh %623 : vector<8x128xf32>
    %625 = vector.extract_strided_slice %578 {offsets = [0, 384], sizes = [8, 128], strides = [1, 1]} : vector<8x512xf32> to vector<8x128xf32>
    %626 = arith.negf %625 : vector<8x128xf32>
    %627 = math.exp %626 : vector<8x128xf32>
    %cst_152 = arith.constant 1.000000e+00 : f32
    %628 = vector.broadcast %cst_152 : f32 to vector<8x128xf32>
    %629 = arith.addf %628, %627 : vector<8x128xf32>
    %630 = arith.divf %628, %629 : vector<8x128xf32>
    %631 = arith.mulf %622, %562 : vector<8x128xf32>
    %632 = arith.mulf %616, %624 : vector<8x128xf32>
    %633 = arith.addf %631, %632 : vector<8x128xf32>
    %634 = math.tanh %633 : vector<8x128xf32>
    %635 = arith.mulf %630, %634 : vector<8x128xf32>
    %636 = vector.broadcast %582 : vector<8x1xf32> to vector<8x128xf32>
    %637 = arith.mulf %636, %635 : vector<8x128xf32>
    %638 = vector.broadcast %582 : vector<8x1xf32> to vector<8x128xf32>
    %639 = arith.mulf %638, %633 : vector<8x128xf32>
    %640 = arith.addf %563, %637 : vector<8x128xf32>
    %c8_i32_153 = arith.constant 8 : i32
    %c0_154 = arith.constant 0 : index
    %c0_155 = arith.constant 0 : index
    %641 = vector.load %arg13[%c0_154, %c0_155] : memref<8x128xf32, #tpu.memory_space<vmem>>, vector<8x128xf32>
    tpu.vector_store %arg13[%c0_154, %c0_155], %607 {strides = array<i32>} : memref<8x128xf32, #tpu.memory_space<vmem>>, vector<8x128xf32>,
    %c0_156 = arith.constant 0 : index
    %c0_157 = arith.constant 0 : index
    %642 = vector.load %arg14[%c0_156, %c0_157] : memref<8x128xf32, #tpu.memory_space<vmem>>, vector<8x128xf32>
    tpu.vector_store %arg14[%c0_156, %c0_157], %605 {strides = array<i32>} : memref<8x128xf32, #tpu.memory_space<vmem>>, vector<8x128xf32>,
    %c0_158 = arith.constant 0 : index
    %c0_159 = arith.constant 0 : index
    %643 = vector.load %arg15[%c0_158, %c0_159] : memref<8x128xf32, #tpu.memory_space<vmem>>, vector<8x128xf32>
    tpu.vector_store %arg15[%c0_158, %c0_159], %610 {strides = array<i32>} : memref<8x128xf32, #tpu.memory_space<vmem>>, vector<8x128xf32>,
    %c0_160 = arith.constant 0 : index
    %c0_161 = arith.constant 0 : index
    %644 = vector.load %arg16[%c0_160, %c0_161] : memref<8x128xf32, #tpu.memory_space<vmem>>, vector<8x128xf32>
    tpu.vector_store %arg16[%c0_160, %c0_161], %637 {strides = array<i32>} : memref<8x128xf32, #tpu.memory_space<vmem>>, vector<8x128xf32>,
    %c0_162 = arith.constant 0 : index
    %c0_163 = arith.constant 0 : index
    %645 = vector.load %arg17[%c0_162, %c0_163] : memref<8x128xf32, #tpu.memory_space<vmem>>, vector<8x128xf32>
    tpu.vector_store %arg17[%c0_162, %c0_163], %639 {strides = array<i32>} : memref<8x128xf32, #tpu.memory_space<vmem>>, vector<8x128xf32>,
    %c0_164 = arith.constant 0 : index
    %c0_165 = arith.constant 0 : index
    %646 = vector.load %arg18[%c0_164, %c0_165] : memref<8x128xf32, #tpu.memory_space<vmem>>, vector<8x128xf32>
    tpu.vector_store %arg18[%c0_164, %c0_165], %640 {strides = array<i32>} : memref<8x128xf32, #tpu.memory_space<vmem>>, vector<8x128xf32>,
    %c0_i32_166 = arith.constant 0 : i32
    %647 = arith.cmpi eq, %arg0, %c0_i32_166 : i32
    %648 = arith.extui %647 : i1 to i32
    %c0_i32_167 = arith.constant 0 : i32
    %649 = arith.cmpi ne, %648, %c0_i32_167 : i32
    scf.if %649 {
      %c0_168 = arith.constant 0 : index
      %c0_169 = arith.constant 0 : index
      %650 = vector.load %arg5[%c0_168, %c0_169] : memref<8x1xf32, #tpu.memory_space<vmem>>, vector<8x1xf32>
      %c0_170 = arith.constant 0 : index
      %c0_171 = arith.constant 0 : index
      %651 = vector.load %arg15[%c0_170, %c0_171] : memref<8x128xf32, #tpu.memory_space<vmem>>, vector<8x128xf32>
      %652 = vector.broadcast %650 : vector<8x1xf32> to vector<8x128xf32>
      %653 = arith.mulf %651, %652 : vector<8x128xf32>
      %c0_172 = arith.constant 0 : index
      %c0_173 = arith.constant 0 : index
      %654 = vector.load %arg12[%c0_172, %c0_173] : memref<8x256xf32, #tpu.memory_space<vmem>>, vector<8x128xf32>
      tpu.vector_store %arg12[%c0_172, %c0_173], %653 {strides = array<i32>} : memref<8x256xf32, #tpu.memory_space<vmem>>, vector<8x128xf32>,
      %c0_174 = arith.constant 0 : index
      %c0_175 = arith.constant 0 : index
      %655 = vector.load %arg18[%c0_174, %c0_175] : memref<8x128xf32, #tpu.memory_space<vmem>>, vector<8x128xf32>
      %656 = vector.broadcast %650 : vector<8x1xf32> to vector<8x128xf32>
      %657 = arith.mulf %655, %656 : vector<8x128xf32>
      %c0_176 = arith.constant 0 : index
      %c128 = arith.constant 128 : index
      %658 = vector.load %arg12[%c0_176, %c128] : memref<8x256xf32, #tpu.memory_space<vmem>>, vector<8x128xf32>
      tpu.vector_store %arg12[%c0_176, %c128], %657 {strides = array<i32>} : memref<8x256xf32, #tpu.memory_space<vmem>>, vector<8x128xf32>,
    } else {
    }
    return
  }
  func.func @transform_0(%arg0: i32) -> (i32, i32) {
    %c0_i32 = arith.constant 0 : i32
    %c0_i32_0 = arith.constant 0 : i32
    return %arg0, %c0_i32 : i32, i32
  }
  func.func @transform_1(%arg0: i32) -> (i32, i32) {
    %c0_i32 = arith.constant 0 : i32
    %0 = arith.subi %c0_i32, %arg0 : i32
    %c0_i32_0 = arith.constant 0 : i32
    %c0_i32_1 = arith.constant 0 : i32
    return %0, %c0_i32_0 : i32, i32
  }
  func.func @transform_2(%arg0: i32) -> (i32, i32) {
    %c0_i32 = arith.constant 0 : i32
    %c0_i32_0 = arith.constant 0 : i32
    return %arg0, %c0_i32 : i32, i32
  }
  func.func @transform_3(%arg0: i32) -> (i32, i32) {
    %c0_i32 = arith.constant 0 : i32
    %0 = arith.subi %c0_i32, %arg0 : i32
    %c0_i32_0 = arith.constant 0 : i32
    %c0_i32_1 = arith.constant 0 : i32
    return %0, %c0_i32_0 : i32, i32
  }
  func.func @transform_4(%arg0: i32) -> (i32, i32) {
    %c0_i32 = arith.constant 0 : i32
    %c0_i32_0 = arith.constant 0 : i32
    %c0_i32_1 = arith.constant 0 : i32
    return %c0_i32, %c0_i32_0 : i32, i32
  }
  func.func @transform_5(%arg0: i32) -> (i32, i32) {
    %c0_i32 = arith.constant 0 : i32
    %c0_i32_0 = arith.constant 0 : i32
    %c0_i32_1 = arith.constant 0 : i32
    return %c0_i32, %c0_i32_0 : i32, i32
  }
  func.func @transform_6(%arg0: i32) -> (i32, i32) {
    %c0_i32 = arith.constant 0 : i32
    %c0_i32_0 = arith.constant 0 : i32
    %c0_i32_1 = arith.constant 0 : i32
    return %c0_i32, %c0_i32_0 : i32, i32
  }
  func.func @transform_7(%arg0: i32) -> (i32, i32) {
    %c0_i32 = arith.constant 0 : i32
    %c0_i32_0 = arith.constant 0 : i32
    %c0_i32_1 = arith.constant 0 : i32
    return %c0_i32, %c0_i32_0 : i32, i32
  }
  func.func @transform_8(%arg0: i32) -> (i32, i32) {
    %c0_i32 = arith.constant 0 : i32
    %c0_i32_0 = arith.constant 0 : i32
    %c0_i32_1 = arith.constant 0 : i32
    return %c0_i32, %c0_i32_0 : i32, i32
  }
  func.func @transform_9(%arg0: i32) -> (i32, i32) {
    %c0_i32 = arith.constant 0 : i32
    %c0_i32_0 = arith.constant 0 : i32
    %c0_i32_1 = arith.constant 0 : i32
    return %c0_i32, %c0_i32_0 : i32, i32
  }
  func.func @transform_10(%arg0: i32) -> (i32, i32) {
    %c0_i32 = arith.constant 0 : i32
    %c0_i32_0 = arith.constant 0 : i32
    %c0_i32_1 = arith.constant 0 : i32
    return %c0_i32, %c0_i32_0 : i32, i32
  }
  func.func @transform_11(%arg0: i32) -> (i32, i32) {
    %c0_i32 = arith.constant 0 : i32
    %c0_i32_0 = arith.constant 0 : i32
    %c0_i32_1 = arith.constant 0 : i32
    return %c0_i32, %c0_i32_0 : i32, i32
  }
}

</mosaic_0001>

<llo_original>
// kernel: birnn_dual_forward.1
$region0: #{birnn_dual_forward.1}
  #allocation0 [shape = 'u32[]', space=smem, size = 0x4, offset = 0x4, fixed_abs, tag = 'smem constant byte address 0x4 - core index']
  #allocation1 [shape = 'u32[144,128]{1,0:T(1,128)}', space=vmem, size = 0x12000, scoped, tag = 'internal scratch']
  #allocation2 [shape = 'f32[8,128]{1,0:T(8,128)}', space=vmem, size = 0x1000, scoped, tag = 'scratch operand']
  #allocation3 [shape = 'f32[8,128]{1,0:T(8,128)}', space=vmem, size = 0x1000, scoped, tag = 'scratch operand']
  #allocation4 [shape = 'f32[8,128]{1,0:T(8,128)}', space=vmem, size = 0x1000, scoped, tag = 'scratch operand']
  #allocation5 [shape = 'f32[8,128]{1,0:T(8,128)}', space=vmem, size = 0x1000, scoped, tag = 'scratch operand']
  #allocation6 [shape = 'f32[8,128]{1,0:T(8,128)}', space=vmem, size = 0x1000, scoped, tag = 'scratch operand']
  #allocation7 [shape = 'f32[8,128]{1,0:T(8,128)}', space=vmem, size = 0x1000, scoped, tag = 'scratch operand']
  #allocation8 [shape = 'f32[64,512]{1,0:T(8,128)}', space=vmem, size = 0x20000, scoped, tag = 'scratch operand']
  #allocation9 [shape = 'f32[64,512]{1,0:T(8,128)}', space=vmem, size = 0x20000, scoped, tag = 'scratch operand']
  %s0 = inlined_call_operand.vmem [shape: bf16[64,32], index: 0, kind: input, shape index: {}, may-alias: {0,1}]
  %s1 = inlined_call_operand.vmem [shape: bf16[64,32], index: 1, kind: input, shape index: {}, may-alias: {0,1}]
  %s2 = inlined_call_operand.vmem [shape: f32[64,1], index: 2, kind: input, shape index: {}, may-alias: {2,3}]
  %s3 = inlined_call_operand.vmem [shape: f32[64,1], index: 3, kind: input, shape index: {}, may-alias: {2,3}]
  %s4 = inlined_call_operand.vmem [shape: f32[8,1], index: 4, kind: input, shape index: {}]
  %s5 = inlined_call_operand.hbm [shape: bf16[32,512], index: 5, kind: input, shape index: {}]
  %s6 = inlined_call_operand.hbm [shape: bf16[32,512], index: 6, kind: input, shape index: {}]
  %s7 = inlined_call_operand.hbm [shape: f32[1,512], index: 7, kind: input, shape index: {}]
  %s8 = inlined_call_operand.hbm [shape: f32[1,512], index: 8, kind: input, shape index: {}]
  %s9 = inlined_call_operand.vmem [shape: bf16[128,512], index: 9, kind: input, shape index: {}]
  %s10 = inlined_call_operand.hbm [shape: bf16[128,512], index: 10, kind: input, shape index: {}]
  %s11 = inlined_call_operand.vmem [shape: f32[8,256], index: 11, kind: output, shape index: {}]
  %s12 = sld [smem:[#allocation0]]
  $region82: #{birnn_dual_forward.1} parent=0
    _
  %s14 = ssub.s32 1, %s12
  %s15 = scalar_select 0, %s14, %s12
  $region1: #{birnn_dual_forward.1} parent=0
    #allocation10 [shape = 'u8[32768]{0}', space=vmem, size = 0x8000, scoped, tag = 'input window, operand 5, single buffered']
    #allocation11 [shape = 's32[1]{0}', space=sflag, size = 0x4, scoped, tag = 'scoped memory for birnn_dual_forward.1']
    #allocation12 [shape = 'u8[32768]{0}', space=vmem, size = 0x8000, scoped, tag = 'input window, operand 6, single buffered']
    #allocation13 [shape = 's32[1]{0}', space=sflag, size = 0x4, scoped, tag = 'scoped memory for birnn_dual_forward.1']
    #allocation14 [shape = 'u8[2048]{0}', space=vmem, size = 0x800, scoped, tag = 'input window, operand 7, single buffered']
    #allocation15 [shape = 'u8[2048]{0}', space=vmem, size = 0x800, scoped, tag = 'input window, operand 8, single buffered']
    #allocation16 [shape = 's32[1]{0}', space=sflag, size = 0x4, scoped, tag = 'scoped memory for birnn_dual_forward.1']
    #allocation17 [shape = 'u8[131072]{0}', space=vmem, size = 0x20000, scoped, tag = 'input window, operand 10, single buffered']
    %16 = vsyncpa [#allocation11], 0
    %17 = vsyncpa [#allocation13], 0
    %18 = vsyncpa [#allocation16], 0
    // Predicated region
    $region2: #{birnn_dual_forward.1} parent=1 // pred_check
      _
    $region3: #{birnn_dual_forward.1} parent=1 // pred_check_branch
      %20 = sbr.rel (0) target = $region5
    $region4: #{birnn_dual_forward.1} parent=1 // pred_region
      _
    $region5: #{birnn_dual_forward.1} parent=1 // pred_fallthru
      _
    // Predicated region
    $region6: #{birnn_dual_forward.1} parent=1 // pred_check
      _
    $region7: #{birnn_dual_forward.1} parent=1 // pred_check_branch
      %22 = sbr.rel (0) target = $region9
    $region8: #{birnn_dual_forward.1} parent=1 // pred_region
      %s23 = ssub.s32 0, 0
      %s24 = smul.u32 8, %s23
      %p25 = scmp.lt.s32.totalorder %s24, 7
      %s26 = scalar_select %p25, %s24, 7
      %s27 = smul.addr %s26, 4
      %s28 = scalar_lea.vmem %s1, %s27
      %s29 = ssub.s32 0, 0
      %s30 = smul.u32 8, %s29
    $region9: #{birnn_dual_forward.1} parent=1 // pred_fallthru
      _
    // Predicated region
    $region10: #{birnn_dual_forward.1} parent=1 // pred_check
      _
    $region11: #{birnn_dual_forward.1} parent=1 // pred_check_branch
      %32 = sbr.rel (0) target = $region13
    $region12: #{birnn_dual_forward.1} parent=1 // pred_region
      _
    $region13: #{birnn_dual_forward.1} parent=1 // pred_fallthru
      _
    // Predicated region
    $region14: #{birnn_dual_forward.1} parent=1 // pred_check
      _
    $region15: #{birnn_dual_forward.1} parent=1 // pred_check_branch
      %34 = sbr.rel (0) target = $region17
    $region16: #{birnn_dual_forward.1} parent=1 // pred_region
      %s35 = ssub.s32 0, 0
      %s36 = smul.u32 8, %s35
      %p37 = scmp.lt.s32.totalorder %s36, 7
      %s38 = scalar_select %p37, %s36, 7
      %s39 = smul.addr %s38, 8
      %s40 = scalar_lea.vmem %s3, %s39
      %s41 = ssub.s32 0, 0
      %s42 = smul.u32 8, %s41
    $region17: #{birnn_dual_forward.1} parent=1 // pred_fallthru
      _
    // Predicated region
    $region18: #{birnn_dual_forward.1} parent=1 // pred_check
      _
    $region19: #{birnn_dual_forward.1} parent=1 // pred_check_branch
      %44 = sbr.rel (0) target = $region21
    $region20: #{birnn_dual_forward.1} parent=1 // pred_region
      _
    $region21: #{birnn_dual_forward.1} parent=1 // pred_fallthru
      _
    // Predicated region
    $region22: #{birnn_dual_forward.1} parent=1 // pred_check
      _
    $region23: #{birnn_dual_forward.1} parent=1 // pred_check_branch
      %46 = sbr.rel (0) target = $region25
    $region24: #{birnn_dual_forward.1} parent=1 // pred_region
      %s48 = ssub.s32 1024, 1024
      %49 = vsyncadd [#allocation11], %s48
      %s50 = sshll.u32 [#allocation10], 4
      %s51 = int_to_ptr.vmem [resolvable:$true] %s50
      %56 = dma.hbm_to_vmem [thread:$0]  %s5, 1024, %s51, [#allocation11], 256, 256, 16
    $region25: #{birnn_dual_forward.1} parent=1 // pred_fallthru
      _
    // Predicated region
    $region26: #{birnn_dual_forward.1} parent=1 // pred_check
      _
    $region27: #{birnn_dual_forward.1} parent=1 // pred_check_branch
      %58 = sbr.rel (0) target = $region29
    $region28: #{birnn_dual_forward.1} parent=1 // pred_region
      %s60 = ssub.s32 1024, 1024
      %61 = vsyncadd [#allocation13], %s60
      %s62 = sshll.u32 [#allocation12], 4
      %s63 = int_to_ptr.vmem [resolvable:$true] %s62
      %68 = dma.hbm_to_vmem [thread:$0]  %s6, 1024, %s63, [#allocation13], 256, 256, 16
    $region29: #{birnn_dual_forward.1} parent=1 // pred_fallthru
      _
    // Predicated region
    $region30: #{birnn_dual_forward.1} parent=1 // pred_check
      _
    $region31: #{birnn_dual_forward.1} parent=1 // pred_check_branch
      %70 = sbr.rel (0) target = $region33
    $region32: #{birnn_dual_forward.1} parent=1 // pred_region
      %s72 = ssub.s32 64, 64
      %73 = vsyncadd [#allocation13], %s72
      %s75 = sshll.u32 [#allocation14], 4
      %s76 = int_to_ptr.vmem [resolvable:$true] %s75
      %78 = dma.hbm_to_vmem [thread:$0]  %s7, 64, %s76, [#allocation13]
    $region33: #{birnn_dual_forward.1} parent=1 // pred_fallthru
      _
    // Predicated region
    $region34: #{birnn_dual_forward.1} parent=1 // pred_check
      _
    $region35: #{birnn_dual_forward.1} parent=1 // pred_check_branch
      %80 = sbr.rel (0) target = $region37
    $region36: #{birnn_dual_forward.1} parent=1 // pred_region
      %s82 = ssub.s32 64, 64
      %83 = vsyncadd [#allocation16], %s82
      %s85 = sshll.u32 [#allocation15], 4
      %s86 = int_to_ptr.vmem [resolvable:$true] %s85
      %88 = dma.hbm_to_vmem [thread:$0]  %s8, 64, %s86, [#allocation16]
    $region37: #{birnn_dual_forward.1} parent=1 // pred_fallthru
      _
    // Predicated region
    $region38: #{birnn_dual_forward.1} parent=1 // pred_check
      _
    $region39: #{birnn_dual_forward.1} parent=1 // pred_check_branch
      %90 = sbr.rel (0) target = $region41
    $region40: #{birnn_dual_forward.1} parent=1 // pred_region
      _
    $region41: #{birnn_dual_forward.1} parent=1 // pred_fallthru
      _
    // Predicated region
    $region42: #{birnn_dual_forward.1} parent=1 // pred_check
      _
    $region43: #{birnn_dual_forward.1} parent=1 // pred_check_branch
      %92 = sbr.rel (0) target = $region45
    $region44: #{birnn_dual_forward.1} parent=1 // pred_region
      %s94 = ssub.s32 4096, 4096
      %95 = vsyncadd [#allocation16], %s94
      %s96 = sshll.u32 [#allocation17], 4
      %s97 = int_to_ptr.vmem [resolvable:$true] %s96
      %102 = dma.hbm_to_vmem [thread:$0]  %s10, 4096, %s97, [#allocation16], 256, 256, 16
    $region45: #{birnn_dual_forward.1} parent=1 // pred_fallthru
      _
    // Predicated region
    $region46: #{birnn_dual_forward.1} parent=1 // pred_check
      _
    $region47: #{birnn_dual_forward.1} parent=1 // pred_check_branch
      %104 = sbr.rel (0) target = $region49
    $region48: #{birnn_dual_forward.1} parent=1 // pred_region
      %105 = dma.done [#allocation11], 1024
    $region49: #{birnn_dual_forward.1} parent=1 // pred_fallthru
      _
    // Predicated region
    $region50: #{birnn_dual_forward.1} parent=1 // pred_check
      _
    $region51: #{birnn_dual_forward.1} parent=1 // pred_check_branch
      %107 = sbr.rel (0) target = $region53
    $region52: #{birnn_dual_forward.1} parent=1 // pred_region
      %108 = dma.done [#allocation13], 1024
    $region53: #{birnn_dual_forward.1} parent=1 // pred_fallthru
      _
    // Predicated region
    $region54: #{birnn_dual_forward.1} parent=1 // pred_check
      _
    $region55: #{birnn_dual_forward.1} parent=1 // pred_check_branch
      %110 = sbr.rel (0) target = $region57
    $region56: #{birnn_dual_forward.1} parent=1 // pred_region
      %111 = dma.done [#allocation13], 64
    $region57: #{birnn_dual_forward.1} parent=1 // pred_fallthru
      _
    // Predicated region
    $region58: #{birnn_dual_forward.1} parent=1 // pred_check
      _
    $region59: #{birnn_dual_forward.1} parent=1 // pred_check_branch
      %113 = sbr.rel (0) target = $region61
    $region60: #{birnn_dual_forward.1} parent=1 // pred_region
      %114 = dma.done [#allocation16], 64
    $region61: #{birnn_dual_forward.1} parent=1 // pred_fallthru
      _
    // Predicated region
    $region62: #{birnn_dual_forward.1} parent=1 // pred_check
      _
    $region63: #{birnn_dual_forward.1} parent=1 // pred_check_branch
      %116 = sbr.rel (0) target = $region65
    $region64: #{birnn_dual_forward.1} parent=1 // pred_region
      %117 = dma.done [#allocation16], 4096
    $region65: #{birnn_dual_forward.1} parent=1 // pred_fallthru
      _
    %s118 = ssub.s32 0, 0
    %s119 = smul.u32 8, %s118
    %p120 = scmp.lt.s32.totalorder %s119, 7
    %s121 = scalar_select %p120, %s119, 7
    %s122 = smul.addr %s121, 4
    %s123 = scalar_lea.vmem %s1, %s122
    %s124 = ssub.s32 0, 0
    %s125 = smul.u32 8, %s124
    %p126 = scmp.lt.s32.totalorder %s125, 7
    %s127 = scalar_select %p126, %s125, 7
    %s128 = smul.addr %s127, 8
    %s129 = scalar_lea.vmem %s3, %s128
    %s130 = ssub.s32 0, 0
    %s131 = smul.u32 8, %s130
    %p132 = scmp.lt.s32.totalorder %s131, 7
    %s133 = scalar_select %p132, %s131, 7
    %s134 = smul.addr %s133, 4
    %s135 = scalar_lea.vmem %s1, %s134
    %s136 = ssub.s32 0, 0
    %s137 = smul.u32 8, %s136
    %s138 = ssub.s32 0, 0
    %s139 = smul.u32 8, %s138
    %p140 = scmp.lt.s32.totalorder %s139, 7
    %s141 = scalar_select %p140, %s139, 7
    %s142 = smul.addr %s141, 8
    %s143 = scalar_lea.vmem %s3, %s142
    %s144 = ssub.s32 0, 0
    %s145 = smul.u32 8, %s144
    %p147 = scmp.eq.s32.totalorder 0, 0
    // Predicated region
    $region66: #{birnn_dual_forward.1} parent=1 // pred_check
      %p148 = pneg %p147
    $region67: #{birnn_dual_forward.1} parent=1 // pred_check_branch
      %150 = sbr.rel (%p148) target = $region69
    $region68: #{birnn_dual_forward.1} parent=1 // pred_region
      %151 = vst [vmem:[#allocation2] sm:$0xff] 0.0
      %152 = vst [vmem:[#allocation3] sm:$0xff] 0.0
      %153 = vst [vmem:[#allocation4] sm:$0xff] 0.0
      %154 = vst [vmem:[#allocation5] sm:$0xff] 0.0
      %155 = vst [vmem:[#allocation6] sm:$0xff] 0.0
      %156 = vst [vmem:[#allocation7] sm:$0xff] 0.0
    $region69: #{birnn_dual_forward.1} parent=1 // pred_fallthru
      _
    %v157 = vld [vmem:[%s0] sm:$0xf]
    %v158 = vld [vmem:[%s0 + $0x4] sm:$0xf]
    %v159 = vld [vmem:[%s0 + $0x8] sm:$0xf]
    %v160 = vld [vmem:[%s0 + $0xc] sm:$0xf]
    %v161 = vld [vmem:[%s0 + $0x10] sm:$0xf]
    %v162 = vld [vmem:[%s0 + $0x14] sm:$0xf]
    %v163 = vld [vmem:[%s0 + $0x18] sm:$0xf]
    %v164 = vld [vmem:[%s0 + $0x1c] sm:$0xf]
    %v165 = vld [vmem:[#allocation10] sm:$0xff]
    %v166 = vld [vmem:[#allocation10 + $0x8] sm:$0xff]
    %v167 = vld [vmem:[#allocation10 + $0x10] sm:$0xff]
    %v168 = vld [vmem:[#allocation10 + $0x18] sm:$0xff]
    %v169 = vld [vmem:[#allocation10 + $0x20] sm:$0xff]
    %v170 = vld [vmem:[#allocation10 + $0x28] sm:$0xff]
    %v171 = vld [vmem:[#allocation10 + $0x30] sm:$0xff]
    %v172 = vld [vmem:[#allocation10 + $0x38] sm:$0xff]
    %v173 = vld [vmem:[#allocation14] sm:$0xf]
    %v175 = vlaneseq
    %v176 = vshrl.u32 %v175, 7
    %v177 = vsub.s32 0, %v176
    %v178 = vrot.slane %v173, %v177
    %v179 = vlaneseq
    %v180 = vshrl.u32 %v179, 7
    %v181 = vsub.s32 1, %v180
    %v182 = vrot.slane %v173, %v181
    %v183 = vlaneseq
    %v184 = vshrl.u32 %v183, 7
    %v185 = vsub.s32 2, %v184
    %v186 = vrot.slane %v173, %v185
    %v187 = vlaneseq
    %v188 = vshrl.u32 %v187, 7
    %v189 = vsub.s32 3, %v188
    %v190 = vrot.slane %v173, %v189
    %v203 = vunpack.c.l.b16 %v157
    %v204 = vunpack.c.l.b16 %v158
    %v205 = vunpack.c.l.b16 %v159
    %v206 = vunpack.c.l.b16 %v160
    %v207 = vunpack.c.l.b16 %v161
    %v208 = vunpack.c.l.b16 %v162
    %v209 = vunpack.c.l.b16 %v163
    %v210 = vunpack.c.l.b16 %v164
    %v211 = vpack.c.b16 %v204, %v203
    %v212 = vpack.c.b16 %v206, %v205
    %v213 = vpack.c.b16 %v208, %v207
    %v214 = vpack.c.b16 %v210, %v209
    %v223 = vunpack.c.l.b16 %v165
    %v224 = vunpack.c.h.b16 %v165
    %v225 = vunpack.c.l.b16 %v166
    %v226 = vunpack.c.h.b16 %v166
    %v227 = vunpack.c.l.b16 %v167
    %v228 = vunpack.c.h.b16 %v167
    %v229 = vunpack.c.l.b16 %v168
    %v230 = vunpack.c.h.b16 %v168
    %v231 = vunpack.c.l.b16 %v169
    %v232 = vunpack.c.h.b16 %v169
    %v233 = vunpack.c.l.b16 %v170
    %v234 = vunpack.c.h.b16 %v170
    %v235 = vunpack.c.l.b16 %v171
    %v236 = vunpack.c.h.b16 %v171
    %v237 = vunpack.c.l.b16 %v172
    %v238 = vunpack.c.h.b16 %v172
    %v239 = vpack.c.b16 %v227, %v223
    %v240 = vpack.c.b16 %v228, %v224
    %v241 = vpack.c.b16 %v229, %v225
    %v242 = vpack.c.b16 %v230, %v226
    %v243 = vpack.c.b16 %v235, %v231
    %v244 = vpack.c.b16 %v236, %v232
    %v245 = vpack.c.b16 %v237, %v233
    %v246 = vpack.c.b16 %v238, %v234
    %vm255 = vcmask 261120
    %v257 = vsel %vm255, %v211, 0
    %v260 = vsel %vm255, %v212, 0
    %v263 = vsel %vm255, %v213, 0
    %v266 = vsel %vm255, %v214, 0
    %268 = vmatprep.subr.bf16.mxu0 0
    %269 = vmatpush1.bf16.msra.mxu0 0
    %270 = vmatprep.subr.bf16.mxu0 0
    %271 = vmatpush1.bf16.msra.mxu0 0
    %272 = vmatprep.subr.bf16.mxu0 0
    %273 = vmatpush1.bf16.msra.mxu0 0
    %274 = vmatprep.subr.bf16.mxu0 0
    %275 = vmatpush1.bf16.msra.mxu0 0
    %276 = vmatprep.subr.bf16.mxu0 0
    %277 = vmatpush1.bf16.msra.mxu0 0
    %278 = vmatprep.subr.bf16.mxu0 0
    %279 = vmatpush1.bf16.msra.mxu0 0
    %280 = vmatprep.subr.bf16.mxu0 %v244
    %281 = vmatpush1.bf16.msra.mxu0 %v243
    %282 = vmatprep.subr.bf16.mxu0 %v240
    %283 = vmatpush1.bf16.msra.mxu0 %v239
    %284 = vmatprep.subr.bf16.mxu0 0
    %285 = vmatpush2.bf16.msra.mxu0 0
    %286 = vmatprep.subr.bf16.mxu0 0
    %287 = vmatpush2.bf16.msra.mxu0 0
    %288 = vmatprep.subr.bf16.mxu0 0
    %289 = vmatpush2.bf16.msra.mxu0 0
    %290 = vmatprep.subr.bf16.mxu0 0
    %291 = vmatpush2.bf16.msra.mxu0 0
    %292 = vmatprep.subr.bf16.mxu0 0
    %293 = vmatpush2.bf16.msra.mxu0 0
    %294 = vmatprep.subr.bf16.mxu0 0
    %295 = vmatpush2.bf16.msra.mxu0 0
    %296 = vmatprep.subr.bf16.mxu0 0
    %297 = vmatpush2.bf16.msra.mxu0 0
    %298 = vmatprep.subr.bf16.mxu0 0
    %299 = vmatpush2.bf16.msra.mxu0 0
    %300 = vmatprep.mubr.bf16.mxu0 0
    %301 = vmatmul.mubr.bf16.gmra.mxu0 %v257
    %v302 = vpop.f32.mrf.mxu0
    %v303 = vadd.f32 %v178, %v302
    %v304 = vpop.f32.mrf.mxu0
    %v305 = vadd.f32 %v182, %v304
    %v306 = vpop.f32.mrf.mxu0
    %v307 = vadd.f32 %v178, %v306
    %v308 = vpop.f32.mrf.mxu0
    %v309 = vadd.f32 %v182, %v308
    %310 = vmatprep.mubr.bf16.mxu0 0
    %311 = vmatmul.mubr.bf16.gmra.mxu0 %v260
    %v312 = vpop.f32.mrf.mxu0
    %v313 = vadd.f32 %v178, %v312
    %v314 = vpop.f32.mrf.mxu0
    %v315 = vadd.f32 %v182, %v314
    %v316 = vpop.f32.mrf.mxu0
    %v317 = vadd.f32 %v178, %v316
    %v318 = vpop.f32.mrf.mxu0
    %v319 = vadd.f32 %v182, %v318
    %320 = vmatprep.mubr.bf16.mxu0 0
    %321 = vmatmul.mubr.bf16.gmra.mxu0 %v263
    %v322 = vpop.f32.mrf.mxu0
    %v323 = vadd.f32 %v178, %v322
    %v324 = vpop.f32.mrf.mxu0
    %v325 = vadd.f32 %v182, %v324
    %v326 = vpop.f32.mrf.mxu0
    %v327 = vadd.f32 %v178, %v326
    %v328 = vpop.f32.mrf.mxu0
    %v329 = vadd.f32 %v182, %v328
    %330 = vmatprep.mubr.bf16.mxu0 0
    %331 = vmatmul.mubr.bf16.gmra.mxu0 %v266
    %v332 = vpop.f32.mrf.mxu0
    %v333 = vadd.f32 %v178, %v332
    %v334 = vpop.f32.mrf.mxu0
    %v335 = vadd.f32 %v182, %v334
    %v336 = vpop.f32.mrf.mxu0
    %v337 = vadd.f32 %v178, %v336
    %v338 = vpop.f32.mrf.mxu0
    %v339 = vadd.f32 %v182, %v338
    %340 = vdwg.mxu0
    %341 = vmatprep.subr.bf16.mxu0 0
    %342 = vmatpush1.bf16.msra.mxu0 0
    %343 = vmatprep.subr.bf16.mxu0 0
    %344 = vmatpush1.bf16.msra.mxu0 0
    %345 = vmatprep.subr.bf16.mxu0 0
    %346 = vmatpush1.bf16.msra.mxu0 0
    %347 = vmatprep.subr.bf16.mxu0 0
    %348 = vmatpush1.bf16.msra.mxu0 0
    %349 = vmatprep.subr.bf16.mxu0 0
    %350 = vmatpush1.bf16.msra.mxu0 0
    %351 = vmatprep.subr.bf16.mxu0 0
    %352 = vmatpush1.bf16.msra.mxu0 0
    %353 = vmatprep.subr.bf16.mxu0 %v246
    %354 = vmatpush1.bf16.msra.mxu0 %v245
    %355 = vmatprep.subr.bf16.mxu0 %v242
    %356 = vmatpush1.bf16.msra.mxu0 %v241
    %357 = vmatprep.subr.bf16.mxu0 0
    %358 = vmatpush2.bf16.msra.mxu0 0
    %359 = vmatprep.subr.bf16.mxu0 0
    %360 = vmatpush2.bf16.msra.mxu0 0
    %361 = vmatprep.subr.bf16.mxu0 0
    %362 = vmatpush2.bf16.msra.mxu0 0
    %363 = vmatprep.subr.bf16.mxu0 0
    %364 = vmatpush2.bf16.msra.mxu0 0
    %365 = vmatprep.subr.bf16.mxu0 0
    %366 = vmatpush2.bf16.msra.mxu0 0
    %367 = vmatprep.subr.bf16.mxu0 0
    %368 = vmatpush2.bf16.msra.mxu0 0
    %369 = vmatprep.subr.bf16.mxu0 0
    %370 = vmatpush2.bf16.msra.mxu0 0
    %371 = vmatprep.subr.bf16.mxu0 0
    %372 = vmatpush2.bf16.msra.mxu0 0
    %373 = vmatprep.mubr.bf16.mxu0 0
    %374 = vmatmul.mubr.bf16.gmra.mxu0 %v257
    %v375 = vpop.f32.mrf.mxu0
    %v376 = vadd.f32 %v186, %v375
    %v377 = vpop.f32.mrf.mxu0
    %v378 = vadd.f32 %v190, %v377
    %v379 = vpop.f32.mrf.mxu0
    %v380 = vadd.f32 %v186, %v379
    %v381 = vpop.f32.mrf.mxu0
    %v382 = vadd.f32 %v190, %v381
    %383 = vmatprep.mubr.bf16.mxu0 0
    %384 = vmatmul.mubr.bf16.gmra.mxu0 %v260
    %v385 = vpop.f32.mrf.mxu0
    %v386 = vadd.f32 %v186, %v385
    %v387 = vpop.f32.mrf.mxu0
    %v388 = vadd.f32 %v190, %v387
    %v389 = vpop.f32.mrf.mxu0
    %v390 = vadd.f32 %v186, %v389
    %v391 = vpop.f32.mrf.mxu0
    %v392 = vadd.f32 %v190, %v391
    %393 = vmatprep.mubr.bf16.mxu0 0
    %394 = vmatmul.mubr.bf16.gmra.mxu0 %v263
    %v395 = vpop.f32.mrf.mxu0
    %v396 = vadd.f32 %v186, %v395
    %v397 = vpop.f32.mrf.mxu0
    %v398 = vadd.f32 %v190, %v397
    %v399 = vpop.f32.mrf.mxu0
    %v400 = vadd.f32 %v186, %v399
    %v401 = vpop.f32.mrf.mxu0
    %v402 = vadd.f32 %v190, %v401
    %403 = vmatprep.mubr.bf16.mxu0 0
    %404 = vmatmul.mubr.bf16.gmra.mxu0 %v266
    %v405 = vpop.f32.mrf.mxu0
    %v406 = vadd.f32 %v186, %v405
    %v407 = vpop.f32.mrf.mxu0
    %v408 = vadd.f32 %v190, %v407
    %v409 = vpop.f32.mrf.mxu0
    %v410 = vadd.f32 %v186, %v409
    %v411 = vpop.f32.mrf.mxu0
    %v412 = vadd.f32 %v190, %v411
    %413 = vdwg.mxu0
    %414 = vst [vmem:[#allocation8] sm:$0xff] %v303
    %415 = vst [vmem:[#allocation8 + $0x8] sm:$0xff] %v305
    %416 = vst [vmem:[#allocation8 + $0x10] sm:$0xff] %v376
    %417 = vst [vmem:[#allocation8 + $0x18] sm:$0xff] %v378
    %418 = vst [vmem:[#allocation8 + $0x20] sm:$0xff] %v307
    %419 = vst [vmem:[#allocation8 + $0x28] sm:$0xff] %v309
    %420 = vst [vmem:[#allocation8 + $0x30] sm:$0xff] %v380
    %421 = vst [vmem:[#allocation8 + $0x38] sm:$0xff] %v382
    %422 = vst [vmem:[#allocation8 + $0x40] sm:$0xff] %v313
    %423 = vst [vmem:[#allocation8 + $0x48] sm:$0xff] %v315
    %424 = vst [vmem:[#allocation8 + $0x50] sm:$0xff] %v386
    %425 = vst [vmem:[#allocation8 + $0x58] sm:$0xff] %v388
    %426 = vst [vmem:[#allocation8 + $0x60] sm:$0xff] %v317
    %427 = vst [vmem:[#allocation8 + $0x68] sm:$0xff] %v319
    %428 = vst [vmem:[#allocation8 + $0x70] sm:$0xff] %v390
    %429 = vst [vmem:[#allocation8 + $0x78] sm:$0xff] %v392
    %430 = vst [vmem:[#allocation8 + $0x80] sm:$0xff] %v323
    %431 = vst [vmem:[#allocation8 + $0x88] sm:$0xff] %v325
    %432 = vst [vmem:[#allocation8 + $0x90] sm:$0xff] %v396
    %433 = vst [vmem:[#allocation8 + $0x98] sm:$0xff] %v398
    %434 = vst [vmem:[#allocation8 + $0xa0] sm:$0xff] %v327
    %435 = vst [vmem:[#allocation8 + $0xa8] sm:$0xff] %v329
    %436 = vst [vmem:[#allocation8 + $0xb0] sm:$0xff] %v400
    %437 = vst [vmem:[#allocation8 + $0xb8] sm:$0xff] %v402
    %438 = vst [vmem:[#allocation8 + $0xc0] sm:$0xff] %v333
    %439 = vst [vmem:[#allocation8 + $0xc8] sm:$0xff] %v335
    %440 = vst [vmem:[#allocation8 + $0xd0] sm:$0xff] %v406
    %441 = vst [vmem:[#allocation8 + $0xd8] sm:$0xff] %v408
    %442 = vst [vmem:[#allocation8 + $0xe0] sm:$0xff] %v337
    %443 = vst [vmem:[#allocation8 + $0xe8] sm:$0xff] %v339
    %444 = vst [vmem:[#allocation8 + $0xf0] sm:$0xff] %v410
    %445 = vst [vmem:[#allocation8 + $0xf8] sm:$0xff] %v412
    %v446 = vld [vmem:[%s135] sm:$0xf]
    %v447 = vld [vmem:[%s135 + $0x4] sm:$0xf]
    %v448 = vld [vmem:[%s135 + $0x8] sm:$0xf]
    %v449 = vld [vmem:[%s135 + $0xc] sm:$0xf]
    %v450 = vld [vmem:[%s135 + $0x10] sm:$0xf]
    %v451 = vld [vmem:[%s135 + $0x14] sm:$0xf]
    %v452 = vld [vmem:[%s135 + $0x18] sm:$0xf]
    %v453 = vld [vmem:[%s135 + $0x1c] sm:$0xf]
    %v454 = vld [vmem:[#allocation12] sm:$0xff]
    %v455 = vld [vmem:[#allocation12 + $0x8] sm:$0xff]
    %v456 = vld [vmem:[#allocation12 + $0x10] sm:$0xff]
    %v457 = vld [vmem:[#allocation12 + $0x18] sm:$0xff]
    %v458 = vld [vmem:[#allocation12 + $0x20] sm:$0xff]
    %v459 = vld [vmem:[#allocation12 + $0x28] sm:$0xff]
    %v460 = vld [vmem:[#allocation12 + $0x30] sm:$0xff]
    %v461 = vld [vmem:[#allocation12 + $0x38] sm:$0xff]
    %v462 = vld [vmem:[#allocation15] sm:$0xf]
    %v464 = vlaneseq
    %v465 = vshrl.u32 %v464, 7
    %v466 = vsub.s32 0, %v465
    %v467 = vrot.slane %v462, %v466
    %v468 = vlaneseq
    %v469 = vshrl.u32 %v468, 7
    %v470 = vsub.s32 1, %v469
    %v471 = vrot.slane %v462, %v470
    %v472 = vlaneseq
    %v473 = vshrl.u32 %v472, 7
    %v474 = vsub.s32 2, %v473
    %v475 = vrot.slane %v462, %v474
    %v476 = vlaneseq
    %v477 = vshrl.u32 %v476, 7
    %v478 = vsub.s32 3, %v477
    %v479 = vrot.slane %v462, %v478
    %v492 = vunpack.c.l.b16 %v446
    %v493 = vunpack.c.l.b16 %v447
    %v494 = vunpack.c.l.b16 %v448
    %v495 = vunpack.c.l.b16 %v449
    %v496 = vunpack.c.l.b16 %v450
    %v497 = vunpack.c.l.b16 %v451
    %v498 = vunpack.c.l.b16 %v452
    %v499 = vunpack.c.l.b16 %v453
    %v500 = vpack.c.b16 %v493, %v492
    %v501 = vpack.c.b16 %v495, %v494
    %v502 = vpack.c.b16 %v497, %v496
    %v503 = vpack.c.b16 %v499, %v498
    %v512 = vunpack.c.l.b16 %v454
    %v513 = vunpack.c.h.b16 %v454
    %v514 = vunpack.c.l.b16 %v455
    %v515 = vunpack.c.h.b16 %v455
    %v516 = vunpack.c.l.b16 %v456
    %v517 = vunpack.c.h.b16 %v456
    %v518 = vunpack.c.l.b16 %v457
    %v519 = vunpack.c.h.b16 %v457
    %v520 = vunpack.c.l.b16 %v458
    %v521 = vunpack.c.h.b16 %v458
    %v522 = vunpack.c.l.b16 %v459
    %v523 = vunpack.c.h.b16 %v459
    %v524 = vunpack.c.l.b16 %v460
    %v525 = vunpack.c.h.b16 %v460
    %v526 = vunpack.c.l.b16 %v461
    %v527 = vunpack.c.h.b16 %v461
    %v528 = vpack.c.b16 %v516, %v512
    %v529 = vpack.c.b16 %v517, %v513
    %v530 = vpack.c.b16 %v518, %v514
    %v531 = vpack.c.b16 %v519, %v515
    %v532 = vpack.c.b16 %v524, %v520
    %v533 = vpack.c.b16 %v525, %v521
    %v534 = vpack.c.b16 %v526, %v522
    %v535 = vpack.c.b16 %v527, %v523
    %v545 = vsel %vm255, %v500, 0
    %v548 = vsel %vm255, %v501, 0
    %v551 = vsel %vm255, %v502, 0
    %v554 = vsel %vm255, %v503, 0
    %556 = vmatprep.subr.bf16.mxu0 0
    %557 = vmatpush1.bf16.msra.mxu0 0
    %558 = vmatprep.subr.bf16.mxu0 0
    %559 = vmatpush1.bf16.msra.mxu0 0
    %560 = vmatprep.subr.bf16.mxu0 0
    %561 = vmatpush1.bf16.msra.mxu0 0
    %562 = vmatprep.subr.bf16.mxu0 0
    %563 = vmatpush1.bf16.msra.mxu0 0
    %564 = vmatprep.subr.bf16.mxu0 0
    %565 = vmatpush1.bf16.msra.mxu0 0
    %566 = vmatprep.subr.bf16.mxu0 0
    %567 = vmatpush1.bf16.msra.mxu0 0
    %568 = vmatprep.subr.bf16.mxu0 %v533
    %569 = vmatpush1.bf16.msra.mxu0 %v532
    %570 = vmatprep.subr.bf16.mxu0 %v529
    %571 = vmatpush1.bf16.msra.mxu0 %v528
    %572 = vmatprep.subr.bf16.mxu0 0
    %573 = vmatpush2.bf16.msra.mxu0 0
    %574 = vmatprep.subr.bf16.mxu0 0
    %575 = vmatpush2.bf16.msra.mxu0 0
    %576 = vmatprep.subr.bf16.mxu0 0
    %577 = vmatpush2.bf16.msra.mxu0 0
    %578 = vmatprep.subr.bf16.mxu0 0
    %579 = vmatpush2.bf16.msra.mxu0 0
    %580 = vmatprep.subr.bf16.mxu0 0
    %581 = vmatpush2.bf16.msra.mxu0 0
    %582 = vmatprep.subr.bf16.mxu0 0
    %583 = vmatpush2.bf16.msra.mxu0 0
    %584 = vmatprep.subr.bf16.mxu0 0
    %585 = vmatpush2.bf16.msra.mxu0 0
    %586 = vmatprep.subr.bf16.mxu0 0
    %587 = vmatpush2.bf16.msra.mxu0 0
    %588 = vmatprep.mubr.bf16.mxu0 0
    %589 = vmatmul.mubr.bf16.gmra.mxu0 %v545
    %v590 = vpop.f32.mrf.mxu0
    %v591 = vadd.f32 %v467, %v590
    %v592 = vpop.f32.mrf.mxu0
    %v593 = vadd.f32 %v471, %v592
    %v594 = vpop.f32.mrf.mxu0
    %v595 = vadd.f32 %v467, %v594
    %v596 = vpop.f32.mrf.mxu0
    %v597 = vadd.f32 %v471, %v596
    %598 = vmatprep.mubr.bf16.mxu0 0
    %599 = vmatmul.mubr.bf16.gmra.mxu0 %v548
    %v600 = vpop.f32.mrf.mxu0
    %v601 = vadd.f32 %v467, %v600
    %v602 = vpop.f32.mrf.mxu0
    %v603 = vadd.f32 %v471, %v602
    %v604 = vpop.f32.mrf.mxu0
    %v605 = vadd.f32 %v467, %v604
    %v606 = vpop.f32.mrf.mxu0
    %v607 = vadd.f32 %v471, %v606
    %608 = vmatprep.mubr.bf16.mxu0 0
    %609 = vmatmul.mubr.bf16.gmra.mxu0 %v551
    %v610 = vpop.f32.mrf.mxu0
    %v611 = vadd.f32 %v467, %v610
    %v612 = vpop.f32.mrf.mxu0
    %v613 = vadd.f32 %v471, %v612
    %v614 = vpop.f32.mrf.mxu0
    %v615 = vadd.f32 %v467, %v614
    %v616 = vpop.f32.mrf.mxu0
    %v617 = vadd.f32 %v471, %v616
    %618 = vmatprep.mubr.bf16.mxu0 0
    %619 = vmatmul.mubr.bf16.gmra.mxu0 %v554
    %v620 = vpop.f32.mrf.mxu0
    %v621 = vadd.f32 %v467, %v620
    %v622 = vpop.f32.mrf.mxu0
    %v623 = vadd.f32 %v471, %v622
    %v624 = vpop.f32.mrf.mxu0
    %v625 = vadd.f32 %v467, %v624
    %v626 = vpop.f32.mrf.mxu0
    %v627 = vadd.f32 %v471, %v626
    %628 = vdwg.mxu0
    %629 = vmatprep.subr.bf16.mxu0 0
    %630 = vmatpush1.bf16.msra.mxu0 0
    %631 = vmatprep.subr.bf16.mxu0 0
    %632 = vmatpush1.bf16.msra.mxu0 0
    %633 = vmatprep.subr.bf16.mxu0 0
    %634 = vmatpush1.bf16.msra.mxu0 0
    %635 = vmatprep.subr.bf16.mxu0 0
    %636 = vmatpush1.bf16.msra.mxu0 0
    %637 = vmatprep.subr.bf16.mxu0 0
    %638 = vmatpush1.bf16.msra.mxu0 0
    %639 = vmatprep.subr.bf16.mxu0 0
    %640 = vmatpush1.bf16.msra.mxu0 0
    %641 = vmatprep.subr.bf16.mxu0 %v535
    %642 = vmatpush1.bf16.msra.mxu0 %v534
    %643 = vmatprep.subr.bf16.mxu0 %v531
    %644 = vmatpush1.bf16.msra.mxu0 %v530
    %645 = vmatprep.subr.bf16.mxu0 0
    %646 = vmatpush2.bf16.msra.mxu0 0
    %647 = vmatprep.subr.bf16.mxu0 0
    %648 = vmatpush2.bf16.msra.mxu0 0
    %649 = vmatprep.subr.bf16.mxu0 0
    %650 = vmatpush2.bf16.msra.mxu0 0
    %651 = vmatprep.subr.bf16.mxu0 0
    %652 = vmatpush2.bf16.msra.mxu0 0
    %653 = vmatprep.subr.bf16.mxu0 0
    %654 = vmatpush2.bf16.msra.mxu0 0
    %655 = vmatprep.subr.bf16.mxu0 0
    %656 = vmatpush2.bf16.msra.mxu0 0
    %657 = vmatprep.subr.bf16.mxu0 0
    %658 = vmatpush2.bf16.msra.mxu0 0
    %659 = vmatprep.subr.bf16.mxu0 0
    %660 = vmatpush2.bf16.msra.mxu0 0
    %661 = vmatprep.mubr.bf16.mxu0 0
    %662 = vmatmul.mubr.bf16.gmra.mxu0 %v545
    %v663 = vpop.f32.mrf.mxu0
    %v664 = vadd.f32 %v475, %v663
    %v665 = vpop.f32.mrf.mxu0
    %v666 = vadd.f32 %v479, %v665
    %v667 = vpop.f32.mrf.mxu0
    %v668 = vadd.f32 %v475, %v667
    %v669 = vpop.f32.mrf.mxu0
    %v670 = vadd.f32 %v479, %v669
    %671 = vmatprep.mubr.bf16.mxu0 0
    %672 = vmatmul.mubr.bf16.gmra.mxu0 %v548
    %v673 = vpop.f32.mrf.mxu0
    %v674 = vadd.f32 %v475, %v673
    %v675 = vpop.f32.mrf.mxu0
    %v676 = vadd.f32 %v479, %v675
    %v677 = vpop.f32.mrf.mxu0
    %v678 = vadd.f32 %v475, %v677
    %v679 = vpop.f32.mrf.mxu0
    %v680 = vadd.f32 %v479, %v679
    %681 = vmatprep.mubr.bf16.mxu0 0
    %682 = vmatmul.mubr.bf16.gmra.mxu0 %v551
    %v683 = vpop.f32.mrf.mxu0
    %v684 = vadd.f32 %v475, %v683
    %v685 = vpop.f32.mrf.mxu0
    %v686 = vadd.f32 %v479, %v685
    %v687 = vpop.f32.mrf.mxu0
    %v688 = vadd.f32 %v475, %v687
    %v689 = vpop.f32.mrf.mxu0
    %v690 = vadd.f32 %v479, %v689
    %691 = vmatprep.mubr.bf16.mxu0 0
    %692 = vmatmul.mubr.bf16.gmra.mxu0 %v554
    %v693 = vpop.f32.mrf.mxu0
    %v694 = vadd.f32 %v475, %v693
    %v695 = vpop.f32.mrf.mxu0
    %v696 = vadd.f32 %v479, %v695
    %v697 = vpop.f32.mrf.mxu0
    %v698 = vadd.f32 %v475, %v697
    %v699 = vpop.f32.mrf.mxu0
    %v700 = vadd.f32 %v479, %v699
    %701 = vdwg.mxu0
    %702 = vst [vmem:[#allocation9] sm:$0xff] %v591
    %703 = vst [vmem:[#allocation9 + $0x8] sm:$0xff] %v593
    %704 = vst [vmem:[#allocation9 + $0x10] sm:$0xff] %v664
    %705 = vst [vmem:[#allocation9 + $0x18] sm:$0xff] %v666
    %706 = vst [vmem:[#allocation9 + $0x20] sm:$0xff] %v595
    %707 = vst [vmem:[#allocation9 + $0x28] sm:$0xff] %v597
    %708 = vst [vmem:[#allocation9 + $0x30] sm:$0xff] %v668
    %709 = vst [vmem:[#allocation9 + $0x38] sm:$0xff] %v670
    %710 = vst [vmem:[#allocation9 + $0x40] sm:$0xff] %v601
    %711 = vst [vmem:[#allocation9 + $0x48] sm:$0xff] %v603
    %712 = vst [vmem:[#allocation9 + $0x50] sm:$0xff] %v674
    %713 = vst [vmem:[#allocation9 + $0x58] sm:$0xff] %v676
    %714 = vst [vmem:[#allocation9 + $0x60] sm:$0xff] %v605
    %715 = vst [vmem:[#allocation9 + $0x68] sm:$0xff] %v607
    %716 = vst [vmem:[#allocation9 + $0x70] sm:$0xff] %v678
    %717 = vst [vmem:[#allocation9 + $0x78] sm:$0xff] %v680
    %718 = vst [vmem:[#allocation9 + $0x80] sm:$0xff] %v611
    %719 = vst [vmem:[#allocation9 + $0x88] sm:$0xff] %v613
    %720 = vst [vmem:[#allocation9 + $0x90] sm:$0xff] %v684
    %721 = vst [vmem:[#allocation9 + $0x98] sm:$0xff] %v686
    %722 = vst [vmem:[#allocation9 + $0xa0] sm:$0xff] %v615
    %723 = vst [vmem:[#allocation9 + $0xa8] sm:$0xff] %v617
    %724 = vst [vmem:[#allocation9 + $0xb0] sm:$0xff] %v688
    %725 = vst [vmem:[#allocation9 + $0xb8] sm:$0xff] %v690
    %726 = vst [vmem:[#allocation9 + $0xc0] sm:$0xff] %v621
    %727 = vst [vmem:[#allocation9 + $0xc8] sm:$0xff] %v623
    %728 = vst [vmem:[#allocation9 + $0xd0] sm:$0xff] %v694
    %729 = vst [vmem:[#allocation9 + $0xd8] sm:$0xff] %v696
    %730 = vst [vmem:[#allocation9 + $0xe0] sm:$0xff] %v625
    %731 = vst [vmem:[#allocation9 + $0xe8] sm:$0xff] %v627
    %732 = vst [vmem:[#allocation9 + $0xf0] sm:$0xff] %v698
    %733 = vst [vmem:[#allocation9 + $0xf8] sm:$0xff] %v700
    %v734 = vld [vmem:[%s9] sm:$0xff]
    %v735 = vld [vmem:[%s9 + $0x8] sm:$0xff]
    %v736 = vld [vmem:[%s9 + $0x10] sm:$0xff]
    %v737 = vld [vmem:[%s9 + $0x18] sm:$0xff]
    %v738 = vld [vmem:[%s9 + $0x20] sm:$0xff]
    %v739 = vld [vmem:[%s9 + $0x28] sm:$0xff]
    %v740 = vld [vmem:[%s9 + $0x30] sm:$0xff]
    %v741 = vld [vmem:[%s9 + $0x38] sm:$0xff]
    %v742 = vld [vmem:[%s9 + $0x40] sm:$0xff]
    %v743 = vld [vmem:[%s9 + $0x48] sm:$0xff]
    %v744 = vld [vmem:[%s9 + $0x50] sm:$0xff]
    %v745 = vld [vmem:[%s9 + $0x58] sm:$0xff]
    %v746 = vld [vmem:[%s9 + $0x60] sm:$0xff]
    %v747 = vld [vmem:[%s9 + $0x68] sm:$0xff]
    %v748 = vld [vmem:[%s9 + $0x70] sm:$0xff]
    %v749 = vld [vmem:[%s9 + $0x78] sm:$0xff]
    %v750 = vld [vmem:[%s9 + $0x80] sm:$0xff]
    %v751 = vld [vmem:[%s9 + $0x88] sm:$0xff]
    %v752 = vld [vmem:[%s9 + $0x90] sm:$0xff]
    %v753 = vld [vmem:[%s9 + $0x98] sm:$0xff]
    %v754 = vld [vmem:[%s9 + $0xa0] sm:$0xff]
    %v755 = vld [vmem:[%s9 + $0xa8] sm:$0xff]
    %v756 = vld [vmem:[%s9 + $0xb0] sm:$0xff]
    %v757 = vld [vmem:[%s9 + $0xb8] sm:$0xff]
    %v758 = vld [vmem:[%s9 + $0xc0] sm:$0xff]
    %v759 = vld [vmem:[%s9 + $0xc8] sm:$0xff]
    %v760 = vld [vmem:[%s9 + $0xd0] sm:$0xff]
    %v761 = vld [vmem:[%s9 + $0xd8] sm:$0xff]
    %v762 = vld [vmem:[%s9 + $0xe0] sm:$0xff]
    %v763 = vld [vmem:[%s9 + $0xe8] sm:$0xff]
    %v764 = vld [vmem:[%s9 + $0xf0] sm:$0xff]
    %v765 = vld [vmem:[%s9 + $0xf8] sm:$0xff]
    %v766 = vld [vmem:[#allocation17] sm:$0xff]
    %v767 = vld [vmem:[#allocation17 + $0x8] sm:$0xff]
    %v768 = vld [vmem:[#allocation17 + $0x10] sm:$0xff]
    %v769 = vld [vmem:[#allocation17 + $0x18] sm:$0xff]
    %v770 = vld [vmem:[#allocation17 + $0x20] sm:$0xff]
    %v771 = vld [vmem:[#allocation17 + $0x28] sm:$0xff]
    %v772 = vld [vmem:[#allocation17 + $0x30] sm:$0xff]
    %v773 = vld [vmem:[#allocation17 + $0x38] sm:$0xff]
    %v774 = vld [vmem:[#allocation17 + $0x40] sm:$0xff]
    %v775 = vld [vmem:[#allocation17 + $0x48] sm:$0xff]
    %v776 = vld [vmem:[#allocation17 + $0x50] sm:$0xff]
    %v777 = vld [vmem:[#allocation17 + $0x58] sm:$0xff]
    %v778 = vld [vmem:[#allocation17 + $0x60] sm:$0xff]
    %v779 = vld [vmem:[#allocation17 + $0x68] sm:$0xff]
    %v780 = vld [vmem:[#allocation17 + $0x70] sm:$0xff]
    %v781 = vld [vmem:[#allocation17 + $0x78] sm:$0xff]
    %v782 = vld [vmem:[#allocation17 + $0x80] sm:$0xff]
    %v783 = vld [vmem:[#allocation17 + $0x88] sm:$0xff]
    %v784 = vld [vmem:[#allocation17 + $0x90] sm:$0xff]
    %v785 = vld [vmem:[#allocation17 + $0x98] sm:$0xff]
    %v786 = vld [vmem:[#allocation17 + $0xa0] sm:$0xff]
    %v787 = vld [vmem:[#allocation17 + $0xa8] sm:$0xff]
    %v788 = vld [vmem:[#allocation17 + $0xb0] sm:$0xff]
    %v789 = vld [vmem:[#allocation17 + $0xb8] sm:$0xff]
    %v790 = vld [vmem:[#allocation17 + $0xc0] sm:$0xff]
    %v791 = vld [vmem:[#allocation17 + $0xc8] sm:$0xff]
    %v792 = vld [vmem:[#allocation17 + $0xd0] sm:$0xff]
    %v793 = vld [vmem:[#allocation17 + $0xd8] sm:$0xff]
    %v794 = vld [vmem:[#allocation17 + $0xe0] sm:$0xff]
    %v795 = vld [vmem:[#allocation17 + $0xe8] sm:$0xff]
    %v796 = vld [vmem:[#allocation17 + $0xf0] sm:$0xff]
    %v797 = vld [vmem:[#allocation17 + $0xf8] sm:$0xff]
    %v798 = vld [vmem:[#allocation2] sm:$0xff]
    %v799 = vld [vmem:[#allocation3] sm:$0xff]
    %v800 = vld [vmem:[#allocation4] sm:$0xff]
    %v801 = vld [vmem:[#allocation5] sm:$0xff]
    %v802 = vld [vmem:[#allocation6] sm:$0xff]
    %v803 = vld [vmem:[#allocation7] sm:$0xff]
    %s804 = smul.u32 0, 4
    %s805 = smul.addr %s804, 8
    %s806 = scalar_lea.vmem [#allocation8], %s805
    %v807 = vld [vmem:[%s806] sm:$0xff]
    %v808 = vld [vmem:[%s806 + $0x8] sm:$0xff]
    %v809 = vld [vmem:[%s806 + $0x10] sm:$0xff]
    %v810 = vld [vmem:[%s806 + $0x18] sm:$0xff]
    %v811 = vpack.c.bf16 %v798, %v798
    %v844 = vunpack.c.l.b16 %v734
    %v845 = vunpack.c.h.b16 %v734
    %v846 = vunpack.c.l.b16 %v735
    %v847 = vunpack.c.h.b16 %v735
    %v848 = vunpack.c.l.b16 %v736
    %v849 = vunpack.c.h.b16 %v736
    %v850 = vunpack.c.l.b16 %v737
    %v851 = vunpack.c.h.b16 %v737
    %v852 = vunpack.c.l.b16 %v738
    %v853 = vunpack.c.h.b16 %v738
    %v854 = vunpack.c.l.b16 %v739
    %v855 = vunpack.c.h.b16 %v739
    %v856 = vunpack.c.l.b16 %v740
    %v857 = vunpack.c.h.b16 %v740
    %v858 = vunpack.c.l.b16 %v741
    %v859 = vunpack.c.h.b16 %v741
    %v860 = vunpack.c.l.b16 %v742
    %v861 = vunpack.c.h.b16 %v742
    %v862 = vunpack.c.l.b16 %v743
    %v863 = vunpack.c.h.b16 %v743
    %v864 = vunpack.c.l.b16 %v744
    %v865 = vunpack.c.h.b16 %v744
    %v866 = vunpack.c.l.b16 %v745
    %v867 = vunpack.c.h.b16 %v745
    %v868 = vunpack.c.l.b16 %v746
    %v869 = vunpack.c.h.b16 %v746
    %v870 = vunpack.c.l.b16 %v747
    %v871 = vunpack.c.h.b16 %v747
    %v872 = vunpack.c.l.b16 %v748
    %v873 = vunpack.c.h.b16 %v748
    %v874 = vunpack.c.l.b16 %v749
    %v875 = vunpack.c.h.b16 %v749
    %v876 = vunpack.c.l.b16 %v750
    %v877 = vunpack.c.h.b16 %v750
    %v878 = vunpack.c.l.b16 %v751
    %v879 = vunpack.c.h.b16 %v751
    %v880 = vunpack.c.l.b16 %v752
    %v881 = vunpack.c.h.b16 %v752
    %v882 = vunpack.c.l.b16 %v753
    %v883 = vunpack.c.h.b16 %v753
    %v884 = vunpack.c.l.b16 %v754
    %v885 = vunpack.c.h.b16 %v754
    %v886 = vunpack.c.l.b16 %v755
    %v887 = vunpack.c.h.b16 %v755
    %v888 = vunpack.c.l.b16 %v756
    %v889 = vunpack.c.h.b16 %v756
    %v890 = vunpack.c.l.b16 %v757
    %v891 = vunpack.c.h.b16 %v757
    %v892 = vunpack.c.l.b16 %v758
    %v893 = vunpack.c.h.b16 %v758
    %v894 = vunpack.c.l.b16 %v759
    %v895 = vunpack.c.h.b16 %v759
    %v896 = vunpack.c.l.b16 %v760
    %v897 = vunpack.c.h.b16 %v760
    %v898 = vunpack.c.l.b16 %v761
    %v899 = vunpack.c.h.b16 %v761
    %v900 = vunpack.c.l.b16 %v762
    %v901 = vunpack.c.h.b16 %v762
    %v902 = vunpack.c.l.b16 %v763
    %v903 = vunpack.c.h.b16 %v763
    %v904 = vunpack.c.l.b16 %v764
    %v905 = vunpack.c.h.b16 %v764
    %v906 = vunpack.c.l.b16 %v765
    %v907 = vunpack.c.h.b16 %v765
    %v908 = vpack.c.b16 %v848, %v844
    %v909 = vpack.c.b16 %v849, %v845
    %v910 = vpack.c.b16 %v850, %v846
    %v911 = vpack.c.b16 %v851, %v847
    %v912 = vpack.c.b16 %v856, %v852
    %v913 = vpack.c.b16 %v857, %v853
    %v914 = vpack.c.b16 %v858, %v854
    %v915 = vpack.c.b16 %v859, %v855
    %v916 = vpack.c.b16 %v864, %v860
    %v917 = vpack.c.b16 %v865, %v861
    %v918 = vpack.c.b16 %v866, %v862
    %v919 = vpack.c.b16 %v867, %v863
    %v920 = vpack.c.b16 %v872, %v868
    %v921 = vpack.c.b16 %v873, %v869
    %v922 = vpack.c.b16 %v874, %v870
    %v923 = vpack.c.b16 %v875, %v871
    %v924 = vpack.c.b16 %v880, %v876
    %v925 = vpack.c.b16 %v881, %v877
    %v926 = vpack.c.b16 %v882, %v878
    %v927 = vpack.c.b16 %v883, %v879
    %v928 = vpack.c.b16 %v888, %v884
    %v929 = vpack.c.b16 %v889, %v885
    %v930 = vpack.c.b16 %v890, %v886
    %v931 = vpack.c.b16 %v891, %v887
    %v932 = vpack.c.b16 %v896, %v892
    %v933 = vpack.c.b16 %v897, %v893
    %v934 = vpack.c.b16 %v898, %v894
    %v935 = vpack.c.b16 %v899, %v895
    %v936 = vpack.c.b16 %v904, %v900
    %v937 = vpack.c.b16 %v905, %v901
    %v938 = vpack.c.b16 %v906, %v902
    %v939 = vpack.c.b16 %v907, %v903
    %972 = vmatprep.subr.bf16.mxu0 %v937
    %973 = vmatpush1.bf16.msra.mxu0 %v936
    %974 = vmatprep.subr.bf16.mxu0 %v933
    %975 = vmatpush1.bf16.msra.mxu0 %v932
    %976 = vmatprep.subr.bf16.mxu0 %v929
    %977 = vmatpush1.bf16.msra.mxu0 %v928
    %978 = vmatprep.subr.bf16.mxu0 %v925
    %979 = vmatpush1.bf16.msra.mxu0 %v924
    %980 = vmatprep.subr.bf16.mxu0 %v921
    %981 = vmatpush1.bf16.msra.mxu0 %v920
    %982 = vmatprep.subr.bf16.mxu0 %v917
    %983 = vmatpush1.bf16.msra.mxu0 %v916
    %984 = vmatprep.subr.bf16.mxu0 %v913
    %985 = vmatpush1.bf16.msra.mxu0 %v912
    %986 = vmatprep.subr.bf16.mxu0 %v909
    %987 = vmatpush1.bf16.msra.mxu0 %v908
    %988 = vmatprep.subr.bf16.mxu0 0
    %989 = vmatpush2.bf16.msra.mxu0 0
    %990 = vmatprep.subr.bf16.mxu0 0
    %991 = vmatpush2.bf16.msra.mxu0 0
    %992 = vmatprep.subr.bf16.mxu0 0
    %993 = vmatpush2.bf16.msra.mxu0 0
    %994 = vmatprep.subr.bf16.mxu0 0
    %995 = vmatpush2.bf16.msra.mxu0 0
    %996 = vmatprep.subr.bf16.mxu0 0
    %997 = vmatpush2.bf16.msra.mxu0 0
    %998 = vmatprep.subr.bf16.mxu0 0
    %999 = vmatpush2.bf16.msra.mxu0 0
    %1000 = vmatprep.subr.bf16.mxu0 0
    %1001 = vmatpush2.bf16.msra.mxu0 0
    %1002 = vmatprep.subr.bf16.mxu0 0
    %1003 = vmatpush2.bf16.msra.mxu0 0
    %1004 = vmatprep.mubr.bf16.mxu0 0
    %1005 = vmatmul.mubr.bf16.gmra.mxu0 %v811
    %v1006 = vpop.f32.mrf.mxu0
    %v1007 = vadd.f32 0.0, %v1006
    %v1008 = vpop.f32.mrf.mxu0
    %v1009 = vadd.f32 0.0, %v1008
    %v1010 = vpop.f32.mrf.mxu0
    %v1011 = vpop.f32.mrf.mxu0
    %1012 = vdwg.mxu0
    %1013 = vmatprep.subr.bf16.mxu0 %v939
    %1014 = vmatpush1.bf16.msra.mxu0 %v938
    %1015 = vmatprep.subr.bf16.mxu0 %v935
    %1016 = vmatpush1.bf16.msra.mxu0 %v934
    %1017 = vmatprep.subr.bf16.mxu0 %v931
    %1018 = vmatpush1.bf16.msra.mxu0 %v930
    %1019 = vmatprep.subr.bf16.mxu0 %v927
    %1020 = vmatpush1.bf16.msra.mxu0 %v926
    %1021 = vmatprep.subr.bf16.mxu0 %v923
    %1022 = vmatpush1.bf16.msra.mxu0 %v922
    %1023 = vmatprep.subr.bf16.mxu0 %v919
    %1024 = vmatpush1.bf16.msra.mxu0 %v918
    %1025 = vmatprep.subr.bf16.mxu0 %v915
    %1026 = vmatpush1.bf16.msra.mxu0 %v914
    %1027 = vmatprep.subr.bf16.mxu0 %v911
    %1028 = vmatpush1.bf16.msra.mxu0 %v910
    %1029 = vmatprep.subr.bf16.mxu0 0
    %1030 = vmatpush2.bf16.msra.mxu0 0
    %1031 = vmatprep.subr.bf16.mxu0 0
    %1032 = vmatpush2.bf16.msra.mxu0 0
    %1033 = vmatprep.subr.bf16.mxu0 0
    %1034 = vmatpush2.bf16.msra.mxu0 0
    %1035 = vmatprep.subr.bf16.mxu0 0
    %1036 = vmatpush2.bf16.msra.mxu0 0
    %1037 = vmatprep.subr.bf16.mxu0 0
    %1038 = vmatpush2.bf16.msra.mxu0 0
    %1039 = vmatprep.subr.bf16.mxu0 0
    %1040 = vmatpush2.bf16.msra.mxu0 0
    %1041 = vmatprep.subr.bf16.mxu0 0
    %1042 = vmatpush2.bf16.msra.mxu0 0
    %1043 = vmatprep.subr.bf16.mxu0 0
    %1044 = vmatpush2.bf16.msra.mxu0 0
    %1045 = vmatprep.mubr.bf16.mxu0 0
    %1046 = vmatmul.mubr.bf16.gmra.mxu0 %v811
    %v1047 = vpop.f32.mrf.mxu0
    %v1048 = vadd.f32 0.0, %v1047
    %v1049 = vpop.f32.mrf.mxu0
    %v1050 = vadd.f32 0.0, %v1049
    %v1051 = vpop.f32.mrf.mxu0
    %v1052 = vpop.f32.mrf.mxu0
    %1053 = vdwg.mxu0
    %v1054 = vadd.f32 %v807, %v1007
    %v1055 = vadd.f32 %v808, %v1009
    %v1056 = vadd.f32 %v809, %v1048
    %v1057 = vadd.f32 %v810, %v1050
    %s1058 = smul.u32 7, 4
    %s1059 = smul.addr %s1058, 8
    %s1060 = scalar_lea.vmem [#allocation9], %s1059
    %v1061 = vld [vmem:[%s1060] sm:$0xff]
    %v1062 = vld [vmem:[%s1060 + $0x8] sm:$0xff]
    %v1063 = vld [vmem:[%s1060 + $0x10] sm:$0xff]
    %v1064 = vld [vmem:[%s1060 + $0x18] sm:$0xff]
    %v1065 = vpack.c.bf16 %v801, %v801
    %v1098 = vunpack.c.l.b16 %v766
    %v1099 = vunpack.c.h.b16 %v766
    %v1100 = vunpack.c.l.b16 %v767
    %v1101 = vunpack.c.h.b16 %v767
    %v1102 = vunpack.c.l.b16 %v768
    %v1103 = vunpack.c.h.b16 %v768
    %v1104 = vunpack.c.l.b16 %v769
    %v1105 = vunpack.c.h.b16 %v769
    %v1106 = vunpack.c.l.b16 %v770
    %v1107 = vunpack.c.h.b16 %v770
    %v1108 = vunpack.c.l.b16 %v771
    %v1109 = vunpack.c.h.b16 %v771
    %v1110 = vunpack.c.l.b16 %v772
    %v1111 = vunpack.c.h.b16 %v772
    %v1112 = vunpack.c.l.b16 %v773
    %v1113 = vunpack.c.h.b16 %v773
    %v1114 = vunpack.c.l.b16 %v774
    %v1115 = vunpack.c.h.b16 %v774
    %v1116 = vunpack.c.l.b16 %v775
    %v1117 = vunpack.c.h.b16 %v775
    %v1118 = vunpack.c.l.b16 %v776
    %v1119 = vunpack.c.h.b16 %v776
    %v1120 = vunpack.c.l.b16 %v777
    %v1121 = vunpack.c.h.b16 %v777
    %v1122 = vunpack.c.l.b16 %v778
    %v1123 = vunpack.c.h.b16 %v778
    %v1124 = vunpack.c.l.b16 %v779
    %v1125 = vunpack.c.h.b16 %v779
    %v1126 = vunpack.c.l.b16 %v780
    %v1127 = vunpack.c.h.b16 %v780
    %v1128 = vunpack.c.l.b16 %v781
    %v1129 = vunpack.c.h.b16 %v781
    %v1130 = vunpack.c.l.b16 %v782
    %v1131 = vunpack.c.h.b16 %v782
    %v1132 = vunpack.c.l.b16 %v783
    %v1133 = vunpack.c.h.b16 %v783
    %v1134 = vunpack.c.l.b16 %v784
    %v1135 = vunpack.c.h.b16 %v784
    %v1136 = vunpack.c.l.b16 %v785
    %v1137 = vunpack.c.h.b16 %v785
    %v1138 = vunpack.c.l.b16 %v786
    %v1139 = vunpack.c.h.b16 %v786
    %v1140 = vunpack.c.l.b16 %v787
    %v1141 = vunpack.c.h.b16 %v787
    %v1142 = vunpack.c.l.b16 %v788
    %v1143 = vunpack.c.h.b16 %v788
    %v1144 = vunpack.c.l.b16 %v789
    %v1145 = vunpack.c.h.b16 %v789
    %v1146 = vunpack.c.l.b16 %v790
    %v1147 = vunpack.c.h.b16 %v790
    %v1148 = vunpack.c.l.b16 %v791
    %v1149 = vunpack.c.h.b16 %v791
    %v1150 = vunpack.c.l.b16 %v792
    %v1151 = vunpack.c.h.b16 %v792
    %v1152 = vunpack.c.l.b16 %v793
    %v1153 = vunpack.c.h.b16 %v793
    %v1154 = vunpack.c.l.b16 %v794
    %v1155 = vunpack.c.h.b16 %v794
    %v1156 = vunpack.c.l.b16 %v795
    %v1157 = vunpack.c.h.b16 %v795
    %v1158 = vunpack.c.l.b16 %v796
    %v1159 = vunpack.c.h.b16 %v796
    %v1160 = vunpack.c.l.b16 %v797
    %v1161 = vunpack.c.h.b16 %v797
    %v1162 = vpack.c.b16 %v1102, %v1098
    %v1163 = vpack.c.b16 %v1103, %v1099
    %v1164 = vpack.c.b16 %v1104, %v1100
    %v1165 = vpack.c.b16 %v1105, %v1101
    %v1166 = vpack.c.b16 %v1110, %v1106
    %v1167 = vpack.c.b16 %v1111, %v1107
    %v1168 = vpack.c.b16 %v1112, %v1108
    %v1169 = vpack.c.b16 %v1113, %v1109
    %v1170 = vpack.c.b16 %v1118, %v1114
    %v1171 = vpack.c.b16 %v1119, %v1115
    %v1172 = vpack.c.b16 %v1120, %v1116
    %v1173 = vpack.c.b16 %v1121, %v1117
    %v1174 = vpack.c.b16 %v1126, %v1122
    %v1175 = vpack.c.b16 %v1127, %v1123
    %v1176 = vpack.c.b16 %v1128, %v1124
    %v1177 = vpack.c.b16 %v1129, %v1125
    %v1178 = vpack.c.b16 %v1134, %v1130
    %v1179 = vpack.c.b16 %v1135, %v1131
    %v1180 = vpack.c.b16 %v1136, %v1132
    %v1181 = vpack.c.b16 %v1137, %v1133
    %v1182 = vpack.c.b16 %v1142, %v1138
    %v1183 = vpack.c.b16 %v1143, %v1139
    %v1184 = vpack.c.b16 %v1144, %v1140
    %v1185 = vpack.c.b16 %v1145, %v1141
    %v1186 = vpack.c.b16 %v1150, %v1146
    %v1187 = vpack.c.b16 %v1151, %v1147
    %v1188 = vpack.c.b16 %v1152, %v1148
    %v1189 = vpack.c.b16 %v1153, %v1149
    %v1190 = vpack.c.b16 %v1158, %v1154
    %v1191 = vpack.c.b16 %v1159, %v1155
    %v1192 = vpack.c.b16 %v1160, %v1156
    %v1193 = vpack.c.b16 %v1161, %v1157
    %1226 = vmatprep.subr.bf16.mxu0 %v1191
    %1227 = vmatpush1.bf16.msra.mxu0 %v1190
    %1228 = vmatprep.subr.bf16.mxu0 %v1187
    %1229 = vmatpush1.bf16.msra.mxu0 %v1186
    %1230 = vmatprep.subr.bf16.mxu0 %v1183
    %1231 = vmatpush1.bf16.msra.mxu0 %v1182
    %1232 = vmatprep.subr.bf16.mxu0 %v1179
    %1233 = vmatpush1.bf16.msra.mxu0 %v1178
    %1234 = vmatprep.subr.bf16.mxu0 %v1175
    %1235 = vmatpush1.bf16.msra.mxu0 %v1174
    %1236 = vmatprep.subr.bf16.mxu0 %v1171
    %1237 = vmatpush1.bf16.msra.mxu0 %v1170
    %1238 = vmatprep.subr.bf16.mxu0 %v1167
    %1239 = vmatpush1.bf16.msra.mxu0 %v1166
    %1240 = vmatprep.subr.bf16.mxu0 %v1163
    %1241 = vmatpush1.bf16.msra.mxu0 %v1162
    %1242 = vmatprep.subr.bf16.mxu0 0
    %1243 = vmatpush2.bf16.msra.mxu0 0
    %1244 = vmatprep.subr.bf16.mxu0 0
    %1245 = vmatpush2.bf16.msra.mxu0 0
    %1246 = vmatprep.subr.bf16.mxu0 0
    %1247 = vmatpush2.bf16.msra.mxu0 0
    %1248 = vmatprep.subr.bf16.mxu0 0
    %1249 = vmatpush2.bf16.msra.mxu0 0
    %1250 = vmatprep.subr.bf16.mxu0 0
    %1251 = vmatpush2.bf16.msra.mxu0 0
    %1252 = vmatprep.subr.bf16.mxu0 0
    %1253 = vmatpush2.bf16.msra.mxu0 0
    %1254 = vmatprep.subr.bf16.mxu0 0
    %1255 = vmatpush2.bf16.msra.mxu0 0
    %1256 = vmatprep.subr.bf16.mxu0 0
    %1257 = vmatpush2.bf16.msra.mxu0 0
    %1258 = vmatprep.mubr.bf16.mxu0 0
    %1259 = vmatmul.mubr.bf16.gmra.mxu0 %v1065
    %v1260 = vpop.f32.mrf.mxu0
    %v1261 = vadd.f32 0.0, %v1260
    %v1262 = vpop.f32.mrf.mxu0
    %v1263 = vadd.f32 0.0, %v1262
    %v1264 = vpop.f32.mrf.mxu0
    %v1265 = vpop.f32.mrf.mxu0
    %1266 = vdwg.mxu0
    %1267 = vmatprep.subr.bf16.mxu0 %v1193
    %1268 = vmatpush1.bf16.msra.mxu0 %v1192
    %1269 = vmatprep.subr.bf16.mxu0 %v1189
    %1270 = vmatpush1.bf16.msra.mxu0 %v1188
    %1271 = vmatprep.subr.bf16.mxu0 %v1185
    %1272 = vmatpush1.bf16.msra.mxu0 %v1184
    %1273 = vmatprep.subr.bf16.mxu0 %v1181
    %1274 = vmatpush1.bf16.msra.mxu0 %v1180
    %1275 = vmatprep.subr.bf16.mxu0 %v1177
    %1276 = vmatpush1.bf16.msra.mxu0 %v1176
    %1277 = vmatprep.subr.bf16.mxu0 %v1173
    %1278 = vmatpush1.bf16.msra.mxu0 %v1172
    %1279 = vmatprep.subr.bf16.mxu0 %v1169
    %1280 = vmatpush1.bf16.msra.mxu0 %v1168
    %1281 = vmatprep.subr.bf16.mxu0 %v1165
    %1282 = vmatpush1.bf16.msra.mxu0 %v1164
    %1283 = vmatprep.subr.bf16.mxu0 0
    %1284 = vmatpush2.bf16.msra.mxu0 0
    %1285 = vmatprep.subr.bf16.mxu0 0
    %1286 = vmatpush2.bf16.msra.mxu0 0
    %1287 = vmatprep.subr.bf16.mxu0 0
    %1288 = vmatpush2.bf16.msra.mxu0 0
    %1289 = vmatprep.subr.bf16.mxu0 0
    %1290 = vmatpush2.bf16.msra.mxu0 0
    %1291 = vmatprep.subr.bf16.mxu0 0
    %1292 = vmatpush2.bf16.msra.mxu0 0
    %1293 = vmatprep.subr.bf16.mxu0 0
    %1294 = vmatpush2.bf16.msra.mxu0 0
    %1295 = vmatprep.subr.bf16.mxu0 0
    %1296 = vmatpush2.bf16.msra.mxu0 0
    %1297 = vmatprep.subr.bf16.mxu0 0
    %1298 = vmatpush2.bf16.msra.mxu0 0
    %1299 = vmatprep.mubr.bf16.mxu0 0
    %1300 = vmatmul.mubr.bf16.gmra.mxu0 %v1065
    %v1301 = vpop.f32.mrf.mxu0
    %v1302 = vadd.f32 0.0, %v1301
    %v1303 = vpop.f32.mrf.mxu0
    %v1304 = vadd.f32 0.0, %v1303
    %v1305 = vpop.f32.mrf.mxu0
    %v1306 = vpop.f32.mrf.mxu0
    %1307 = vdwg.mxu0
    %v1308 = vadd.f32 %v1061, %v1261
    %v1309 = vadd.f32 %v1062, %v1263
    %v1310 = vadd.f32 %v1063, %v1302
    %v1311 = vadd.f32 %v1064, %v1304
    %v1312 = vld [vmem:[%s2] sm:$0xff]
    %s1313 = scalar_lea.vmem %s143, 56
    %v1314 = vld [vmem:[%s1313] sm:$0xff]
    %v1315 = vxor.u32 %v1054, 2147483648
    %v1316 = vmul.f32 %v1315, 1.442695
    %v1317 = vpow.pop %v1316
    %v1318 = vadd.f32 %v1317, 1.0
    %v1319 = vrcp.pop %v1318
    %v1320 = vmul.f32 1.0, %v1319
    %v1321 = vxor.u32 %v1055, 2147483648
    %v1322 = vmul.f32 %v1321, 1.442695
    %v1323 = vpow.pop %v1322
    %v1324 = vadd.f32 %v1323, 1.0
    %v1325 = vrcp.pop %v1324
    %v1326 = vmul.f32 1.0, %v1325
    %v1327 = vtanh.pop %v1056
    %v1328 = vxor.u32 %v1057, 2147483648
    %v1329 = vmul.f32 %v1328, 1.442695
    %v1330 = vpow.pop %v1329
    %v1331 = vadd.f32 %v1330, 1.0
    %v1332 = vrcp.pop %v1331
    %v1333 = vmul.f32 1.0, %v1332
    %v1334 = vmul.f32 %v1326, %v799
    %v1335 = vmul.f32 %v1320, %v1327
    %v1336 = vadd.f32 %v1334, %v1335
    %v1337 = vtanh.pop %v1336
    %v1338 = vmul.f32 %v1333, %v1337
    %1340 = vset.pattern.permute.xlu0 0
    %1341 = vperm.xlu0 %1340, %v1312
    %v1342 = vpop.permute.xlu0 %1341
    %v1344 = vmul.f32 %v1342, %v1338
    %v1345 = vadd.f32 %v800, %v1344
    %v1346 = vxor.u32 %v1308, 2147483648
    %v1347 = vmul.f32 %v1346, 1.442695
    %v1348 = vpow.pop %v1347
    %v1349 = vadd.f32 %v1348, 1.0
    %v1350 = vrcp.pop %v1349
    %v1351 = vmul.f32 1.0, %v1350
    %v1352 = vxor.u32 %v1309, 2147483648
    %v1353 = vmul.f32 %v1352, 1.442695
    %v1354 = vpow.pop %v1353
    %v1355 = vadd.f32 %v1354, 1.0
    %v1356 = vrcp.pop %v1355
    %v1357 = vmul.f32 1.0, %v1356
    %v1358 = vtanh.pop %v1310
    %v1359 = vxor.u32 %v1311, 2147483648
    %v1360 = vmul.f32 %v1359, 1.442695
    %v1361 = vpow.pop %v1360
    %v1362 = vadd.f32 %v1361, 1.0
    %v1363 = vrcp.pop %v1362
    %v1364 = vmul.f32 1.0, %v1363
    %v1365 = vmul.f32 %v1357, %v802
    %v1366 = vmul.f32 %v1351, %v1358
    %v1367 = vadd.f32 %v1365, %v1366
    %v1368 = vtanh.pop %v1367
    %v1369 = vmul.f32 %v1364, %v1368
    %1371 = vset.pattern.permute.xlu0 0
    %1372 = vperm.xlu0 %1371, %v1314
    %v1373 = vpop.permute.xlu0 %1372
    %v1375 = vmul.f32 %v1373, %v1369
    %v1376 = vmul.f32 %v1373, %v1367
    %v1377 = vadd.f32 %v803, %v1375
    %s1378 = smul.u32 1, 4
    %s1379 = smul.addr %s1378, 8
    %s1380 = scalar_lea.vmem [#allocation8], %s1379
    %v1381 = vld [vmem:[%s1380] sm:$0xff]
    %v1382 = vld [vmem:[%s1380 + $0x8] sm:$0xff]
    %v1383 = vld [vmem:[%s1380 + $0x10] sm:$0xff]
    %v1384 = vld [vmem:[%s1380 + $0x18] sm:$0xff]
    %v1385 = vpack.c.bf16 %v1338, %v1338
    %1386 = vmatprep.subr.bf16.mxu0 %v937
    %1387 = vmatpush1.bf16.msra.mxu0 %v936
    %1388 = vmatprep.subr.bf16.mxu0 %v933
    %1389 = vmatpush1.bf16.msra.mxu0 %v932
    %1390 = vmatprep.subr.bf16.mxu0 %v929
    %1391 = vmatpush1.bf16.msra.mxu0 %v928
    %1392 = vmatprep.subr.bf16.mxu0 %v925
    %1393 = vmatpush1.bf16.msra.mxu0 %v924
    %1394 = vmatprep.subr.bf16.mxu0 %v921
    %1395 = vmatpush1.bf16.msra.mxu0 %v920
    %1396 = vmatprep.subr.bf16.mxu0 %v917
    %1397 = vmatpush1.bf16.msra.mxu0 %v916
    %1398 = vmatprep.subr.bf16.mxu0 %v913
    %1399 = vmatpush1.bf16.msra.mxu0 %v912
    %1400 = vmatprep.subr.bf16.mxu0 %v909
    %1401 = vmatpush1.bf16.msra.mxu0 %v908
    %1402 = vmatprep.subr.bf16.mxu0 0
    %1403 = vmatpush2.bf16.msra.mxu0 0
    %1404 = vmatprep.subr.bf16.mxu0 0
    %1405 = vmatpush2.bf16.msra.mxu0 0
    %1406 = vmatprep.subr.bf16.mxu0 0
    %1407 = vmatpush2.bf16.msra.mxu0 0
    %1408 = vmatprep.subr.bf16.mxu0 0
    %1409 = vmatpush2.bf16.msra.mxu0 0
    %1410 = vmatprep.subr.bf16.mxu0 0
    %1411 = vmatpush2.bf16.msra.mxu0 0
    %1412 = vmatprep.subr.bf16.mxu0 0
    %1413 = vmatpush2.bf16.msra.mxu0 0
    %1414 = vmatprep.subr.bf16.mxu0 0
    %1415 = vmatpush2.bf16.msra.mxu0 0
    %1416 = vmatprep.subr.bf16.mxu0 0
    %1417 = vmatpush2.bf16.msra.mxu0 0
    %1418 = vmatprep.mubr.bf16.mxu0 0
    %1419 = vmatmul.mubr.bf16.gmra.mxu0 %v1385
    %v1420 = vpop.f32.mrf.mxu0
    %v1421 = vadd.f32 0.0, %v1420
    %v1422 = vpop.f32.mrf.mxu0
    %v1423 = vadd.f32 0.0, %v1422
    %v1424 = vpop.f32.mrf.mxu0
    %v1425 = vpop.f32.mrf.mxu0
    %1426 = vdwg.mxu0
    %1427 = vmatprep.subr.bf16.mxu0 %v939
    %1428 = vmatpush1.bf16.msra.mxu0 %v938
    %1429 = vmatprep.subr.bf16.mxu0 %v935
    %1430 = vmatpush1.bf16.msra.mxu0 %v934
    %1431 = vmatprep.subr.bf16.mxu0 %v931
    %1432 = vmatpush1.bf16.msra.mxu0 %v930
    %1433 = vmatprep.subr.bf16.mxu0 %v927
    %1434 = vmatpush1.bf16.msra.mxu0 %v926
    %1435 = vmatprep.subr.bf16.mxu0 %v923
    %1436 = vmatpush1.bf16.msra.mxu0 %v922
    %1437 = vmatprep.subr.bf16.mxu0 %v919
    %1438 = vmatpush1.bf16.msra.mxu0 %v918
    %1439 = vmatprep.subr.bf16.mxu0 %v915
    %1440 = vmatpush1.bf16.msra.mxu0 %v914
    %1441 = vmatprep.subr.bf16.mxu0 %v911
    %1442 = vmatpush1.bf16.msra.mxu0 %v910
    %1443 = vmatprep.subr.bf16.mxu0 0
    %1444 = vmatpush2.bf16.msra.mxu0 0
    %1445 = vmatprep.subr.bf16.mxu0 0
    %1446 = vmatpush2.bf16.msra.mxu0 0
    %1447 = vmatprep.subr.bf16.mxu0 0
    %1448 = vmatpush2.bf16.msra.mxu0 0
    %1449 = vmatprep.subr.bf16.mxu0 0
    %1450 = vmatpush2.bf16.msra.mxu0 0
    %1451 = vmatprep.subr.bf16.mxu0 0
    %1452 = vmatpush2.bf16.msra.mxu0 0
    %1453 = vmatprep.subr.bf16.mxu0 0
    %1454 = vmatpush2.bf16.msra.mxu0 0
    %1455 = vmatprep.subr.bf16.mxu0 0
    %1456 = vmatpush2.bf16.msra.mxu0 0
    %1457 = vmatprep.subr.bf16.mxu0 0
    %1458 = vmatpush2.bf16.msra.mxu0 0
    %1459 = vmatprep.mubr.bf16.mxu0 0
    %1460 = vmatmul.mubr.bf16.gmra.mxu0 %v1385
    %v1461 = vpop.f32.mrf.mxu0
    %v1462 = vadd.f32 0.0, %v1461
    %v1463 = vpop.f32.mrf.mxu0
    %v1464 = vadd.f32 0.0, %v1463
    %v1465 = vpop.f32.mrf.mxu0
    %v1466 = vpop.f32.mrf.mxu0
    %1467 = vdwg.mxu0
    %v1468 = vadd.f32 %v1381, %v1421
    %v1469 = vadd.f32 %v1382, %v1423
    %v1470 = vadd.f32 %v1383, %v1462
    %v1471 = vadd.f32 %v1384, %v1464
    %s1472 = smul.u32 6, 4
    %s1473 = smul.addr %s1472, 8
    %s1474 = scalar_lea.vmem [#allocation9], %s1473
    %v1475 = vld [vmem:[%s1474] sm:$0xff]
    %v1476 = vld [vmem:[%s1474 + $0x8] sm:$0xff]
    %v1477 = vld [vmem:[%s1474 + $0x10] sm:$0xff]
    %v1478 = vld [vmem:[%s1474 + $0x18] sm:$0xff]
    %v1479 = vpack.c.bf16 %v1375, %v1375
    %1480 = vmatprep.subr.bf16.mxu0 %v1191
    %1481 = vmatpush1.bf16.msra.mxu0 %v1190
    %1482 = vmatprep.subr.bf16.mxu0 %v1187
    %1483 = vmatpush1.bf16.msra.mxu0 %v1186
    %1484 = vmatprep.subr.bf16.mxu0 %v1183
    %1485 = vmatpush1.bf16.msra.mxu0 %v1182
    %1486 = vmatprep.subr.bf16.mxu0 %v1179
    %1487 = vmatpush1.bf16.msra.mxu0 %v1178
    %1488 = vmatprep.subr.bf16.mxu0 %v1175
    %1489 = vmatpush1.bf16.msra.mxu0 %v1174
    %1490 = vmatprep.subr.bf16.mxu0 %v1171
    %1491 = vmatpush1.bf16.msra.mxu0 %v1170
    %1492 = vmatprep.subr.bf16.mxu0 %v1167
    %1493 = vmatpush1.bf16.msra.mxu0 %v1166
    %1494 = vmatprep.subr.bf16.mxu0 %v1163
    %1495 = vmatpush1.bf16.msra.mxu0 %v1162
    %1496 = vmatprep.subr.bf16.mxu0 0
    %1497 = vmatpush2.bf16.msra.mxu0 0
    %1498 = vmatprep.subr.bf16.mxu0 0
    %1499 = vmatpush2.bf16.msra.mxu0 0
    %1500 = vmatprep.subr.bf16.mxu0 0
    %1501 = vmatpush2.bf16.msra.mxu0 0
    %1502 = vmatprep.subr.bf16.mxu0 0
    %1503 = vmatpush2.bf16.msra.mxu0 0
    %1504 = vmatprep.subr.bf16.mxu0 0
    %1505 = vmatpush2.bf16.msra.mxu0 0
    %1506 = vmatprep.subr.bf16.mxu0 0
    %1507 = vmatpush2.bf16.msra.mxu0 0
    %1508 = vmatprep.subr.bf16.mxu0 0
    %1509 = vmatpush2.bf16.msra.mxu0 0
    %1510 = vmatprep.subr.bf16.mxu0 0
    %1511 = vmatpush2.bf16.msra.mxu0 0
    %1512 = vmatprep.mubr.bf16.mxu0 0
    %1513 = vmatmul.mubr.bf16.gmra.mxu0 %v1479
    %v1514 = vpop.f32.mrf.mxu0
    %v1515 = vadd.f32 0.0, %v1514
    %v1516 = vpop.f32.mrf.mxu0
    %v1517 = vadd.f32 0.0, %v1516
    %v1518 = vpop.f32.mrf.mxu0
    %v1519 = vpop.f32.mrf.mxu0
    %1520 = vdwg.mxu0
    %1521 = vmatprep.subr.bf16.mxu0 %v1193
    %1522 = vmatpush1.bf16.msra.mxu0 %v1192
    %1523 = vmatprep.subr.bf16.mxu0 %v1189
    %1524 = vmatpush1.bf16.msra.mxu0 %v1188
    %1525 = vmatprep.subr.bf16.mxu0 %v1185
    %1526 = vmatpush1.bf16.msra.mxu0 %v1184
    %1527 = vmatprep.subr.bf16.mxu0 %v1181
    %1528 = vmatpush1.bf16.msra.mxu0 %v1180
    %1529 = vmatprep.subr.bf16.mxu0 %v1177
    %1530 = vmatpush1.bf16.msra.mxu0 %v1176
    %1531 = vmatprep.subr.bf16.mxu0 %v1173
    %1532 = vmatpush1.bf16.msra.mxu0 %v1172
    %1533 = vmatprep.subr.bf16.mxu0 %v1169
    %1534 = vmatpush1.bf16.msra.mxu0 %v1168
    %1535 = vmatprep.subr.bf16.mxu0 %v1165
    %1536 = vmatpush1.bf16.msra.mxu0 %v1164
    %1537 = vmatprep.subr.bf16.mxu0 0
    %1538 = vmatpush2.bf16.msra.mxu0 0
    %1539 = vmatprep.subr.bf16.mxu0 0
    %1540 = vmatpush2.bf16.msra.mxu0 0
    %1541 = vmatprep.subr.bf16.mxu0 0
    %1542 = vmatpush2.bf16.msra.mxu0 0
    %1543 = vmatprep.subr.bf16.mxu0 0
    %1544 = vmatpush2.bf16.msra.mxu0 0
    %1545 = vmatprep.subr.bf16.mxu0 0
    %1546 = vmatpush2.bf16.msra.mxu0 0
    %1547 = vmatprep.subr.bf16.mxu0 0
    %1548 = vmatpush2.bf16.msra.mxu0 0
    %1549 = vmatprep.subr.bf16.mxu0 0
    %1550 = vmatpush2.bf16.msra.mxu0 0
    %1551 = vmatprep.subr.bf16.mxu0 0
    %1552 = vmatpush2.bf16.msra.mxu0 0
    %1553 = vmatprep.mubr.bf16.mxu0 0
    %1554 = vmatmul.mubr.bf16.gmra.mxu0 %v1479
    %v1555 = vpop.f32.mrf.mxu0
    %v1556 = vadd.f32 0.0, %v1555
    %v1557 = vpop.f32.mrf.mxu0
    %v1558 = vadd.f32 0.0, %v1557
    %v1559 = vpop.f32.mrf.mxu0
    %v1560 = vpop.f32.mrf.mxu0
    %1561 = vdwg.mxu0
    %v1562 = vadd.f32 %v1475, %v1515
    %v1563 = vadd.f32 %v1476, %v1517
    %v1564 = vadd.f32 %v1477, %v1556
    %v1565 = vadd.f32 %v1478, %v1558
    %s1566 = scalar_lea.vmem %s2, 8
    %v1567 = vld [vmem:[%s1566] sm:$0xff]
    %s1568 = scalar_lea.vmem %s143, 48
    %v1569 = vld [vmem:[%s1568] sm:$0xff]
    %v1570 = vxor.u32 %v1468, 2147483648
    %v1571 = vmul.f32 %v1570, 1.442695
    %v1572 = vpow.pop %v1571
    %v1573 = vadd.f32 %v1572, 1.0
    %v1574 = vrcp.pop %v1573
    %v1575 = vmul.f32 1.0, %v1574
    %v1576 = vxor.u32 %v1469, 2147483648
    %v1577 = vmul.f32 %v1576, 1.442695
    %v1578 = vpow.pop %v1577
    %v1579 = vadd.f32 %v1578, 1.0
    %v1580 = vrcp.pop %v1579
    %v1581 = vmul.f32 1.0, %v1580
    %v1582 = vtanh.pop %v1470
    %v1583 = vxor.u32 %v1471, 2147483648
    %v1584 = vmul.f32 %v1583, 1.442695
    %v1585 = vpow.pop %v1584
    %v1586 = vadd.f32 %v1585, 1.0
    %v1587 = vrcp.pop %v1586
    %v1588 = vmul.f32 1.0, %v1587
    %v1589 = vmul.f32 %v1581, %v1336
    %v1590 = vmul.f32 %v1575, %v1582
    %v1591 = vadd.f32 %v1589, %v1590
    %v1592 = vtanh.pop %v1591
    %v1593 = vmul.f32 %v1588, %v1592
    %1595 = vset.pattern.permute.xlu0 0
    %1596 = vperm.xlu0 %1595, %v1567
    %v1597 = vpop.permute.xlu0 %1596
    %v1599 = vmul.f32 %v1597, %v1593
    %v1600 = vadd.f32 %v1345, %v1599
    %v1601 = vxor.u32 %v1562, 2147483648
    %v1602 = vmul.f32 %v1601, 1.442695
    %v1603 = vpow.pop %v1602
    %v1604 = vadd.f32 %v1603, 1.0
    %v1605 = vrcp.pop %v1604
    %v1606 = vmul.f32 1.0, %v1605
    %v1607 = vxor.u32 %v1563, 2147483648
    %v1608 = vmul.f32 %v1607, 1.442695
    %v1609 = vpow.pop %v1608
    %v1610 = vadd.f32 %v1609, 1.0
    %v1611 = vrcp.pop %v1610
    %v1612 = vmul.f32 1.0, %v1611
    %v1613 = vtanh.pop %v1564
    %v1614 = vxor.u32 %v1565, 2147483648
    %v1615 = vmul.f32 %v1614, 1.442695
    %v1616 = vpow.pop %v1615
    %v1617 = vadd.f32 %v1616, 1.0
    %v1618 = vrcp.pop %v1617
    %v1619 = vmul.f32 1.0, %v1618
    %v1620 = vmul.f32 %v1612, %v1376
    %v1621 = vmul.f32 %v1606, %v1613
    %v1622 = vadd.f32 %v1620, %v1621
    %v1623 = vtanh.pop %v1622
    %v1624 = vmul.f32 %v1619, %v1623
    %1626 = vset.pattern.permute.xlu0 0
    %1627 = vperm.xlu0 %1626, %v1569
    %v1628 = vpop.permute.xlu0 %1627
    %v1630 = vmul.f32 %v1628, %v1624
    %v1631 = vmul.f32 %v1628, %v1622
    %v1632 = vadd.f32 %v1377, %v1630
    %s1633 = smul.u32 2, 4
    %s1634 = smul.addr %s1633, 8
    %s1635 = scalar_lea.vmem [#allocation8], %s1634
    %v1636 = vld [vmem:[%s1635] sm:$0xff]
    %v1637 = vld [vmem:[%s1635 + $0x8] sm:$0xff]
    %v1638 = vld [vmem:[%s1635 + $0x10] sm:$0xff]
    %v1639 = vld [vmem:[%s1635 + $0x18] sm:$0xff]
    %v1640 = vpack.c.bf16 %v1593, %v1593
    %1641 = vmatprep.subr.bf16.mxu0 %v937
    %1642 = vmatpush1.bf16.msra.mxu0 %v936
    %1643 = vmatprep.subr.bf16.mxu0 %v933
    %1644 = vmatpush1.bf16.msra.mxu0 %v932
    %1645 = vmatprep.subr.bf16.mxu0 %v929
    %1646 = vmatpush1.bf16.msra.mxu0 %v928
    %1647 = vmatprep.subr.bf16.mxu0 %v925
    %1648 = vmatpush1.bf16.msra.mxu0 %v924
    %1649 = vmatprep.subr.bf16.mxu0 %v921
    %1650 = vmatpush1.bf16.msra.mxu0 %v920
    %1651 = vmatprep.subr.bf16.mxu0 %v917
    %1652 = vmatpush1.bf16.msra.mxu0 %v916
    %1653 = vmatprep.subr.bf16.mxu0 %v913
    %1654 = vmatpush1.bf16.msra.mxu0 %v912
    %1655 = vmatprep.subr.bf16.mxu0 %v909
    %1656 = vmatpush1.bf16.msra.mxu0 %v908
    %1657 = vmatprep.subr.bf16.mxu0 0
    %1658 = vmatpush2.bf16.msra.mxu0 0
    %1659 = vmatprep.subr.bf16.mxu0 0
    %1660 = vmatpush2.bf16.msra.mxu0 0
    %1661 = vmatprep.subr.bf16.mxu0 0
    %1662 = vmatpush2.bf16.msra.mxu0 0
    %1663 = vmatprep.subr.bf16.mxu0 0
    %1664 = vmatpush2.bf16.msra.mxu0 0
    %1665 = vmatprep.subr.bf16.mxu0 0
    %1666 = vmatpush2.bf16.msra.mxu0 0
    %1667 = vmatprep.subr.bf16.mxu0 0
    %1668 = vmatpush2.bf16.msra.mxu0 0
    %1669 = vmatprep.subr.bf16.mxu0 0
    %1670 = vmatpush2.bf16.msra.mxu0 0
    %1671 = vmatprep.subr.bf16.mxu0 0
    %1672 = vmatpush2.bf16.msra.mxu0 0
    %1673 = vmatprep.mubr.bf16.mxu0 0
    %1674 = vmatmul.mubr.bf16.gmra.mxu0 %v1640
    %v1675 = vpop.f32.mrf.mxu0
    %v1676 = vadd.f32 0.0, %v1675
    %v1677 = vpop.f32.mrf.mxu0
    %v1678 = vadd.f32 0.0, %v1677
    %v1679 = vpop.f32.mrf.mxu0
    %v1680 = vpop.f32.mrf.mxu0
    %1681 = vdwg.mxu0
    %1682 = vmatprep.subr.bf16.mxu0 %v939
    %1683 = vmatpush1.bf16.msra.mxu0 %v938
    %1684 = vmatprep.subr.bf16.mxu0 %v935
    %1685 = vmatpush1.bf16.msra.mxu0 %v934
    %1686 = vmatprep.subr.bf16.mxu0 %v931
    %1687 = vmatpush1.bf16.msra.mxu0 %v930
    %1688 = vmatprep.subr.bf16.mxu0 %v927
    %1689 = vmatpush1.bf16.msra.mxu0 %v926
    %1690 = vmatprep.subr.bf16.mxu0 %v923
    %1691 = vmatpush1.bf16.msra.mxu0 %v922
    %1692 = vmatprep.subr.bf16.mxu0 %v919
    %1693 = vmatpush1.bf16.msra.mxu0 %v918
    %1694 = vmatprep.subr.bf16.mxu0 %v915
    %1695 = vmatpush1.bf16.msra.mxu0 %v914
    %1696 = vmatprep.subr.bf16.mxu0 %v911
    %1697 = vmatpush1.bf16.msra.mxu0 %v910
    %1698 = vmatprep.subr.bf16.mxu0 0
    %1699 = vmatpush2.bf16.msra.mxu0 0
    %1700 = vmatprep.subr.bf16.mxu0 0
    %1701 = vmatpush2.bf16.msra.mxu0 0
    %1702 = vmatprep.subr.bf16.mxu0 0
    %1703 = vmatpush2.bf16.msra.mxu0 0
    %1704 = vmatprep.subr.bf16.mxu0 0
    %1705 = vmatpush2.bf16.msra.mxu0 0
    %1706 = vmatprep.subr.bf16.mxu0 0
    %1707 = vmatpush2.bf16.msra.mxu0 0
    %1708 = vmatprep.subr.bf16.mxu0 0
    %1709 = vmatpush2.bf16.msra.mxu0 0
    %1710 = vmatprep.subr.bf16.mxu0 0
    %1711 = vmatpush2.bf16.msra.mxu0 0
    %1712 = vmatprep.subr.bf16.mxu0 0
    %1713 = vmatpush2.bf16.msra.mxu0 0
    %1714 = vmatprep.mubr.bf16.mxu0 0
    %1715 = vmatmul.mubr.bf16.gmra.mxu0 %v1640
    %v1716 = vpop.f32.mrf.mxu0
    %v1717 = vadd.f32 0.0, %v1716
    %v1718 = vpop.f32.mrf.mxu0
    %v1719 = vadd.f32 0.0, %v1718
    %v1720 = vpop.f32.mrf.mxu0
    %v1721 = vpop.f32.mrf.mxu0
    %1722 = vdwg.mxu0
    %v1723 = vadd.f32 %v1636, %v1676
    %v1724 = vadd.f32 %v1637, %v1678
    %v1725 = vadd.f32 %v1638, %v1717
    %v1726 = vadd.f32 %v1639, %v1719
    %s1727 = smul.u32 5, 4
    %s1728 = smul.addr %s1727, 8
    %s1729 = scalar_lea.vmem [#allocation9], %s1728
    %v1730 = vld [vmem:[%s1729] sm:$0xff]
    %v1731 = vld [vmem:[%s1729 + $0x8] sm:$0xff]
    %v1732 = vld [vmem:[%s1729 + $0x10] sm:$0xff]
    %v1733 = vld [vmem:[%s1729 + $0x18] sm:$0xff]
    %v1734 = vpack.c.bf16 %v1630, %v1630
    %1735 = vmatprep.subr.bf16.mxu0 %v1191
    %1736 = vmatpush1.bf16.msra.mxu0 %v1190
    %1737 = vmatprep.subr.bf16.mxu0 %v1187
    %1738 = vmatpush1.bf16.msra.mxu0 %v1186
    %1739 = vmatprep.subr.bf16.mxu0 %v1183
    %1740 = vmatpush1.bf16.msra.mxu0 %v1182
    %1741 = vmatprep.subr.bf16.mxu0 %v1179
    %1742 = vmatpush1.bf16.msra.mxu0 %v1178
    %1743 = vmatprep.subr.bf16.mxu0 %v1175
    %1744 = vmatpush1.bf16.msra.mxu0 %v1174
    %1745 = vmatprep.subr.bf16.mxu0 %v1171
    %1746 = vmatpush1.bf16.msra.mxu0 %v1170
    %1747 = vmatprep.subr.bf16.mxu0 %v1167
    %1748 = vmatpush1.bf16.msra.mxu0 %v1166
    %1749 = vmatprep.subr.bf16.mxu0 %v1163
    %1750 = vmatpush1.bf16.msra.mxu0 %v1162
    %1751 = vmatprep.subr.bf16.mxu0 0
    %1752 = vmatpush2.bf16.msra.mxu0 0
    %1753 = vmatprep.subr.bf16.mxu0 0
    %1754 = vmatpush2.bf16.msra.mxu0 0
    %1755 = vmatprep.subr.bf16.mxu0 0
    %1756 = vmatpush2.bf16.msra.mxu0 0
    %1757 = vmatprep.subr.bf16.mxu0 0
    %1758 = vmatpush2.bf16.msra.mxu0 0
    %1759 = vmatprep.subr.bf16.mxu0 0
    %1760 = vmatpush2.bf16.msra.mxu0 0
    %1761 = vmatprep.subr.bf16.mxu0 0
    %1762 = vmatpush2.bf16.msra.mxu0 0
    %1763 = vmatprep.subr.bf16.mxu0 0
    %1764 = vmatpush2.bf16.msra.mxu0 0
    %1765 = vmatprep.subr.bf16.mxu0 0
    %1766 = vmatpush2.bf16.msra.mxu0 0
    %1767 = vmatprep.mubr.bf16.mxu0 0
    %1768 = vmatmul.mubr.bf16.gmra.mxu0 %v1734
    %v1769 = vpop.f32.mrf.mxu0
    %v1770 = vadd.f32 0.0, %v1769
    %v1771 = vpop.f32.mrf.mxu0
    %v1772 = vadd.f32 0.0, %v1771
    %v1773 = vpop.f32.mrf.mxu0
    %v1774 = vpop.f32.mrf.mxu0
    %1775 = vdwg.mxu0
    %1776 = vmatprep.subr.bf16.mxu0 %v1193
    %1777 = vmatpush1.bf16.msra.mxu0 %v1192
    %1778 = vmatprep.subr.bf16.mxu0 %v1189
    %1779 = vmatpush1.bf16.msra.mxu0 %v1188
    %1780 = vmatprep.subr.bf16.mxu0 %v1185
    %1781 = vmatpush1.bf16.msra.mxu0 %v1184
    %1782 = vmatprep.subr.bf16.mxu0 %v1181
    %1783 = vmatpush1.bf16.msra.mxu0 %v1180
    %1784 = vmatprep.subr.bf16.mxu0 %v1177
    %1785 = vmatpush1.bf16.msra.mxu0 %v1176
    %1786 = vmatprep.subr.bf16.mxu0 %v1173
    %1787 = vmatpush1.bf16.msra.mxu0 %v1172
    %1788 = vmatprep.subr.bf16.mxu0 %v1169
    %1789 = vmatpush1.bf16.msra.mxu0 %v1168
    %1790 = vmatprep.subr.bf16.mxu0 %v1165
    %1791 = vmatpush1.bf16.msra.mxu0 %v1164
    %1792 = vmatprep.subr.bf16.mxu0 0
    %1793 = vmatpush2.bf16.msra.mxu0 0
    %1794 = vmatprep.subr.bf16.mxu0 0
    %1795 = vmatpush2.bf16.msra.mxu0 0
    %1796 = vmatprep.subr.bf16.mxu0 0
    %1797 = vmatpush2.bf16.msra.mxu0 0
    %1798 = vmatprep.subr.bf16.mxu0 0
    %1799 = vmatpush2.bf16.msra.mxu0 0
    %1800 = vmatprep.subr.bf16.mxu0 0
    %1801 = vmatpush2.bf16.msra.mxu0 0
    %1802 = vmatprep.subr.bf16.mxu0 0
    %1803 = vmatpush2.bf16.msra.mxu0 0
    %1804 = vmatprep.subr.bf16.mxu0 0
    %1805 = vmatpush2.bf16.msra.mxu0 0
    %1806 = vmatprep.subr.bf16.mxu0 0
    %1807 = vmatpush2.bf16.msra.mxu0 0
    %1808 = vmatprep.mubr.bf16.mxu0 0
    %1809 = vmatmul.mubr.bf16.gmra.mxu0 %v1734
    %v1810 = vpop.f32.mrf.mxu0
    %v1811 = vadd.f32 0.0, %v1810
    %v1812 = vpop.f32.mrf.mxu0
    %v1813 = vadd.f32 0.0, %v1812
    %v1814 = vpop.f32.mrf.mxu0
    %v1815 = vpop.f32.mrf.mxu0
    %1816 = vdwg.mxu0
    %v1817 = vadd.f32 %v1730, %v1770
    %v1818 = vadd.f32 %v1731, %v1772
    %v1819 = vadd.f32 %v1732, %v1811
    %v1820 = vadd.f32 %v1733, %v1813
    %s1821 = scalar_lea.vmem %s2, 16
    %v1822 = vld [vmem:[%s1821] sm:$0xff]
    %s1823 = scalar_lea.vmem %s143, 40
    %v1824 = vld [vmem:[%s1823] sm:$0xff]
    %v1825 = vxor.u32 %v1723, 2147483648
    %v1826 = vmul.f32 %v1825, 1.442695
    %v1827 = vpow.pop %v1826
    %v1828 = vadd.f32 %v1827, 1.0
    %v1829 = vrcp.pop %v1828
    %v1830 = vmul.f32 1.0, %v1829
    %v1831 = vxor.u32 %v1724, 2147483648
    %v1832 = vmul.f32 %v1831, 1.442695
    %v1833 = vpow.pop %v1832
    %v1834 = vadd.f32 %v1833, 1.0
    %v1835 = vrcp.pop %v1834
    %v1836 = vmul.f32 1.0, %v1835
    %v1837 = vtanh.pop %v1725
    %v1838 = vxor.u32 %v1726, 2147483648
    %v1839 = vmul.f32 %v1838, 1.442695
    %v1840 = vpow.pop %v1839
    %v1841 = vadd.f32 %v1840, 1.0
    %v1842 = vrcp.pop %v1841
    %v1843 = vmul.f32 1.0, %v1842
    %v1844 = vmul.f32 %v1836, %v1591
    %v1845 = vmul.f32 %v1830, %v1837
    %v1846 = vadd.f32 %v1844, %v1845
    %v1847 = vtanh.pop %v1846
    %v1848 = vmul.f32 %v1843, %v1847
    %1850 = vset.pattern.permute.xlu0 0
    %1851 = vperm.xlu0 %1850, %v1822
    %v1852 = vpop.permute.xlu0 %1851
    %v1854 = vmul.f32 %v1852, %v1848
    %v1855 = vadd.f32 %v1600, %v1854
    %v1856 = vxor.u32 %v1817, 2147483648
    %v1857 = vmul.f32 %v1856, 1.442695
    %v1858 = vpow.pop %v1857
    %v1859 = vadd.f32 %v1858, 1.0
    %v1860 = vrcp.pop %v1859
    %v1861 = vmul.f32 1.0, %v1860
    %v1862 = vxor.u32 %v1818, 2147483648
    %v1863 = vmul.f32 %v1862, 1.442695
    %v1864 = vpow.pop %v1863
    %v1865 = vadd.f32 %v1864, 1.0
    %v1866 = vrcp.pop %v1865
    %v1867 = vmul.f32 1.0, %v1866
    %v1868 = vtanh.pop %v1819
    %v1869 = vxor.u32 %v1820, 2147483648
    %v1870 = vmul.f32 %v1869, 1.442695
    %v1871 = vpow.pop %v1870
    %v1872 = vadd.f32 %v1871, 1.0
    %v1873 = vrcp.pop %v1872
    %v1874 = vmul.f32 1.0, %v1873
    %v1875 = vmul.f32 %v1867, %v1631
    %v1876 = vmul.f32 %v1861, %v1868
    %v1877 = vadd.f32 %v1875, %v1876
    %v1878 = vtanh.pop %v1877
    %v1879 = vmul.f32 %v1874, %v1878
    %1881 = vset.pattern.permute.xlu0 0
    %1882 = vperm.xlu0 %1881, %v1824
    %v1883 = vpop.permute.xlu0 %1882
    %v1885 = vmul.f32 %v1883, %v1879
    %v1886 = vmul.f32 %v1883, %v1877
    %v1887 = vadd.f32 %v1632, %v1885
    %s1888 = smul.u32 3, 4
    %s1889 = smul.addr %s1888, 8
    %s1890 = scalar_lea.vmem [#allocation8], %s1889
    %v1891 = vld [vmem:[%s1890] sm:$0xff]
    %v1892 = vld [vmem:[%s1890 + $0x8] sm:$0xff]
    %v1893 = vld [vmem:[%s1890 + $0x10] sm:$0xff]
    %v1894 = vld [vmem:[%s1890 + $0x18] sm:$0xff]
    %v1895 = vpack.c.bf16 %v1848, %v1848
    %1896 = vmatprep.subr.bf16.mxu0 %v937
    %1897 = vmatpush1.bf16.msra.mxu0 %v936
    %1898 = vmatprep.subr.bf16.mxu0 %v933
    %1899 = vmatpush1.bf16.msra.mxu0 %v932
    %1900 = vmatprep.subr.bf16.mxu0 %v929
    %1901 = vmatpush1.bf16.msra.mxu0 %v928
    %1902 = vmatprep.subr.bf16.mxu0 %v925
    %1903 = vmatpush1.bf16.msra.mxu0 %v924
    %1904 = vmatprep.subr.bf16.mxu0 %v921
    %1905 = vmatpush1.bf16.msra.mxu0 %v920
    %1906 = vmatprep.subr.bf16.mxu0 %v917
    %1907 = vmatpush1.bf16.msra.mxu0 %v916
    %1908 = vmatprep.subr.bf16.mxu0 %v913
    %1909 = vmatpush1.bf16.msra.mxu0 %v912
    %1910 = vmatprep.subr.bf16.mxu0 %v909
    %1911 = vmatpush1.bf16.msra.mxu0 %v908
    %1912 = vmatprep.subr.bf16.mxu0 0
    %1913 = vmatpush2.bf16.msra.mxu0 0
    %1914 = vmatprep.subr.bf16.mxu0 0
    %1915 = vmatpush2.bf16.msra.mxu0 0
    %1916 = vmatprep.subr.bf16.mxu0 0
    %1917 = vmatpush2.bf16.msra.mxu0 0
    %1918 = vmatprep.subr.bf16.mxu0 0
    %1919 = vmatpush2.bf16.msra.mxu0 0
    %1920 = vmatprep.subr.bf16.mxu0 0
    %1921 = vmatpush2.bf16.msra.mxu0 0
    %1922 = vmatprep.subr.bf16.mxu0 0
    %1923 = vmatpush2.bf16.msra.mxu0 0
    %1924 = vmatprep.subr.bf16.mxu0 0
    %1925 = vmatpush2.bf16.msra.mxu0 0
    %1926 = vmatprep.subr.bf16.mxu0 0
    %1927 = vmatpush2.bf16.msra.mxu0 0
    %1928 = vmatprep.mubr.bf16.mxu0 0
    %1929 = vmatmul.mubr.bf16.gmra.mxu0 %v1895
    %v1930 = vpop.f32.mrf.mxu0
    %v1931 = vadd.f32 0.0, %v1930
    %v1932 = vpop.f32.mrf.mxu0
    %v1933 = vadd.f32 0.0, %v1932
    %v1934 = vpop.f32.mrf.mxu0
    %v1935 = vpop.f32.mrf.mxu0
    %1936 = vdwg.mxu0
    %1937 = vmatprep.subr.bf16.mxu0 %v939
    %1938 = vmatpush1.bf16.msra.mxu0 %v938
    %1939 = vmatprep.subr.bf16.mxu0 %v935
    %1940 = vmatpush1.bf16.msra.mxu0 %v934
    %1941 = vmatprep.subr.bf16.mxu0 %v931
    %1942 = vmatpush1.bf16.msra.mxu0 %v930
    %1943 = vmatprep.subr.bf16.mxu0 %v927
    %1944 = vmatpush1.bf16.msra.mxu0 %v926
    %1945 = vmatprep.subr.bf16.mxu0 %v923
    %1946 = vmatpush1.bf16.msra.mxu0 %v922
    %1947 = vmatprep.subr.bf16.mxu0 %v919
    %1948 = vmatpush1.bf16.msra.mxu0 %v918
    %1949 = vmatprep.subr.bf16.mxu0 %v915
    %1950 = vmatpush1.bf16.msra.mxu0 %v914
    %1951 = vmatprep.subr.bf16.mxu0 %v911
    %1952 = vmatpush1.bf16.msra.mxu0 %v910
    %1953 = vmatprep.subr.bf16.mxu0 0
    %1954 = vmatpush2.bf16.msra.mxu0 0
    %1955 = vmatprep.subr.bf16.mxu0 0
    %1956 = vmatpush2.bf16.msra.mxu0 0
    %1957 = vmatprep.subr.bf16.mxu0 0
    %1958 = vmatpush2.bf16.msra.mxu0 0
    %1959 = vmatprep.subr.bf16.mxu0 0
    %1960 = vmatpush2.bf16.msra.mxu0 0
    %1961 = vmatprep.subr.bf16.mxu0 0
    %1962 = vmatpush2.bf16.msra.mxu0 0
    %1963 = vmatprep.subr.bf16.mxu0 0
    %1964 = vmatpush2.bf16.msra.mxu0 0
    %1965 = vmatprep.subr.bf16.mxu0 0
    %1966 = vmatpush2.bf16.msra.mxu0 0
    %1967 = vmatprep.subr.bf16.mxu0 0
    %1968 = vmatpush2.bf16.msra.mxu0 0
    %1969 = vmatprep.mubr.bf16.mxu0 0
    %1970 = vmatmul.mubr.bf16.gmra.mxu0 %v1895
    %v1971 = vpop.f32.mrf.mxu0
    %v1972 = vadd.f32 0.0, %v1971
    %v1973 = vpop.f32.mrf.mxu0
    %v1974 = vadd.f32 0.0, %v1973
    %v1975 = vpop.f32.mrf.mxu0
    %v1976 = vpop.f32.mrf.mxu0
    %1977 = vdwg.mxu0
    %v1978 = vadd.f32 %v1891, %v1931
    %v1979 = vadd.f32 %v1892, %v1933
    %v1980 = vadd.f32 %v1893, %v1972
    %v1981 = vadd.f32 %v1894, %v1974
    %s1982 = smul.u32 4, 4
    %s1983 = smul.addr %s1982, 8
    %s1984 = scalar_lea.vmem [#allocation9], %s1983
    %v1985 = vld [vmem:[%s1984] sm:$0xff]
    %v1986 = vld [vmem:[%s1984 + $0x8] sm:$0xff]
    %v1987 = vld [vmem:[%s1984 + $0x10] sm:$0xff]
    %v1988 = vld [vmem:[%s1984 + $0x18] sm:$0xff]
    %v1989 = vpack.c.bf16 %v1885, %v1885
    %1990 = vmatprep.subr.bf16.mxu0 %v1191
    %1991 = vmatpush1.bf16.msra.mxu0 %v1190
    %1992 = vmatprep.subr.bf16.mxu0 %v1187
    %1993 = vmatpush1.bf16.msra.mxu0 %v1186
    %1994 = vmatprep.subr.bf16.mxu0 %v1183
    %1995 = vmatpush1.bf16.msra.mxu0 %v1182
    %1996 = vmatprep.subr.bf16.mxu0 %v1179
    %1997 = vmatpush1.bf16.msra.mxu0 %v1178
    %1998 = vmatprep.subr.bf16.mxu0 %v1175
    %1999 = vmatpush1.bf16.msra.mxu0 %v1174
    %2000 = vmatprep.subr.bf16.mxu0 %v1171
    %2001 = vmatpush1.bf16.msra.mxu0 %v1170
    %2002 = vmatprep.subr.bf16.mxu0 %v1167
    %2003 = vmatpush1.bf16.msra.mxu0 %v1166
    %2004 = vmatprep.subr.bf16.mxu0 %v1163
    %2005 = vmatpush1.bf16.msra.mxu0 %v1162
    %2006 = vmatprep.subr.bf16.mxu0 0
    %2007 = vmatpush2.bf16.msra.mxu0 0
    %2008 = vmatprep.subr.bf16.mxu0 0
    %2009 = vmatpush2.bf16.msra.mxu0 0
    %2010 = vmatprep.subr.bf16.mxu0 0
    %2011 = vmatpush2.bf16.msra.mxu0 0
    %2012 = vmatprep.subr.bf16.mxu0 0
    %2013 = vmatpush2.bf16.msra.mxu0 0
    %2014 = vmatprep.subr.bf16.mxu0 0
    %2015 = vmatpush2.bf16.msra.mxu0 0
    %2016 = vmatprep.subr.bf16.mxu0 0
    %2017 = vmatpush2.bf16.msra.mxu0 0
    %2018 = vmatprep.subr.bf16.mxu0 0
    %2019 = vmatpush2.bf16.msra.mxu0 0
    %2020 = vmatprep.subr.bf16.mxu0 0
    %2021 = vmatpush2.bf16.msra.mxu0 0
    %2022 = vmatprep.mubr.bf16.mxu0 0
    %2023 = vmatmul.mubr.bf16.gmra.mxu0 %v1989
    %v2024 = vpop.f32.mrf.mxu0
    %v2025 = vadd.f32 0.0, %v2024
    %v2026 = vpop.f32.mrf.mxu0
    %v2027 = vadd.f32 0.0, %v2026
    %v2028 = vpop.f32.mrf.mxu0
    %v2029 = vpop.f32.mrf.mxu0
    %2030 = vdwg.mxu0
    %2031 = vmatprep.subr.bf16.mxu0 %v1193
    %2032 = vmatpush1.bf16.msra.mxu0 %v1192
    %2033 = vmatprep.subr.bf16.mxu0 %v1189
    %2034 = vmatpush1.bf16.msra.mxu0 %v1188
    %2035 = vmatprep.subr.bf16.mxu0 %v1185
    %2036 = vmatpush1.bf16.msra.mxu0 %v1184
    %2037 = vmatprep.subr.bf16.mxu0 %v1181
    %2038 = vmatpush1.bf16.msra.mxu0 %v1180
    %2039 = vmatprep.subr.bf16.mxu0 %v1177
    %2040 = vmatpush1.bf16.msra.mxu0 %v1176
    %2041 = vmatprep.subr.bf16.mxu0 %v1173
    %2042 = vmatpush1.bf16.msra.mxu0 %v1172
    %2043 = vmatprep.subr.bf16.mxu0 %v1169
    %2044 = vmatpush1.bf16.msra.mxu0 %v1168
    %2045 = vmatprep.subr.bf16.mxu0 %v1165
    %2046 = vmatpush1.bf16.msra.mxu0 %v1164
    %2047 = vmatprep.subr.bf16.mxu0 0
    %2048 = vmatpush2.bf16.msra.mxu0 0
    %2049 = vmatprep.subr.bf16.mxu0 0
    %2050 = vmatpush2.bf16.msra.mxu0 0
    %2051 = vmatprep.subr.bf16.mxu0 0
    %2052 = vmatpush2.bf16.msra.mxu0 0
    %2053 = vmatprep.subr.bf16.mxu0 0
    %2054 = vmatpush2.bf16.msra.mxu0 0
    %2055 = vmatprep.subr.bf16.mxu0 0
    %2056 = vmatpush2.bf16.msra.mxu0 0
    %2057 = vmatprep.subr.bf16.mxu0 0
    %2058 = vmatpush2.bf16.msra.mxu0 0
    %2059 = vmatprep.subr.bf16.mxu0 0
    %2060 = vmatpush2.bf16.msra.mxu0 0
    %2061 = vmatprep.subr.bf16.mxu0 0
    %2062 = vmatpush2.bf16.msra.mxu0 0
    %2063 = vmatprep.mubr.bf16.mxu0 0
    %2064 = vmatmul.mubr.bf16.gmra.mxu0 %v1989
    %v2065 = vpop.f32.mrf.mxu0
    %v2066 = vadd.f32 0.0, %v2065
    %v2067 = vpop.f32.mrf.mxu0
    %v2068 = vadd.f32 0.0, %v2067
    %v2069 = vpop.f32.mrf.mxu0
    %v2070 = vpop.f32.mrf.mxu0
    %2071 = vdwg.mxu0
    %v2072 = vadd.f32 %v1985, %v2025
    %v2073 = vadd.f32 %v1986, %v2027
    %v2074 = vadd.f32 %v1987, %v2066
    %v2075 = vadd.f32 %v1988, %v2068
    %s2076 = scalar_lea.vmem %s2, 24
    %v2077 = vld [vmem:[%s2076] sm:$0xff]
    %s2078 = scalar_lea.vmem %s143, 32
    %v2079 = vld [vmem:[%s2078] sm:$0xff]
    %v2080 = vxor.u32 %v1978, 2147483648
    %v2081 = vmul.f32 %v2080, 1.442695
    %v2082 = vpow.pop %v2081
    %v2083 = vadd.f32 %v2082, 1.0
    %v2084 = vrcp.pop %v2083
    %v2085 = vmul.f32 1.0, %v2084
    %v2086 = vxor.u32 %v1979, 2147483648
    %v2087 = vmul.f32 %v2086, 1.442695
    %v2088 = vpow.pop %v2087
    %v2089 = vadd.f32 %v2088, 1.0
    %v2090 = vrcp.pop %v2089
    %v2091 = vmul.f32 1.0, %v2090
    %v2092 = vtanh.pop %v1980
    %v2093 = vxor.u32 %v1981, 2147483648
    %v2094 = vmul.f32 %v2093, 1.442695
    %v2095 = vpow.pop %v2094
    %v2096 = vadd.f32 %v2095, 1.0
    %v2097 = vrcp.pop %v2096
    %v2098 = vmul.f32 1.0, %v2097
    %v2099 = vmul.f32 %v2091, %v1846
    %v2100 = vmul.f32 %v2085, %v2092
    %v2101 = vadd.f32 %v2099, %v2100
    %v2102 = vtanh.pop %v2101
    %v2103 = vmul.f32 %v2098, %v2102
    %2105 = vset.pattern.permute.xlu0 0
    %2106 = vperm.xlu0 %2105, %v2077
    %v2107 = vpop.permute.xlu0 %2106
    %v2109 = vmul.f32 %v2107, %v2103
    %v2110 = vadd.f32 %v1855, %v2109
    %v2111 = vxor.u32 %v2072, 2147483648
    %v2112 = vmul.f32 %v2111, 1.442695
    %v2113 = vpow.pop %v2112
    %v2114 = vadd.f32 %v2113, 1.0
    %v2115 = vrcp.pop %v2114
    %v2116 = vmul.f32 1.0, %v2115
    %v2117 = vxor.u32 %v2073, 2147483648
    %v2118 = vmul.f32 %v2117, 1.442695
    %v2119 = vpow.pop %v2118
    %v2120 = vadd.f32 %v2119, 1.0
    %v2121 = vrcp.pop %v2120
    %v2122 = vmul.f32 1.0, %v2121
    %v2123 = vtanh.pop %v2074
    %v2124 = vxor.u32 %v2075, 2147483648
    %v2125 = vmul.f32 %v2124, 1.442695
    %v2126 = vpow.pop %v2125
    %v2127 = vadd.f32 %v2126, 1.0
    %v2128 = vrcp.pop %v2127
    %v2129 = vmul.f32 1.0, %v2128
    %v2130 = vmul.f32 %v2122, %v1886
    %v2131 = vmul.f32 %v2116, %v2123
    %v2132 = vadd.f32 %v2130, %v2131
    %v2133 = vtanh.pop %v2132
    %v2134 = vmul.f32 %v2129, %v2133
    %2136 = vset.pattern.permute.xlu0 0
    %2137 = vperm.xlu0 %2136, %v2079
    %v2138 = vpop.permute.xlu0 %2137
    %v2140 = vmul.f32 %v2138, %v2134
    %v2141 = vmul.f32 %v2138, %v2132
    %v2142 = vadd.f32 %v1887, %v2140
    %s2143 = smul.addr %s1982, 8
    %s2144 = scalar_lea.vmem [#allocation8], %s2143
    %v2145 = vld [vmem:[%s2144] sm:$0xff]
    %v2146 = vld [vmem:[%s2144 + $0x8] sm:$0xff]
    %v2147 = vld [vmem:[%s2144 + $0x10] sm:$0xff]
    %v2148 = vld [vmem:[%s2144 + $0x18] sm:$0xff]
    %v2149 = vpack.c.bf16 %v2103, %v2103
    %2150 = vmatprep.subr.bf16.mxu0 %v937
    %2151 = vmatpush1.bf16.msra.mxu0 %v936
    %2152 = vmatprep.subr.bf16.mxu0 %v933
    %2153 = vmatpush1.bf16.msra.mxu0 %v932
    %2154 = vmatprep.subr.bf16.mxu0 %v929
    %2155 = vmatpush1.bf16.msra.mxu0 %v928
    %2156 = vmatprep.subr.bf16.mxu0 %v925
    %2157 = vmatpush1.bf16.msra.mxu0 %v924
    %2158 = vmatprep.subr.bf16.mxu0 %v921
    %2159 = vmatpush1.bf16.msra.mxu0 %v920
    %2160 = vmatprep.subr.bf16.mxu0 %v917
    %2161 = vmatpush1.bf16.msra.mxu0 %v916
    %2162 = vmatprep.subr.bf16.mxu0 %v913
    %2163 = vmatpush1.bf16.msra.mxu0 %v912
    %2164 = vmatprep.subr.bf16.mxu0 %v909
    %2165 = vmatpush1.bf16.msra.mxu0 %v908
    %2166 = vmatprep.subr.bf16.mxu0 0
    %2167 = vmatpush2.bf16.msra.mxu0 0
    %2168 = vmatprep.subr.bf16.mxu0 0
    %2169 = vmatpush2.bf16.msra.mxu0 0
    %2170 = vmatprep.subr.bf16.mxu0 0
    %2171 = vmatpush2.bf16.msra.mxu0 0
    %2172 = vmatprep.subr.bf16.mxu0 0
    %2173 = vmatpush2.bf16.msra.mxu0 0
    %2174 = vmatprep.subr.bf16.mxu0 0
    %2175 = vmatpush2.bf16.msra.mxu0 0
    %2176 = vmatprep.subr.bf16.mxu0 0
    %2177 = vmatpush2.bf16.msra.mxu0 0
    %2178 = vmatprep.subr.bf16.mxu0 0
    %2179 = vmatpush2.bf16.msra.mxu0 0
    %2180 = vmatprep.subr.bf16.mxu0 0
    %2181 = vmatpush2.bf16.msra.mxu0 0
    %2182 = vmatprep.mubr.bf16.mxu0 0
    %2183 = vmatmul.mubr.bf16.gmra.mxu0 %v2149
    %v2184 = vpop.f32.mrf.mxu0
    %v2185 = vadd.f32 0.0, %v2184
    %v2186 = vpop.f32.mrf.mxu0
    %v2187 = vadd.f32 0.0, %v2186
    %v2188 = vpop.f32.mrf.mxu0
    %v2189 = vpop.f32.mrf.mxu0
    %2190 = vdwg.mxu0
    %2191 = vmatprep.subr.bf16.mxu0 %v939
    %2192 = vmatpush1.bf16.msra.mxu0 %v938
    %2193 = vmatprep.subr.bf16.mxu0 %v935
    %2194 = vmatpush1.bf16.msra.mxu0 %v934
    %2195 = vmatprep.subr.bf16.mxu0 %v931
    %2196 = vmatpush1.bf16.msra.mxu0 %v930
    %2197 = vmatprep.subr.bf16.mxu0 %v927
    %2198 = vmatpush1.bf16.msra.mxu0 %v926
    %2199 = vmatprep.subr.bf16.mxu0 %v923
    %2200 = vmatpush1.bf16.msra.mxu0 %v922
    %2201 = vmatprep.subr.bf16.mxu0 %v919
    %2202 = vmatpush1.bf16.msra.mxu0 %v918
    %2203 = vmatprep.subr.bf16.mxu0 %v915
    %2204 = vmatpush1.bf16.msra.mxu0 %v914
    %2205 = vmatprep.subr.bf16.mxu0 %v911
    %2206 = vmatpush1.bf16.msra.mxu0 %v910
    %2207 = vmatprep.subr.bf16.mxu0 0
    %2208 = vmatpush2.bf16.msra.mxu0 0
    %2209 = vmatprep.subr.bf16.mxu0 0
    %2210 = vmatpush2.bf16.msra.mxu0 0
    %2211 = vmatprep.subr.bf16.mxu0 0
    %2212 = vmatpush2.bf16.msra.mxu0 0
    %2213 = vmatprep.subr.bf16.mxu0 0
    %2214 = vmatpush2.bf16.msra.mxu0 0
    %2215 = vmatprep.subr.bf16.mxu0 0
    %2216 = vmatpush2.bf16.msra.mxu0 0
    %2217 = vmatprep.subr.bf16.mxu0 0
    %2218 = vmatpush2.bf16.msra.mxu0 0
    %2219 = vmatprep.subr.bf16.mxu0 0
    %2220 = vmatpush2.bf16.msra.mxu0 0
    %2221 = vmatprep.subr.bf16.mxu0 0
    %2222 = vmatpush2.bf16.msra.mxu0 0
    %2223 = vmatprep.mubr.bf16.mxu0 0
    %2224 = vmatmul.mubr.bf16.gmra.mxu0 %v2149
    %v2225 = vpop.f32.mrf.mxu0
    %v2226 = vadd.f32 0.0, %v2225
    %v2227 = vpop.f32.mrf.mxu0
    %v2228 = vadd.f32 0.0, %v2227
    %v2229 = vpop.f32.mrf.mxu0
    %v2230 = vpop.f32.mrf.mxu0
    %2231 = vdwg.mxu0
    %v2232 = vadd.f32 %v2145, %v2185
    %v2233 = vadd.f32 %v2146, %v2187
    %v2234 = vadd.f32 %v2147, %v2226
    %v2235 = vadd.f32 %v2148, %v2228
    %s2236 = smul.addr %s1888, 8
    %s2237 = scalar_lea.vmem [#allocation9], %s2236
    %v2238 = vld [vmem:[%s2237] sm:$0xff]
    %v2239 = vld [vmem:[%s2237 + $0x8] sm:$0xff]
    %v2240 = vld [vmem:[%s2237 + $0x10] sm:$0xff]
    %v2241 = vld [vmem:[%s2237 + $0x18] sm:$0xff]
    %v2242 = vpack.c.bf16 %v2140, %v2140
    %2243 = vmatprep.subr.bf16.mxu0 %v1191
    %2244 = vmatpush1.bf16.msra.mxu0 %v1190
    %2245 = vmatprep.subr.bf16.mxu0 %v1187
    %2246 = vmatpush1.bf16.msra.mxu0 %v1186
    %2247 = vmatprep.subr.bf16.mxu0 %v1183
    %2248 = vmatpush1.bf16.msra.mxu0 %v1182
    %2249 = vmatprep.subr.bf16.mxu0 %v1179
    %2250 = vmatpush1.bf16.msra.mxu0 %v1178
    %2251 = vmatprep.subr.bf16.mxu0 %v1175
    %2252 = vmatpush1.bf16.msra.mxu0 %v1174
    %2253 = vmatprep.subr.bf16.mxu0 %v1171
    %2254 = vmatpush1.bf16.msra.mxu0 %v1170
    %2255 = vmatprep.subr.bf16.mxu0 %v1167
    %2256 = vmatpush1.bf16.msra.mxu0 %v1166
    %2257 = vmatprep.subr.bf16.mxu0 %v1163
    %2258 = vmatpush1.bf16.msra.mxu0 %v1162
    %2259 = vmatprep.subr.bf16.mxu0 0
    %2260 = vmatpush2.bf16.msra.mxu0 0
    %2261 = vmatprep.subr.bf16.mxu0 0
    %2262 = vmatpush2.bf16.msra.mxu0 0
    %2263 = vmatprep.subr.bf16.mxu0 0
    %2264 = vmatpush2.bf16.msra.mxu0 0
    %2265 = vmatprep.subr.bf16.mxu0 0
    %2266 = vmatpush2.bf16.msra.mxu0 0
    %2267 = vmatprep.subr.bf16.mxu0 0
    %2268 = vmatpush2.bf16.msra.mxu0 0
    %2269 = vmatprep.subr.bf16.mxu0 0
    %2270 = vmatpush2.bf16.msra.mxu0 0
    %2271 = vmatprep.subr.bf16.mxu0 0
    %2272 = vmatpush2.bf16.msra.mxu0 0
    %2273 = vmatprep.subr.bf16.mxu0 0
    %2274 = vmatpush2.bf16.msra.mxu0 0
    %2275 = vmatprep.mubr.bf16.mxu0 0
    %2276 = vmatmul.mubr.bf16.gmra.mxu0 %v2242
    %v2277 = vpop.f32.mrf.mxu0
    %v2278 = vadd.f32 0.0, %v2277
    %v2279 = vpop.f32.mrf.mxu0
    %v2280 = vadd.f32 0.0, %v2279
    %v2281 = vpop.f32.mrf.mxu0
    %v2282 = vpop.f32.mrf.mxu0
    %2283 = vdwg.mxu0
    %2284 = vmatprep.subr.bf16.mxu0 %v1193
    %2285 = vmatpush1.bf16.msra.mxu0 %v1192
    %2286 = vmatprep.subr.bf16.mxu0 %v1189
    %2287 = vmatpush1.bf16.msra.mxu0 %v1188
    %2288 = vmatprep.subr.bf16.mxu0 %v1185
    %2289 = vmatpush1.bf16.msra.mxu0 %v1184
    %2290 = vmatprep.subr.bf16.mxu0 %v1181
    %2291 = vmatpush1.bf16.msra.mxu0 %v1180
    %2292 = vmatprep.subr.bf16.mxu0 %v1177
    %2293 = vmatpush1.bf16.msra.mxu0 %v1176
    %2294 = vmatprep.subr.bf16.mxu0 %v1173
    %2295 = vmatpush1.bf16.msra.mxu0 %v1172
    %2296 = vmatprep.subr.bf16.mxu0 %v1169
    %2297 = vmatpush1.bf16.msra.mxu0 %v1168
    %2298 = vmatprep.subr.bf16.mxu0 %v1165
    %2299 = vmatpush1.bf16.msra.mxu0 %v1164
    %2300 = vmatprep.subr.bf16.mxu0 0
    %2301 = vmatpush2.bf16.msra.mxu0 0
    %2302 = vmatprep.subr.bf16.mxu0 0
    %2303 = vmatpush2.bf16.msra.mxu0 0
    %2304 = vmatprep.subr.bf16.mxu0 0
    %2305 = vmatpush2.bf16.msra.mxu0 0
    %2306 = vmatprep.subr.bf16.mxu0 0
    %2307 = vmatpush2.bf16.msra.mxu0 0
    %2308 = vmatprep.subr.bf16.mxu0 0
    %2309 = vmatpush2.bf16.msra.mxu0 0
    %2310 = vmatprep.subr.bf16.mxu0 0
    %2311 = vmatpush2.bf16.msra.mxu0 0
    %2312 = vmatprep.subr.bf16.mxu0 0
    %2313 = vmatpush2.bf16.msra.mxu0 0
    %2314 = vmatprep.subr.bf16.mxu0 0
    %2315 = vmatpush2.bf16.msra.mxu0 0
    %2316 = vmatprep.mubr.bf16.mxu0 0
    %2317 = vmatmul.mubr.bf16.gmra.mxu0 %v2242
    %v2318 = vpop.f32.mrf.mxu0
    %v2319 = vadd.f32 0.0, %v2318
    %v2320 = vpop.f32.mrf.mxu0
    %v2321 = vadd.f32 0.0, %v2320
    %v2322 = vpop.f32.mrf.mxu0
    %v2323 = vpop.f32.mrf.mxu0
    %2324 = vdwg.mxu0
    %v2325 = vadd.f32 %v2238, %v2278
    %v2326 = vadd.f32 %v2239, %v2280
    %v2327 = vadd.f32 %v2240, %v2319
    %v2328 = vadd.f32 %v2241, %v2321
    %s2329 = scalar_lea.vmem %s2, 32
    %v2330 = vld [vmem:[%s2329] sm:$0xff]
    %s2331 = scalar_lea.vmem %s143, 24
    %v2332 = vld [vmem:[%s2331] sm:$0xff]
    %v2333 = vxor.u32 %v2232, 2147483648
    %v2334 = vmul.f32 %v2333, 1.442695
    %v2335 = vpow.pop %v2334
    %v2336 = vadd.f32 %v2335, 1.0
    %v2337 = vrcp.pop %v2336
    %v2338 = vmul.f32 1.0, %v2337
    %v2339 = vxor.u32 %v2233, 2147483648
    %v2340 = vmul.f32 %v2339, 1.442695
    %v2341 = vpow.pop %v2340
    %v2342 = vadd.f32 %v2341, 1.0
    %v2343 = vrcp.pop %v2342
    %v2344 = vmul.f32 1.0, %v2343
    %v2345 = vtanh.pop %v2234
    %v2346 = vxor.u32 %v2235, 2147483648
    %v2347 = vmul.f32 %v2346, 1.442695
    %v2348 = vpow.pop %v2347
    %v2349 = vadd.f32 %v2348, 1.0
    %v2350 = vrcp.pop %v2349
    %v2351 = vmul.f32 1.0, %v2350
    %v2352 = vmul.f32 %v2344, %v2101
    %v2353 = vmul.f32 %v2338, %v2345
    %v2354 = vadd.f32 %v2352, %v2353
    %v2355 = vtanh.pop %v2354
    %v2356 = vmul.f32 %v2351, %v2355
    %2358 = vset.pattern.permute.xlu0 0
    %2359 = vperm.xlu0 %2358, %v2330
    %v2360 = vpop.permute.xlu0 %2359
    %v2362 = vmul.f32 %v2360, %v2356
    %v2363 = vadd.f32 %v2110, %v2362
    %v2364 = vxor.u32 %v2325, 2147483648
    %v2365 = vmul.f32 %v2364, 1.442695
    %v2366 = vpow.pop %v2365
    %v2367 = vadd.f32 %v2366, 1.0
    %v2368 = vrcp.pop %v2367
    %v2369 = vmul.f32 1.0, %v2368
    %v2370 = vxor.u32 %v2326, 2147483648
    %v2371 = vmul.f32 %v2370, 1.442695
    %v2372 = vpow.pop %v2371
    %v2373 = vadd.f32 %v2372, 1.0
    %v2374 = vrcp.pop %v2373
    %v2375 = vmul.f32 1.0, %v2374
    %v2376 = vtanh.pop %v2327
    %v2377 = vxor.u32 %v2328, 2147483648
    %v2378 = vmul.f32 %v2377, 1.442695
    %v2379 = vpow.pop %v2378
    %v2380 = vadd.f32 %v2379, 1.0
    %v2381 = vrcp.pop %v2380
    %v2382 = vmul.f32 1.0, %v2381
    %v2383 = vmul.f32 %v2375, %v2141
    %v2384 = vmul.f32 %v2369, %v2376
    %v2385 = vadd.f32 %v2383, %v2384
    %v2386 = vtanh.pop %v2385
    %v2387 = vmul.f32 %v2382, %v2386
    %2389 = vset.pattern.permute.xlu0 0
    %2390 = vperm.xlu0 %2389, %v2332
    %v2391 = vpop.permute.xlu0 %2390
    %v2393 = vmul.f32 %v2391, %v2387
    %v2394 = vmul.f32 %v2391, %v2385
    %v2395 = vadd.f32 %v2142, %v2393
    %s2396 = smul.addr %s1727, 8
    %s2397 = scalar_lea.vmem [#allocation8], %s2396
    %v2398 = vld [vmem:[%s2397] sm:$0xff]
    %v2399 = vld [vmem:[%s2397 + $0x8] sm:$0xff]
    %v2400 = vld [vmem:[%s2397 + $0x10] sm:$0xff]
    %v2401 = vld [vmem:[%s2397 + $0x18] sm:$0xff]
    %v2402 = vpack.c.bf16 %v2356, %v2356
    %2403 = vmatprep.subr.bf16.mxu0 %v937
    %2404 = vmatpush1.bf16.msra.mxu0 %v936
    %2405 = vmatprep.subr.bf16.mxu0 %v933
    %2406 = vmatpush1.bf16.msra.mxu0 %v932
    %2407 = vmatprep.subr.bf16.mxu0 %v929
    %2408 = vmatpush1.bf16.msra.mxu0 %v928
    %2409 = vmatprep.subr.bf16.mxu0 %v925
    %2410 = vmatpush1.bf16.msra.mxu0 %v924
    %2411 = vmatprep.subr.bf16.mxu0 %v921
    %2412 = vmatpush1.bf16.msra.mxu0 %v920
    %2413 = vmatprep.subr.bf16.mxu0 %v917
    %2414 = vmatpush1.bf16.msra.mxu0 %v916
    %2415 = vmatprep.subr.bf16.mxu0 %v913
    %2416 = vmatpush1.bf16.msra.mxu0 %v912
    %2417 = vmatprep.subr.bf16.mxu0 %v909
    %2418 = vmatpush1.bf16.msra.mxu0 %v908
    %2419 = vmatprep.subr.bf16.mxu0 0
    %2420 = vmatpush2.bf16.msra.mxu0 0
    %2421 = vmatprep.subr.bf16.mxu0 0
    %2422 = vmatpush2.bf16.msra.mxu0 0
    %2423 = vmatprep.subr.bf16.mxu0 0
    %2424 = vmatpush2.bf16.msra.mxu0 0
    %2425 = vmatprep.subr.bf16.mxu0 0
    %2426 = vmatpush2.bf16.msra.mxu0 0
    %2427 = vmatprep.subr.bf16.mxu0 0
    %2428 = vmatpush2.bf16.msra.mxu0 0
    %2429 = vmatprep.subr.bf16.mxu0 0
    %2430 = vmatpush2.bf16.msra.mxu0 0
    %2431 = vmatprep.subr.bf16.mxu0 0
    %2432 = vmatpush2.bf16.msra.mxu0 0
    %2433 = vmatprep.subr.bf16.mxu0 0
    %2434 = vmatpush2.bf16.msra.mxu0 0
    %2435 = vmatprep.mubr.bf16.mxu0 0
    %2436 = vmatmul.mubr.bf16.gmra.mxu0 %v2402
    %v2437 = vpop.f32.mrf.mxu0
    %v2438 = vadd.f32 0.0, %v2437
    %v2439 = vpop.f32.mrf.mxu0
    %v2440 = vadd.f32 0.0, %v2439
    %v2441 = vpop.f32.mrf.mxu0
    %v2442 = vpop.f32.mrf.mxu0
    %2443 = vdwg.mxu0
    %2444 = vmatprep.subr.bf16.mxu0 %v939
    %2445 = vmatpush1.bf16.msra.mxu0 %v938
    %2446 = vmatprep.subr.bf16.mxu0 %v935
    %2447 = vmatpush1.bf16.msra.mxu0 %v934
    %2448 = vmatprep.subr.bf16.mxu0 %v931
    %2449 = vmatpush1.bf16.msra.mxu0 %v930
    %2450 = vmatprep.subr.bf16.mxu0 %v927
    %2451 = vmatpush1.bf16.msra.mxu0 %v926
    %2452 = vmatprep.subr.bf16.mxu0 %v923
    %2453 = vmatpush1.bf16.msra.mxu0 %v922
    %2454 = vmatprep.subr.bf16.mxu0 %v919
    %2455 = vmatpush1.bf16.msra.mxu0 %v918
    %2456 = vmatprep.subr.bf16.mxu0 %v915
    %2457 = vmatpush1.bf16.msra.mxu0 %v914
    %2458 = vmatprep.subr.bf16.mxu0 %v911
    %2459 = vmatpush1.bf16.msra.mxu0 %v910
    %2460 = vmatprep.subr.bf16.mxu0 0
    %2461 = vmatpush2.bf16.msra.mxu0 0
    %2462 = vmatprep.subr.bf16.mxu0 0
    %2463 = vmatpush2.bf16.msra.mxu0 0
    %2464 = vmatprep.subr.bf16.mxu0 0
    %2465 = vmatpush2.bf16.msra.mxu0 0
    %2466 = vmatprep.subr.bf16.mxu0 0
    %2467 = vmatpush2.bf16.msra.mxu0 0
    %2468 = vmatprep.subr.bf16.mxu0 0
    %2469 = vmatpush2.bf16.msra.mxu0 0
    %2470 = vmatprep.subr.bf16.mxu0 0
    %2471 = vmatpush2.bf16.msra.mxu0 0
    %2472 = vmatprep.subr.bf16.mxu0 0
    %2473 = vmatpush2.bf16.msra.mxu0 0
    %2474 = vmatprep.subr.bf16.mxu0 0
    %2475 = vmatpush2.bf16.msra.mxu0 0
    %2476 = vmatprep.mubr.bf16.mxu0 0
    %2477 = vmatmul.mubr.bf16.gmra.mxu0 %v2402
    %v2478 = vpop.f32.mrf.mxu0
    %v2479 = vadd.f32 0.0, %v2478
    %v2480 = vpop.f32.mrf.mxu0
    %v2481 = vadd.f32 0.0, %v2480
    %v2482 = vpop.f32.mrf.mxu0
    %v2483 = vpop.f32.mrf.mxu0
    %2484 = vdwg.mxu0
    %v2485 = vadd.f32 %v2398, %v2438
    %v2486 = vadd.f32 %v2399, %v2440
    %v2487 = vadd.f32 %v2400, %v2479
    %v2488 = vadd.f32 %v2401, %v2481
    %s2489 = smul.addr %s1633, 8
    %s2490 = scalar_lea.vmem [#allocation9], %s2489
    %v2491 = vld [vmem:[%s2490] sm:$0xff]
    %v2492 = vld [vmem:[%s2490 + $0x8] sm:$0xff]
    %v2493 = vld [vmem:[%s2490 + $0x10] sm:$0xff]
    %v2494 = vld [vmem:[%s2490 + $0x18] sm:$0xff]
    %v2495 = vpack.c.bf16 %v2393, %v2393
    %2496 = vmatprep.subr.bf16.mxu0 %v1191
    %2497 = vmatpush1.bf16.msra.mxu0 %v1190
    %2498 = vmatprep.subr.bf16.mxu0 %v1187
    %2499 = vmatpush1.bf16.msra.mxu0 %v1186
    %2500 = vmatprep.subr.bf16.mxu0 %v1183
    %2501 = vmatpush1.bf16.msra.mxu0 %v1182
    %2502 = vmatprep.subr.bf16.mxu0 %v1179
    %2503 = vmatpush1.bf16.msra.mxu0 %v1178
    %2504 = vmatprep.subr.bf16.mxu0 %v1175
    %2505 = vmatpush1.bf16.msra.mxu0 %v1174
    %2506 = vmatprep.subr.bf16.mxu0 %v1171
    %2507 = vmatpush1.bf16.msra.mxu0 %v1170
    %2508 = vmatprep.subr.bf16.mxu0 %v1167
    %2509 = vmatpush1.bf16.msra.mxu0 %v1166
    %2510 = vmatprep.subr.bf16.mxu0 %v1163
    %2511 = vmatpush1.bf16.msra.mxu0 %v1162
    %2512 = vmatprep.subr.bf16.mxu0 0
    %2513 = vmatpush2.bf16.msra.mxu0 0
    %2514 = vmatprep.subr.bf16.mxu0 0
    %2515 = vmatpush2.bf16.msra.mxu0 0
    %2516 = vmatprep.subr.bf16.mxu0 0
    %2517 = vmatpush2.bf16.msra.mxu0 0
    %2518 = vmatprep.subr.bf16.mxu0 0
    %2519 = vmatpush2.bf16.msra.mxu0 0
    %2520 = vmatprep.subr.bf16.mxu0 0
    %2521 = vmatpush2.bf16.msra.mxu0 0
    %2522 = vmatprep.subr.bf16.mxu0 0
    %2523 = vmatpush2.bf16.msra.mxu0 0
    %2524 = vmatprep.subr.bf16.mxu0 0
    %2525 = vmatpush2.bf16.msra.mxu0 0
    %2526 = vmatprep.subr.bf16.mxu0 0
    %2527 = vmatpush2.bf16.msra.mxu0 0
    %2528 = vmatprep.mubr.bf16.mxu0 0
    %2529 = vmatmul.mubr.bf16.gmra.mxu0 %v2495
    %v2530 = vpop.f32.mrf.mxu0
    %v2531 = vadd.f32 0.0, %v2530
    %v2532 = vpop.f32.mrf.mxu0
    %v2533 = vadd.f32 0.0, %v2532
    %v2534 = vpop.f32.mrf.mxu0
    %v2535 = vpop.f32.mrf.mxu0
    %2536 = vdwg.mxu0
    %2537 = vmatprep.subr.bf16.mxu0 %v1193
    %2538 = vmatpush1.bf16.msra.mxu0 %v1192
    %2539 = vmatprep.subr.bf16.mxu0 %v1189
    %2540 = vmatpush1.bf16.msra.mxu0 %v1188
    %2541 = vmatprep.subr.bf16.mxu0 %v1185
    %2542 = vmatpush1.bf16.msra.mxu0 %v1184
    %2543 = vmatprep.subr.bf16.mxu0 %v1181
    %2544 = vmatpush1.bf16.msra.mxu0 %v1180
    %2545 = vmatprep.subr.bf16.mxu0 %v1177
    %2546 = vmatpush1.bf16.msra.mxu0 %v1176
    %2547 = vmatprep.subr.bf16.mxu0 %v1173
    %2548 = vmatpush1.bf16.msra.mxu0 %v1172
    %2549 = vmatprep.subr.bf16.mxu0 %v1169
    %2550 = vmatpush1.bf16.msra.mxu0 %v1168
    %2551 = vmatprep.subr.bf16.mxu0 %v1165
    %2552 = vmatpush1.bf16.msra.mxu0 %v1164
    %2553 = vmatprep.subr.bf16.mxu0 0
    %2554 = vmatpush2.bf16.msra.mxu0 0
    %2555 = vmatprep.subr.bf16.mxu0 0
    %2556 = vmatpush2.bf16.msra.mxu0 0
    %2557 = vmatprep.subr.bf16.mxu0 0
    %2558 = vmatpush2.bf16.msra.mxu0 0
    %2559 = vmatprep.subr.bf16.mxu0 0
    %2560 = vmatpush2.bf16.msra.mxu0 0
    %2561 = vmatprep.subr.bf16.mxu0 0
    %2562 = vmatpush2.bf16.msra.mxu0 0
    %2563 = vmatprep.subr.bf16.mxu0 0
    %2564 = vmatpush2.bf16.msra.mxu0 0
    %2565 = vmatprep.subr.bf16.mxu0 0
    %2566 = vmatpush2.bf16.msra.mxu0 0
    %2567 = vmatprep.subr.bf16.mxu0 0
    %2568 = vmatpush2.bf16.msra.mxu0 0
    %2569 = vmatprep.mubr.bf16.mxu0 0
    %2570 = vmatmul.mubr.bf16.gmra.mxu0 %v2495
    %v2571 = vpop.f32.mrf.mxu0
    %v2572 = vadd.f32 0.0, %v2571
    %v2573 = vpop.f32.mrf.mxu0
    %v2574 = vadd.f32 0.0, %v2573
    %v2575 = vpop.f32.mrf.mxu0
    %v2576 = vpop.f32.mrf.mxu0
    %2577 = vdwg.mxu0
    %v2578 = vadd.f32 %v2491, %v2531
    %v2579 = vadd.f32 %v2492, %v2533
    %v2580 = vadd.f32 %v2493, %v2572
    %v2581 = vadd.f32 %v2494, %v2574
    %s2582 = scalar_lea.vmem %s2, 40
    %v2583 = vld [vmem:[%s2582] sm:$0xff]
    %s2584 = scalar_lea.vmem %s143, 16
    %v2585 = vld [vmem:[%s2584] sm:$0xff]
    %v2586 = vxor.u32 %v2485, 2147483648
    %v2587 = vmul.f32 %v2586, 1.442695
    %v2588 = vpow.pop %v2587
    %v2589 = vadd.f32 %v2588, 1.0
    %v2590 = vrcp.pop %v2589
    %v2591 = vmul.f32 1.0, %v2590
    %v2592 = vxor.u32 %v2486, 2147483648
    %v2593 = vmul.f32 %v2592, 1.442695
    %v2594 = vpow.pop %v2593
    %v2595 = vadd.f32 %v2594, 1.0
    %v2596 = vrcp.pop %v2595
    %v2597 = vmul.f32 1.0, %v2596
    %v2598 = vtanh.pop %v2487
    %v2599 = vxor.u32 %v2488, 2147483648
    %v2600 = vmul.f32 %v2599, 1.442695
    %v2601 = vpow.pop %v2600
    %v2602 = vadd.f32 %v2601, 1.0
    %v2603 = vrcp.pop %v2602
    %v2604 = vmul.f32 1.0, %v2603
    %v2605 = vmul.f32 %v2597, %v2354
    %v2606 = vmul.f32 %v2591, %v2598
    %v2607 = vadd.f32 %v2605, %v2606
    %v2608 = vtanh.pop %v2607
    %v2609 = vmul.f32 %v2604, %v2608
    %2611 = vset.pattern.permute.xlu0 0
    %2612 = vperm.xlu0 %2611, %v2583
    %v2613 = vpop.permute.xlu0 %2612
    %v2615 = vmul.f32 %v2613, %v2609
    %v2616 = vadd.f32 %v2363, %v2615
    %v2617 = vxor.u32 %v2578, 2147483648
    %v2618 = vmul.f32 %v2617, 1.442695
    %v2619 = vpow.pop %v2618
    %v2620 = vadd.f32 %v2619, 1.0
    %v2621 = vrcp.pop %v2620
    %v2622 = vmul.f32 1.0, %v2621
    %v2623 = vxor.u32 %v2579, 2147483648
    %v2624 = vmul.f32 %v2623, 1.442695
    %v2625 = vpow.pop %v2624
    %v2626 = vadd.f32 %v2625, 1.0
    %v2627 = vrcp.pop %v2626
    %v2628 = vmul.f32 1.0, %v2627
    %v2629 = vtanh.pop %v2580
    %v2630 = vxor.u32 %v2581, 2147483648
    %v2631 = vmul.f32 %v2630, 1.442695
    %v2632 = vpow.pop %v2631
    %v2633 = vadd.f32 %v2632, 1.0
    %v2634 = vrcp.pop %v2633
    %v2635 = vmul.f32 1.0, %v2634
    %v2636 = vmul.f32 %v2628, %v2394
    %v2637 = vmul.f32 %v2622, %v2629
    %v2638 = vadd.f32 %v2636, %v2637
    %v2639 = vtanh.pop %v2638
    %v2640 = vmul.f32 %v2635, %v2639
    %2642 = vset.pattern.permute.xlu0 0
    %2643 = vperm.xlu0 %2642, %v2585
    %v2644 = vpop.permute.xlu0 %2643
    %v2646 = vmul.f32 %v2644, %v2640
    %v2647 = vmul.f32 %v2644, %v2638
    %v2648 = vadd.f32 %v2395, %v2646
    %s2649 = smul.addr %s1472, 8
    %s2650 = scalar_lea.vmem [#allocation8], %s2649
    %v2651 = vld [vmem:[%s2650] sm:$0xff]
    %v2652 = vld [vmem:[%s2650 + $0x8] sm:$0xff]
    %v2653 = vld [vmem:[%s2650 + $0x10] sm:$0xff]
    %v2654 = vld [vmem:[%s2650 + $0x18] sm:$0xff]
    %v2655 = vpack.c.bf16 %v2609, %v2609
    %2656 = vmatprep.subr.bf16.mxu0 %v937
    %2657 = vmatpush1.bf16.msra.mxu0 %v936
    %2658 = vmatprep.subr.bf16.mxu0 %v933
    %2659 = vmatpush1.bf16.msra.mxu0 %v932
    %2660 = vmatprep.subr.bf16.mxu0 %v929
    %2661 = vmatpush1.bf16.msra.mxu0 %v928
    %2662 = vmatprep.subr.bf16.mxu0 %v925
    %2663 = vmatpush1.bf16.msra.mxu0 %v924
    %2664 = vmatprep.subr.bf16.mxu0 %v921
    %2665 = vmatpush1.bf16.msra.mxu0 %v920
    %2666 = vmatprep.subr.bf16.mxu0 %v917
    %2667 = vmatpush1.bf16.msra.mxu0 %v916
    %2668 = vmatprep.subr.bf16.mxu0 %v913
    %2669 = vmatpush1.bf16.msra.mxu0 %v912
    %2670 = vmatprep.subr.bf16.mxu0 %v909
    %2671 = vmatpush1.bf16.msra.mxu0 %v908
    %2672 = vmatprep.subr.bf16.mxu0 0
    %2673 = vmatpush2.bf16.msra.mxu0 0
    %2674 = vmatprep.subr.bf16.mxu0 0
    %2675 = vmatpush2.bf16.msra.mxu0 0
    %2676 = vmatprep.subr.bf16.mxu0 0
    %2677 = vmatpush2.bf16.msra.mxu0 0
    %2678 = vmatprep.subr.bf16.mxu0 0
    %2679 = vmatpush2.bf16.msra.mxu0 0
    %2680 = vmatprep.subr.bf16.mxu0 0
    %2681 = vmatpush2.bf16.msra.mxu0 0
    %2682 = vmatprep.subr.bf16.mxu0 0
    %2683 = vmatpush2.bf16.msra.mxu0 0
    %2684 = vmatprep.subr.bf16.mxu0 0
    %2685 = vmatpush2.bf16.msra.mxu0 0
    %2686 = vmatprep.subr.bf16.mxu0 0
    %2687 = vmatpush2.bf16.msra.mxu0 0
    %2688 = vmatprep.mubr.bf16.mxu0 0
    %2689 = vmatmul.mubr.bf16.gmra.mxu0 %v2655
    %v2690 = vpop.f32.mrf.mxu0
    %v2691 = vadd.f32 0.0, %v2690
    %v2692 = vpop.f32.mrf.mxu0
    %v2693 = vadd.f32 0.0, %v2692
    %v2694 = vpop.f32.mrf.mxu0
    %v2695 = vpop.f32.mrf.mxu0
    %2696 = vdwg.mxu0
    %2697 = vmatprep.subr.bf16.mxu0 %v939
    %2698 = vmatpush1.bf16.msra.mxu0 %v938
    %2699 = vmatprep.subr.bf16.mxu0 %v935
    %2700 = vmatpush1.bf16.msra.mxu0 %v934
    %2701 = vmatprep.subr.bf16.mxu0 %v931
    %2702 = vmatpush1.bf16.msra.mxu0 %v930
    %2703 = vmatprep.subr.bf16.mxu0 %v927
    %2704 = vmatpush1.bf16.msra.mxu0 %v926
    %2705 = vmatprep.subr.bf16.mxu0 %v923
    %2706 = vmatpush1.bf16.msra.mxu0 %v922
    %2707 = vmatprep.subr.bf16.mxu0 %v919
    %2708 = vmatpush1.bf16.msra.mxu0 %v918
    %2709 = vmatprep.subr.bf16.mxu0 %v915
    %2710 = vmatpush1.bf16.msra.mxu0 %v914
    %2711 = vmatprep.subr.bf16.mxu0 %v911
    %2712 = vmatpush1.bf16.msra.mxu0 %v910
    %2713 = vmatprep.subr.bf16.mxu0 0
    %2714 = vmatpush2.bf16.msra.mxu0 0
    %2715 = vmatprep.subr.bf16.mxu0 0
    %2716 = vmatpush2.bf16.msra.mxu0 0
    %2717 = vmatprep.subr.bf16.mxu0 0
    %2718 = vmatpush2.bf16.msra.mxu0 0
    %2719 = vmatprep.subr.bf16.mxu0 0
    %2720 = vmatpush2.bf16.msra.mxu0 0
    %2721 = vmatprep.subr.bf16.mxu0 0
    %2722 = vmatpush2.bf16.msra.mxu0 0
    %2723 = vmatprep.subr.bf16.mxu0 0
    %2724 = vmatpush2.bf16.msra.mxu0 0
    %2725 = vmatprep.subr.bf16.mxu0 0
    %2726 = vmatpush2.bf16.msra.mxu0 0
    %2727 = vmatprep.subr.bf16.mxu0 0
    %2728 = vmatpush2.bf16.msra.mxu0 0
    %2729 = vmatprep.mubr.bf16.mxu0 0
    %2730 = vmatmul.mubr.bf16.gmra.mxu0 %v2655
    %v2731 = vpop.f32.mrf.mxu0
    %v2732 = vadd.f32 0.0, %v2731
    %v2733 = vpop.f32.mrf.mxu0
    %v2734 = vadd.f32 0.0, %v2733
    %v2735 = vpop.f32.mrf.mxu0
    %v2736 = vpop.f32.mrf.mxu0
    %2737 = vdwg.mxu0
    %v2738 = vadd.f32 %v2651, %v2691
    %v2739 = vadd.f32 %v2652, %v2693
    %v2740 = vadd.f32 %v2653, %v2732
    %v2741 = vadd.f32 %v2654, %v2734
    %s2742 = smul.addr %s1378, 8
    %s2743 = scalar_lea.vmem [#allocation9], %s2742
    %v2744 = vld [vmem:[%s2743] sm:$0xff]
    %v2745 = vld [vmem:[%s2743 + $0x8] sm:$0xff]
    %v2746 = vld [vmem:[%s2743 + $0x10] sm:$0xff]
    %v2747 = vld [vmem:[%s2743 + $0x18] sm:$0xff]
    %v2748 = vpack.c.bf16 %v2646, %v2646
    %2749 = vmatprep.subr.bf16.mxu0 %v1191
    %2750 = vmatpush1.bf16.msra.mxu0 %v1190
    %2751 = vmatprep.subr.bf16.mxu0 %v1187
    %2752 = vmatpush1.bf16.msra.mxu0 %v1186
    %2753 = vmatprep.subr.bf16.mxu0 %v1183
    %2754 = vmatpush1.bf16.msra.mxu0 %v1182
    %2755 = vmatprep.subr.bf16.mxu0 %v1179
    %2756 = vmatpush1.bf16.msra.mxu0 %v1178
    %2757 = vmatprep.subr.bf16.mxu0 %v1175
    %2758 = vmatpush1.bf16.msra.mxu0 %v1174
    %2759 = vmatprep.subr.bf16.mxu0 %v1171
    %2760 = vmatpush1.bf16.msra.mxu0 %v1170
    %2761 = vmatprep.subr.bf16.mxu0 %v1167
    %2762 = vmatpush1.bf16.msra.mxu0 %v1166
    %2763 = vmatprep.subr.bf16.mxu0 %v1163
    %2764 = vmatpush1.bf16.msra.mxu0 %v1162
    %2765 = vmatprep.subr.bf16.mxu0 0
    %2766 = vmatpush2.bf16.msra.mxu0 0
    %2767 = vmatprep.subr.bf16.mxu0 0
    %2768 = vmatpush2.bf16.msra.mxu0 0
    %2769 = vmatprep.subr.bf16.mxu0 0
    %2770 = vmatpush2.bf16.msra.mxu0 0
    %2771 = vmatprep.subr.bf16.mxu0 0
    %2772 = vmatpush2.bf16.msra.mxu0 0
    %2773 = vmatprep.subr.bf16.mxu0 0
    %2774 = vmatpush2.bf16.msra.mxu0 0
    %2775 = vmatprep.subr.bf16.mxu0 0
    %2776 = vmatpush2.bf16.msra.mxu0 0
    %2777 = vmatprep.subr.bf16.mxu0 0
    %2778 = vmatpush2.bf16.msra.mxu0 0
    %2779 = vmatprep.subr.bf16.mxu0 0
    %2780 = vmatpush2.bf16.msra.mxu0 0
    %2781 = vmatprep.mubr.bf16.mxu0 0
    %2782 = vmatmul.mubr.bf16.gmra.mxu0 %v2748
    %v2783 = vpop.f32.mrf.mxu0
    %v2784 = vadd.f32 0.0, %v2783
    %v2785 = vpop.f32.mrf.mxu0
    %v2786 = vadd.f32 0.0, %v2785
    %v2787 = vpop.f32.mrf.mxu0
    %v2788 = vpop.f32.mrf.mxu0
    %2789 = vdwg.mxu0
    %2790 = vmatprep.subr.bf16.mxu0 %v1193
    %2791 = vmatpush1.bf16.msra.mxu0 %v1192
    %2792 = vmatprep.subr.bf16.mxu0 %v1189
    %2793 = vmatpush1.bf16.msra.mxu0 %v1188
    %2794 = vmatprep.subr.bf16.mxu0 %v1185
    %2795 = vmatpush1.bf16.msra.mxu0 %v1184
    %2796 = vmatprep.subr.bf16.mxu0 %v1181
    %2797 = vmatpush1.bf16.msra.mxu0 %v1180
    %2798 = vmatprep.subr.bf16.mxu0 %v1177
    %2799 = vmatpush1.bf16.msra.mxu0 %v1176
    %2800 = vmatprep.subr.bf16.mxu0 %v1173
    %2801 = vmatpush1.bf16.msra.mxu0 %v1172
    %2802 = vmatprep.subr.bf16.mxu0 %v1169
    %2803 = vmatpush1.bf16.msra.mxu0 %v1168
    %2804 = vmatprep.subr.bf16.mxu0 %v1165
    %2805 = vmatpush1.bf16.msra.mxu0 %v1164
    %2806 = vmatprep.subr.bf16.mxu0 0
    %2807 = vmatpush2.bf16.msra.mxu0 0
    %2808 = vmatprep.subr.bf16.mxu0 0
    %2809 = vmatpush2.bf16.msra.mxu0 0
    %2810 = vmatprep.subr.bf16.mxu0 0
    %2811 = vmatpush2.bf16.msra.mxu0 0
    %2812 = vmatprep.subr.bf16.mxu0 0
    %2813 = vmatpush2.bf16.msra.mxu0 0
    %2814 = vmatprep.subr.bf16.mxu0 0
    %2815 = vmatpush2.bf16.msra.mxu0 0
    %2816 = vmatprep.subr.bf16.mxu0 0
    %2817 = vmatpush2.bf16.msra.mxu0 0
    %2818 = vmatprep.subr.bf16.mxu0 0
    %2819 = vmatpush2.bf16.msra.mxu0 0
    %2820 = vmatprep.subr.bf16.mxu0 0
    %2821 = vmatpush2.bf16.msra.mxu0 0
    %2822 = vmatprep.mubr.bf16.mxu0 0
    %2823 = vmatmul.mubr.bf16.gmra.mxu0 %v2748
    %v2824 = vpop.f32.mrf.mxu0
    %v2825 = vadd.f32 0.0, %v2824
    %v2826 = vpop.f32.mrf.mxu0
    %v2827 = vadd.f32 0.0, %v2826
    %v2828 = vpop.f32.mrf.mxu0
    %v2829 = vpop.f32.mrf.mxu0
    %2830 = vdwg.mxu0
    %v2831 = vadd.f32 %v2744, %v2784
    %v2832 = vadd.f32 %v2745, %v2786
    %v2833 = vadd.f32 %v2746, %v2825
    %v2834 = vadd.f32 %v2747, %v2827
    %s2835 = scalar_lea.vmem %s2, 48
    %v2836 = vld [vmem:[%s2835] sm:$0xff]
    %s2837 = scalar_lea.vmem %s143, 8
    %v2838 = vld [vmem:[%s2837] sm:$0xff]
    %v2839 = vxor.u32 %v2738, 2147483648
    %v2840 = vmul.f32 %v2839, 1.442695
    %v2841 = vpow.pop %v2840
    %v2842 = vadd.f32 %v2841, 1.0
    %v2843 = vrcp.pop %v2842
    %v2844 = vmul.f32 1.0, %v2843
    %v2845 = vxor.u32 %v2739, 2147483648
    %v2846 = vmul.f32 %v2845, 1.442695
    %v2847 = vpow.pop %v2846
    %v2848 = vadd.f32 %v2847, 1.0
    %v2849 = vrcp.pop %v2848
    %v2850 = vmul.f32 1.0, %v2849
    %v2851 = vtanh.pop %v2740
    %v2852 = vxor.u32 %v2741, 2147483648
    %v2853 = vmul.f32 %v2852, 1.442695
    %v2854 = vpow.pop %v2853
    %v2855 = vadd.f32 %v2854, 1.0
    %v2856 = vrcp.pop %v2855
    %v2857 = vmul.f32 1.0, %v2856
    %v2858 = vmul.f32 %v2850, %v2607
    %v2859 = vmul.f32 %v2844, %v2851
    %v2860 = vadd.f32 %v2858, %v2859
    %v2861 = vtanh.pop %v2860
    %v2862 = vmul.f32 %v2857, %v2861
    %2864 = vset.pattern.permute.xlu0 0
    %2865 = vperm.xlu0 %2864, %v2836
    %v2866 = vpop.permute.xlu0 %2865
    %v2868 = vmul.f32 %v2866, %v2862
    %v2869 = vadd.f32 %v2616, %v2868
    %v2870 = vxor.u32 %v2831, 2147483648
    %v2871 = vmul.f32 %v2870, 1.442695
    %v2872 = vpow.pop %v2871
    %v2873 = vadd.f32 %v2872, 1.0
    %v2874 = vrcp.pop %v2873
    %v2875 = vmul.f32 1.0, %v2874
    %v2876 = vxor.u32 %v2832, 2147483648
    %v2877 = vmul.f32 %v2876, 1.442695
    %v2878 = vpow.pop %v2877
    %v2879 = vadd.f32 %v2878, 1.0
    %v2880 = vrcp.pop %v2879
    %v2881 = vmul.f32 1.0, %v2880
    %v2882 = vtanh.pop %v2833
    %v2883 = vxor.u32 %v2834, 2147483648
    %v2884 = vmul.f32 %v2883, 1.442695
    %v2885 = vpow.pop %v2884
    %v2886 = vadd.f32 %v2885, 1.0
    %v2887 = vrcp.pop %v2886
    %v2888 = vmul.f32 1.0, %v2887
    %v2889 = vmul.f32 %v2881, %v2647
    %v2890 = vmul.f32 %v2875, %v2882
    %v2891 = vadd.f32 %v2889, %v2890
    %v2892 = vtanh.pop %v2891
    %v2893 = vmul.f32 %v2888, %v2892
    %2895 = vset.pattern.permute.xlu0 0
    %2896 = vperm.xlu0 %2895, %v2838
    %v2897 = vpop.permute.xlu0 %2896
    %v2899 = vmul.f32 %v2897, %v2893
    %v2900 = vmul.f32 %v2897, %v2891
    %v2901 = vadd.f32 %v2648, %v2899
    %s2902 = smul.addr %s1058, 8
    %s2903 = scalar_lea.vmem [#allocation8], %s2902
    %v2904 = vld [vmem:[%s2903] sm:$0xff]
    %v2905 = vld [vmem:[%s2903 + $0x8] sm:$0xff]
    %v2906 = vld [vmem:[%s2903 + $0x10] sm:$0xff]
    %v2907 = vld [vmem:[%s2903 + $0x18] sm:$0xff]
    %v2908 = vpack.c.bf16 %v2862, %v2862
    %2909 = vmatprep.subr.bf16.mxu0 %v937
    %2910 = vmatpush1.bf16.msra.mxu0 %v936
    %2911 = vmatprep.subr.bf16.mxu0 %v933
    %2912 = vmatpush1.bf16.msra.mxu0 %v932
    %2913 = vmatprep.subr.bf16.mxu0 %v929
    %2914 = vmatpush1.bf16.msra.mxu0 %v928
    %2915 = vmatprep.subr.bf16.mxu0 %v925
    %2916 = vmatpush1.bf16.msra.mxu0 %v924
    %2917 = vmatprep.subr.bf16.mxu0 %v921
    %2918 = vmatpush1.bf16.msra.mxu0 %v920
    %2919 = vmatprep.subr.bf16.mxu0 %v917
    %2920 = vmatpush1.bf16.msra.mxu0 %v916
    %2921 = vmatprep.subr.bf16.mxu0 %v913
    %2922 = vmatpush1.bf16.msra.mxu0 %v912
    %2923 = vmatprep.subr.bf16.mxu0 %v909
    %2924 = vmatpush1.bf16.msra.mxu0 %v908
    %2925 = vmatprep.subr.bf16.mxu0 0
    %2926 = vmatpush2.bf16.msra.mxu0 0
    %2927 = vmatprep.subr.bf16.mxu0 0
    %2928 = vmatpush2.bf16.msra.mxu0 0
    %2929 = vmatprep.subr.bf16.mxu0 0
    %2930 = vmatpush2.bf16.msra.mxu0 0
    %2931 = vmatprep.subr.bf16.mxu0 0
    %2932 = vmatpush2.bf16.msra.mxu0 0
    %2933 = vmatprep.subr.bf16.mxu0 0
    %2934 = vmatpush2.bf16.msra.mxu0 0
    %2935 = vmatprep.subr.bf16.mxu0 0
    %2936 = vmatpush2.bf16.msra.mxu0 0
    %2937 = vmatprep.subr.bf16.mxu0 0
    %2938 = vmatpush2.bf16.msra.mxu0 0
    %2939 = vmatprep.subr.bf16.mxu0 0
    %2940 = vmatpush2.bf16.msra.mxu0 0
    %2941 = vmatprep.mubr.bf16.mxu0 0
    %2942 = vmatmul.mubr.bf16.gmra.mxu0 %v2908
    %v2943 = vpop.f32.mrf.mxu0
    %v2944 = vadd.f32 0.0, %v2943
    %v2945 = vpop.f32.mrf.mxu0
    %v2946 = vadd.f32 0.0, %v2945
    %v2947 = vpop.f32.mrf.mxu0
    %v2948 = vpop.f32.mrf.mxu0
    %2949 = vdwg.mxu0
    %2950 = vmatprep.subr.bf16.mxu0 %v939
    %2951 = vmatpush1.bf16.msra.mxu0 %v938
    %2952 = vmatprep.subr.bf16.mxu0 %v935
    %2953 = vmatpush1.bf16.msra.mxu0 %v934
    %2954 = vmatprep.subr.bf16.mxu0 %v931
    %2955 = vmatpush1.bf16.msra.mxu0 %v930
    %2956 = vmatprep.subr.bf16.mxu0 %v927
    %2957 = vmatpush1.bf16.msra.mxu0 %v926
    %2958 = vmatprep.subr.bf16.mxu0 %v923
    %2959 = vmatpush1.bf16.msra.mxu0 %v922
    %2960 = vmatprep.subr.bf16.mxu0 %v919
    %2961 = vmatpush1.bf16.msra.mxu0 %v918
    %2962 = vmatprep.subr.bf16.mxu0 %v915
    %2963 = vmatpush1.bf16.msra.mxu0 %v914
    %2964 = vmatprep.subr.bf16.mxu0 %v911
    %2965 = vmatpush1.bf16.msra.mxu0 %v910
    %2966 = vmatprep.subr.bf16.mxu0 0
    %2967 = vmatpush2.bf16.msra.mxu0 0
    %2968 = vmatprep.subr.bf16.mxu0 0
    %2969 = vmatpush2.bf16.msra.mxu0 0
    %2970 = vmatprep.subr.bf16.mxu0 0
    %2971 = vmatpush2.bf16.msra.mxu0 0
    %2972 = vmatprep.subr.bf16.mxu0 0
    %2973 = vmatpush2.bf16.msra.mxu0 0
    %2974 = vmatprep.subr.bf16.mxu0 0
    %2975 = vmatpush2.bf16.msra.mxu0 0
    %2976 = vmatprep.subr.bf16.mxu0 0
    %2977 = vmatpush2.bf16.msra.mxu0 0
    %2978 = vmatprep.subr.bf16.mxu0 0
    %2979 = vmatpush2.bf16.msra.mxu0 0
    %2980 = vmatprep.subr.bf16.mxu0 0
    %2981 = vmatpush2.bf16.msra.mxu0 0
    %2982 = vmatprep.mubr.bf16.mxu0 0
    %2983 = vmatmul.mubr.bf16.gmra.mxu0 %v2908
    %v2984 = vpop.f32.mrf.mxu0
    %v2985 = vadd.f32 0.0, %v2984
    %v2986 = vpop.f32.mrf.mxu0
    %v2987 = vadd.f32 0.0, %v2986
    %v2988 = vpop.f32.mrf.mxu0
    %v2989 = vpop.f32.mrf.mxu0
    %2990 = vdwg.mxu0
    %v2991 = vadd.f32 %v2904, %v2944
    %v2992 = vadd.f32 %v2905, %v2946
    %v2993 = vadd.f32 %v2906, %v2985
    %v2994 = vadd.f32 %v2907, %v2987
    %s2995 = smul.addr %s804, 8
    %s2996 = scalar_lea.vmem [#allocation9], %s2995
    %v2997 = vld [vmem:[%s2996] sm:$0xff]
    %v2998 = vld [vmem:[%s2996 + $0x8] sm:$0xff]
    %v2999 = vld [vmem:[%s2996 + $0x10] sm:$0xff]
    %v3000 = vld [vmem:[%s2996 + $0x18] sm:$0xff]
    %v3001 = vpack.c.bf16 %v2899, %v2899
    %3002 = vmatprep.subr.bf16.mxu0 %v1191
    %3003 = vmatpush1.bf16.msra.mxu0 %v1190
    %3004 = vmatprep.subr.bf16.mxu0 %v1187
    %3005 = vmatpush1.bf16.msra.mxu0 %v1186
    %3006 = vmatprep.subr.bf16.mxu0 %v1183
    %3007 = vmatpush1.bf16.msra.mxu0 %v1182
    %3008 = vmatprep.subr.bf16.mxu0 %v1179
    %3009 = vmatpush1.bf16.msra.mxu0 %v1178
    %3010 = vmatprep.subr.bf16.mxu0 %v1175
    %3011 = vmatpush1.bf16.msra.mxu0 %v1174
    %3012 = vmatprep.subr.bf16.mxu0 %v1171
    %3013 = vmatpush1.bf16.msra.mxu0 %v1170
    %3014 = vmatprep.subr.bf16.mxu0 %v1167
    %3015 = vmatpush1.bf16.msra.mxu0 %v1166
    %3016 = vmatprep.subr.bf16.mxu0 %v1163
    %3017 = vmatpush1.bf16.msra.mxu0 %v1162
    %3018 = vmatprep.subr.bf16.mxu0 0
    %3019 = vmatpush2.bf16.msra.mxu0 0
    %3020 = vmatprep.subr.bf16.mxu0 0
    %3021 = vmatpush2.bf16.msra.mxu0 0
    %3022 = vmatprep.subr.bf16.mxu0 0
    %3023 = vmatpush2.bf16.msra.mxu0 0
    %3024 = vmatprep.subr.bf16.mxu0 0
    %3025 = vmatpush2.bf16.msra.mxu0 0
    %3026 = vmatprep.subr.bf16.mxu0 0
    %3027 = vmatpush2.bf16.msra.mxu0 0
    %3028 = vmatprep.subr.bf16.mxu0 0
    %3029 = vmatpush2.bf16.msra.mxu0 0
    %3030 = vmatprep.subr.bf16.mxu0 0
    %3031 = vmatpush2.bf16.msra.mxu0 0
    %3032 = vmatprep.subr.bf16.mxu0 0
    %3033 = vmatpush2.bf16.msra.mxu0 0
    %3034 = vmatprep.mubr.bf16.mxu0 0
    %3035 = vmatmul.mubr.bf16.gmra.mxu0 %v3001
    %v3036 = vpop.f32.mrf.mxu0
    %v3037 = vadd.f32 0.0, %v3036
    %v3038 = vpop.f32.mrf.mxu0
    %v3039 = vadd.f32 0.0, %v3038
    %v3040 = vpop.f32.mrf.mxu0
    %v3041 = vpop.f32.mrf.mxu0
    %3042 = vdwg.mxu0
    %3043 = vmatprep.subr.bf16.mxu0 %v1193
    %3044 = vmatpush1.bf16.msra.mxu0 %v1192
    %3045 = vmatprep.subr.bf16.mxu0 %v1189
    %3046 = vmatpush1.bf16.msra.mxu0 %v1188
    %3047 = vmatprep.subr.bf16.mxu0 %v1185
    %3048 = vmatpush1.bf16.msra.mxu0 %v1184
    %3049 = vmatprep.subr.bf16.mxu0 %v1181
    %3050 = vmatpush1.bf16.msra.mxu0 %v1180
    %3051 = vmatprep.subr.bf16.mxu0 %v1177
    %3052 = vmatpush1.bf16.msra.mxu0 %v1176
    %3053 = vmatprep.subr.bf16.mxu0 %v1173
    %3054 = vmatpush1.bf16.msra.mxu0 %v1172
    %3055 = vmatprep.subr.bf16.mxu0 %v1169
    %3056 = vmatpush1.bf16.msra.mxu0 %v1168
    %3057 = vmatprep.subr.bf16.mxu0 %v1165
    %3058 = vmatpush1.bf16.msra.mxu0 %v1164
    %3059 = vmatprep.subr.bf16.mxu0 0
    %3060 = vmatpush2.bf16.msra.mxu0 0
    %3061 = vmatprep.subr.bf16.mxu0 0
    %3062 = vmatpush2.bf16.msra.mxu0 0
    %3063 = vmatprep.subr.bf16.mxu0 0
    %3064 = vmatpush2.bf16.msra.mxu0 0
    %3065 = vmatprep.subr.bf16.mxu0 0
    %3066 = vmatpush2.bf16.msra.mxu0 0
    %3067 = vmatprep.subr.bf16.mxu0 0
    %3068 = vmatpush2.bf16.msra.mxu0 0
    %3069 = vmatprep.subr.bf16.mxu0 0
    %3070 = vmatpush2.bf16.msra.mxu0 0
    %3071 = vmatprep.subr.bf16.mxu0 0
    %3072 = vmatpush2.bf16.msra.mxu0 0
    %3073 = vmatprep.subr.bf16.mxu0 0
    %3074 = vmatpush2.bf16.msra.mxu0 0
    %3075 = vmatprep.mubr.bf16.mxu0 0
    %3076 = vmatmul.mubr.bf16.gmra.mxu0 %v3001
    %v3077 = vpop.f32.mrf.mxu0
    %v3078 = vadd.f32 0.0, %v3077
    %v3079 = vpop.f32.mrf.mxu0
    %v3080 = vadd.f32 0.0, %v3079
    %v3081 = vpop.f32.mrf.mxu0
    %v3082 = vpop.f32.mrf.mxu0
    %3083 = vdwg.mxu0
    %v3084 = vadd.f32 %v2997, %v3037
    %v3085 = vadd.f32 %v2998, %v3039
    %v3086 = vadd.f32 %v2999, %v3078
    %v3087 = vadd.f32 %v3000, %v3080
    %s3088 = scalar_lea.vmem %s2, 56
    %v3089 = vld [vmem:[%s3088] sm:$0xff]
    %v3090 = vld [vmem:[%s143] sm:$0xff]
    %v3091 = vxor.u32 %v2991, 2147483648
    %v3092 = vmul.f32 %v3091, 1.442695
    %v3093 = vpow.pop %v3092
    %v3094 = vadd.f32 %v3093, 1.0
    %v3095 = vrcp.pop %v3094
    %v3096 = vmul.f32 1.0, %v3095
    %v3097 = vxor.u32 %v2992, 2147483648
    %v3098 = vmul.f32 %v3097, 1.442695
    %v3099 = vpow.pop %v3098
    %v3100 = vadd.f32 %v3099, 1.0
    %v3101 = vrcp.pop %v3100
    %v3102 = vmul.f32 1.0, %v3101
    %v3103 = vtanh.pop %v2993
    %v3104 = vxor.u32 %v2994, 2147483648
    %v3105 = vmul.f32 %v3104, 1.442695
    %v3106 = vpow.pop %v3105
    %v3107 = vadd.f32 %v3106, 1.0
    %v3108 = vrcp.pop %v3107
    %v3109 = vmul.f32 1.0, %v3108
    %v3110 = vmul.f32 %v3102, %v2860
    %v3111 = vmul.f32 %v3096, %v3103
    %v3112 = vadd.f32 %v3110, %v3111
    %v3113 = vtanh.pop %v3112
    %v3114 = vmul.f32 %v3109, %v3113
    %3116 = vset.pattern.permute.xlu0 0
    %3117 = vperm.xlu0 %3116, %v3089
    %v3118 = vpop.permute.xlu0 %3117
    %v3120 = vmul.f32 %v3118, %v3114
    %v3121 = vadd.f32 %v2869, %v3120
    %v3122 = vxor.u32 %v3084, 2147483648
    %v3123 = vmul.f32 %v3122, 1.442695
    %v3124 = vpow.pop %v3123
    %v3125 = vadd.f32 %v3124, 1.0
    %v3126 = vrcp.pop %v3125
    %v3127 = vmul.f32 1.0, %v3126
    %v3128 = vxor.u32 %v3085, 2147483648
    %v3129 = vmul.f32 %v3128, 1.442695
    %v3130 = vpow.pop %v3129
    %v3131 = vadd.f32 %v3130, 1.0
    %v3132 = vrcp.pop %v3131
    %v3133 = vmul.f32 1.0, %v3132
    %v3134 = vtanh.pop %v3086
    %v3135 = vxor.u32 %v3087, 2147483648
    %v3136 = vmul.f32 %v3135, 1.442695
    %v3137 = vpow.pop %v3136
    %v3138 = vadd.f32 %v3137, 1.0
    %v3139 = vrcp.pop %v3138
    %v3140 = vmul.f32 1.0, %v3139
    %v3141 = vmul.f32 %v3133, %v2900
    %v3142 = vmul.f32 %v3127, %v3134
    %v3143 = vadd.f32 %v3141, %v3142
    %v3144 = vtanh.pop %v3143
    %v3145 = vmul.f32 %v3140, %v3144
    %3147 = vset.pattern.permute.xlu0 0
    %3148 = vperm.xlu0 %3147, %v3090
    %v3149 = vpop.permute.xlu0 %3148
    %v3151 = vmul.f32 %v3149, %v3145
    %v3152 = vmul.f32 %v3149, %v3143
    %v3153 = vadd.f32 %v2901, %v3151
    %3154 = vst [vmem:[#allocation2] sm:$0xff] %v3114
    %3155 = vst [vmem:[#allocation3] sm:$0xff] %v3112
    %3156 = vst [vmem:[#allocation4] sm:$0xff] %v3121
    %3157 = vst [vmem:[#allocation5] sm:$0xff] %v3151
    %3158 = vst [vmem:[#allocation6] sm:$0xff] %v3152
    %3159 = vst [vmem:[#allocation7] sm:$0xff] %v3153
    // Predicated region
    $region70: #{birnn_dual_forward.1} parent=1 // pred_check
      %p3160 = pneg %p147
    $region71: #{birnn_dual_forward.1} parent=1 // pred_check_branch
      %3162 = sbr.rel (%p3160) target = $region73
    $region72: #{birnn_dual_forward.1} parent=1 // pred_region
      %v3163 = vld [vmem:[%s4] sm:$0xff]
      %v3164 = vld [vmem:[#allocation4] sm:$0xff]
      %3166 = vset.pattern.permute.xlu0 0
      %3167 = vperm.xlu0 %3166, %v3163
      %v3168 = vpop.permute.xlu0 %3167
      %v3170 = vmul.f32 %v3164, %v3168
      %3171 = vst [vmem:[%s11] sm:$0xff] %v3170
      %v3172 = vld [vmem:[#allocation7] sm:$0xff]
      %v3173 = vmul.f32 %v3172, %v3168
      %3174 = vst [vmem:[%s11 + $0x8] sm:$0xff] %v3173
    $region73: #{birnn_dual_forward.1} parent=1 // pred_fallthru
      _
    // Predicated region
    $region74: #{birnn_dual_forward.1} parent=1 // pred_check
      _
    $region75: #{birnn_dual_forward.1} parent=1 // pred_check_branch
      %3176 = sbr.rel (0) target = $region77
    $region76: #{birnn_dual_forward.1} parent=1 // pred_region
      _
    $region77: #{birnn_dual_forward.1} parent=1 // pred_fallthru
      _
    // Predicated region
    $region78: #{birnn_dual_forward.1} parent=1 // pred_check
      _
    $region79: #{birnn_dual_forward.1} parent=1 // pred_check_branch
      %3178 = sbr.rel (0) target = $region81
    $region80: #{birnn_dual_forward.1} parent=1 // pred_region
      _
    $region81: #{birnn_dual_forward.1} parent=1 // pred_fallthru
      _
    %3179 = vsyncpa [#allocation11], 1
    %3180 = vsyncpa [#allocation13], 1
    %3181 = vsyncpa [#allocation16], 1

</llo_original>
